<compile_context>
chip_gen: v5e
topology: v5e:2x2
jax: 0.10.0
libtpu: 0.0.40
codegen_flags: <defaults>
</compile_context>

<pallas_src>
import functools
import math

import jax
import jax.numpy as jnp
from jax.experimental import pallas as pl
from jax.experimental.pallas import tpu as pltpu


# ----------------------------------------------------------------------------
# Per-layer kernel body, run once per depth-grid step. All activations live in
# the persistent VMEM scratch z_ref; only the final [B, O] result leaves VMEM.
# ----------------------------------------------------------------------------
def _tt_layer_kernel(
    xp_ref,        # [B*Sp, Din]  input rows pre-placed at seq positions 1..T
    rmask_ref,     # [Sp, 1]      1.0 on data rows, 0.0 on cls / pad rows
    radd_ref,      # [Sp, E]      cls+pe[0] on row 0, pe[t] on data rows, 0 pad
    ffnw_ref,      # [Din, E]     pre-FFN W^T
    ffnb_ref,      # [1, E]
    win_ref,       # [1, E, 3E]   layer-d in_proj W^T (Q cols pre-scaled)
    bin_ref,       # [1, 1, 3E]
    wout_ref,      # [1, E, E]    layer-d out_proj W^T
    bout_ref,      # [1, 1, E]
    ln1w_ref, ln1b_ref,   # [1, 1, E]
    w1_ref,        # [1, E, F]    linear1 W^T (bf16, lane-dense)
    b1_ref,        # [1, 1, F]
    w2_ref,        # [1, E, F]    linear2 W     (bf16, lane-dense; contract F)
    b2_ref,        # [1, 1, E]
    ln2w_ref, ln2b_ref,   # [1, 1, E]
    projw_ref,     # [E, O]
    projb_ref,     # [1, O]
    o_ref,         # [B, O]
    z_ref,         # VMEM scratch [B*Sp, E], persists across the depth grid
    *, B, Sp, S, n_head, eps=1e-5,
):
    E = ffnw_ref.shape[1]
    Dh = E // n_head
    M = B * Sp
    d = pl.program_id(0)

    # ---- layer 0 only: pre-FFN (Linear+ReLU) + cls/PE/pad sequence assembly
    @pl.when(d == 0)
    def _init():
        h = jnp.dot(xp_ref[...], ffnw_ref[...],
                    preferred_element_type=jnp.float32)
        h = jnp.maximum(h + ffnb_ref[...], 0.0)                  # [M, E]
        h3 = h.reshape(B, Sp, E)
        z0 = h3 * rmask_ref[...][None] + radd_ref[...][None]     # [B, Sp, E]
        z_ref[...] = z0.reshape(M, E)

    z = z_ref[...]

    # key-padding bias, [1, Sp, Sp] (implicit broadcast over batch)
    col = jax.lax.broadcasted_iota(jnp.int32, (1, Sp, Sp), 2)
    key_bias = jnp.where(col < S, 0.0, -1e30).astype(jnp.float32)

    def layer_norm(v, w, b):
        mu = jnp.mean(v, axis=-1, keepdims=True)
        var = jnp.mean(jnp.square(v - mu), axis=-1, keepdims=True)
        return (v - mu) * jax.lax.rsqrt(var + eps) * w + b

    # ---- multi-head self-attention (batch folded into the M rows) ---------
    qkv = jnp.dot(z, win_ref[0], preferred_element_type=jnp.float32)
    qkv = qkv + bin_ref[0]                                        # [M, 3E]
    qkv3 = qkv.reshape(B, Sp, 3 * E)

    # TODO(synk): heads remain a static Python loop — Mosaic's dot_general
    # lowering does not accept the multi-batch-dim 'bqhd,bkhd->bhqk'
    # contraction, so per-head lane slices + single-leading-batch einsums are
    # used instead (scores/PV are tiny; this kernel is overhead-bound).
    heads = []
    for hh in range(n_head):
        q = qkv3[:, :, hh * Dh:(hh + 1) * Dh]                     # [B, Sp, Dh]
        k = qkv3[:, :, E + hh * Dh:E + (hh + 1) * Dh]
        v = qkv3[:, :, 2 * E + hh * Dh:2 * E + (hh + 1) * Dh]
        s = jnp.einsum('bqd,bkd->bqk', q, k,
                       preferred_element_type=jnp.float32)        # [B, Sp, Sp]
        s = s + key_bias
        s = s - jnp.max(s, axis=-1, keepdims=True)
        p = jnp.exp(s)
        p = p / jnp.sum(p, axis=-1, keepdims=True)                # exact softmax
        heads.append(jnp.einsum('bqk,bkd->bqd', p, v,
                                preferred_element_type=jnp.float32))
    ctx = jnp.concatenate(heads, axis=-1).reshape(M, E)           # [M, E]
    attn = jnp.dot(ctx, wout_ref[0],
                   preferred_element_type=jnp.float32) + bout_ref[0]

    # post-norm: z1 = LN1(z + attn)
    z1 = layer_norm(z + attn, ln1w_ref[0], ln1b_ref[0])

    # ---- feed-forward (E -> F -> E), bf16 weights, f32 accumulation --------
    h1 = jnp.dot(z1.astype(w1_ref.dtype), w1_ref[0],
                 preferred_element_type=jnp.float32) + b1_ref[0]
    h1 = jnp.maximum(h1, 0.0)
    # lane-dense w2 [E, F]: contract the last axes ('mf,ef->me')
    ff = jax.lax.dot_general(h1.astype(w2_ref.dtype), w2_ref[0],
                             (((1,), (1,)), ((), ())),
                             preferred_element_type=jnp.float32) + b2_ref[0]

    z_new = layer_norm(z1 + ff, ln2w_ref[0], ln2b_ref[0])
    z_ref[...] = z_new

    # ---- last layer only: cls rows -> low-dim projection -------------------
    @pl.when(d == pl.num_programs(0) - 1)
    def _final():
        cls_rows = z_new.reshape(B, Sp, E)[:, 0, :]               # [B, E]
        out = jnp.dot(cls_rows, projw_ref[...],
                      preferred_element_type=jnp.float32) + projb_ref[...]
        o_ref[...] = out.astype(o_ref.dtype)


# ----------------------------------------------------------------------------
# PositionalEncoding buffer (matches the PyTorch construction, max_len=31)
# ----------------------------------------------------------------------------
def positional_encoding(d_model, max_len=31):
    # cos branch (slice to d_model//2) matches PyTorch for even d_model.
    position = jnp.arange(max_len, dtype=jnp.float32)[:, None]
    div_term = jnp.exp(
        jnp.arange(0, d_model, 2, dtype=jnp.float32)
        * (-math.log(10000.0) / d_model))
    pe = jnp.zeros((max_len, d_model), jnp.float32)
    pe = pe.at[:, 0::2].set(jnp.sin(position * div_term))
    pe = pe.at[:, 1::2].set(jnp.cos(position * div_term)[:, : d_model // 2])
    return pe[None]  # [1, max_len, d_model]


# ----------------------------------------------------------------------------
# Parameter init (deterministic, synthetic)
# ----------------------------------------------------------------------------
def init_params(key, input_dim, embedding_dim, n_head, depth, output_dim,
                dim_ff=2048):
    E, F = embedding_dim, dim_ff
    keys = jax.random.split(key, 4 + depth)
    params = {
        "cls_token": 0.02 * jax.random.normal(keys[0], (1, 1, E), jnp.float32),
        "ffn_w_t": 0.05 * jax.random.normal(keys[1], (input_dim, E), jnp.float32),
        "ffn_b": jnp.zeros((E,), jnp.float32),
        "proj_w_t": 0.05 * jax.random.normal(keys[2], (E, output_dim), jnp.float32),
        "proj_b": jnp.zeros((output_dim,), jnp.float32),
        "pe": positional_encoding(E, max_len=31),
        "layers": [],
    }
    for d in range(depth):
        lk = jax.random.split(keys[4 + d], 4)
        params["layers"].append(dict(
            win_t=0.05 * jax.random.normal(lk[0], (E, 3 * E), jnp.float32),
            bin=jnp.zeros((1, 3 * E), jnp.float32),
            wout_t=0.05 * jax.random.normal(lk[1], (E, E), jnp.float32),
            bout=jnp.zeros((1, E), jnp.float32),
            ln1w=jnp.ones((1, E), jnp.float32),
            ln1b=jnp.zeros((1, E), jnp.float32),
            w1_t=0.05 * jax.random.normal(lk[2], (E, F), jnp.float32),
            b1=jnp.zeros((1, F), jnp.float32),
            w2_t=0.05 * jax.random.normal(lk[3], (F, E), jnp.float32),
            b2=jnp.zeros((1, E), jnp.float32),
            ln2w=jnp.ones((1, E), jnp.float32),
            ln2b=jnp.zeros((1, E), jnp.float32),
        ))
    return params


# ----------------------------------------------------------------------------
# ONE-TIME parameter preparation (hoisted out of the per-call path).
# Stacks per-layer weights on a depth axis, folds 1/sqrt(Dh) into the Q
# columns and Q bias of in_proj, casts FFN weights to bf16 (intentional
# precision change), stores linear2 lane-dense, and builds the cls/PE
# row-add + row-mask (batch-independent).
# ----------------------------------------------------------------------------
def prepare_params(params, *, n_head, seq_len, use_pe=True):
    E = params["cls_token"].shape[-1]
    S = seq_len + 1                      # cls token + T frames
    Sp = ((S + 7) // 8) * 8              # pad sequence to a sublane multiple

    def stk(name):
        return jnp.stack([lp[name] for lp in params["layers"]])

    scale = 1.0 / math.sqrt(E // n_head)
    qscale = jnp.concatenate([jnp.full((E,), scale, jnp.float32),
                              jnp.ones((2 * E,), jnp.float32)])

    pe = params["pe"][0, :S] if use_pe else jnp.zeros((S, E), jnp.float32)
    radd = jnp.zeros((Sp, E), jnp.float32)
    radd = radd.at[0].set(params["cls_token"][0, 0] + pe[0])
    radd = radd.at[1:S].set(pe[1:S])
    rmask = jnp.zeros((Sp, 1), jnp.float32).at[1:S].set(1.0)

    return dict(
        ffn_w_t=params["ffn_w_t"],
        ffn_b=params["ffn_b"].reshape(1, -1),
        radd=radd, rmask=rmask,
        win=stk("win_t") * qscale[None, None, :],
        bin=stk("bin") * qscale[None, None, :],
        wout=stk("wout_t"), bout=stk("bout"),
        ln1w=stk("ln1w"), ln1b=stk("ln1b"),
        w1=stk("w1_t").astype(jnp.bfloat16), b1=stk("b1"),
        # linear2 stored lane-dense [L, E, F]; kernel contracts the F axes.
        w2=jnp.swapaxes(stk("w2_t"), 1, 2).astype(jnp.bfloat16),
        b2=stk("b2"),
        ln2w=stk("ln2w"), ln2b=stk("ln2b"),
        proj_w_t=params["proj_w_t"],
        proj_b=params["proj_b"].reshape(1, -1),
    )


# ----------------------------------------------------------------------------
# Forward: pad the input rows (per-call layout plumbing) + ONE pallas_call
# over a depth grid with double-buffered per-layer weight blocks.
# ----------------------------------------------------------------------------
@functools.partial(jax.jit, static_argnames=("n_head",))
def temporal_transformer_forward(x, prep, *, n_head):
    """x: [B, T, input_dim] -> [B, output_dim]."""
    B, T, Din = x.shape
    Sp, E = prep["radd"].shape
    S = T + 1
    assert Sp >= S, (Sp, S)
    depth = prep["win"].shape[0]
    F = prep["w1"].shape[-1]
    O = prep["proj_w_t"].shape[1]
    M = B * Sp

    # input rows placed at sequence positions 1..T; zeros on cls / pad rows
    xp = jnp.pad(x, ((0, 0), (1, Sp - S), (0, 0))).reshape(M, Din)

    kernel = functools.partial(_tt_layer_kernel, B=B, Sp=Sp, S=S,
                               n_head=n_head)

    c2 = lambda d: (0, 0)            # shared (layer-invariant) 2-D operands
    c3 = lambda d: (d, 0, 0)         # per-layer 3-D weight blocks

    in_specs = [
        pl.BlockSpec((M, Din), c2),          # xp
        pl.BlockSpec((Sp, 1), c2),           # rmask
        pl.BlockSpec((Sp, E), c2),           # radd
        pl.BlockSpec((Din, E), c2),          # ffn_w_t
        pl.BlockSpec((1, E), c2),            # ffn_b
        pl.BlockSpec((1, E, 3 * E), c3),     # win
        pl.BlockSpec((1, 1, 3 * E), c3),     # bin
        pl.BlockSpec((1, E, E), c3),         # wout
        pl.BlockSpec((1, 1, E), c3),         # bout
        pl.BlockSpec((1, 1, E), c3),         # ln1w
        pl.BlockSpec((1, 1, E), c3),         # ln1b
        pl.BlockSpec((1, E, F), c3),         # w1 (bf16)
        pl.BlockSpec((1, 1, F), c3),         # b1
        pl.BlockSpec((1, E, F), c3),         # w2 (bf16, lane-dense)
        pl.BlockSpec((1, 1, E), c3),         # b2
        pl.BlockSpec((1, 1, E), c3),         # ln2w
        pl.BlockSpec((1, 1, E), c3),         # ln2b
        pl.BlockSpec((E, O), c2),            # proj_w_t
        pl.BlockSpec((1, O), c2),            # proj_b
    ]

    return pl.pallas_call(
        kernel,
        out_shape=jax.ShapeDtypeStruct((B, O), jnp.float32),
        grid_spec=pltpu.PrefetchScalarGridSpec(
            num_scalar_prefetch=0,
            grid=(depth,),
            in_specs=in_specs,
            out_specs=pl.BlockSpec((B, O), c2),
            scratch_shapes=[pltpu.VMEM((M, E), jnp.float32)],   # persistent z
        ),
        compiler_params=pltpu.CompilerParams(
            dimension_semantics=("arbitrary",),
            vmem_limit_bytes=32 * 1024 * 1024,
        ),
    )(xp, prep["rmask"], prep["radd"], prep["ffn_w_t"], prep["ffn_b"],
      prep["win"], prep["bin"], prep["wout"], prep["bout"],
      prep["ln1w"], prep["ln1b"], prep["w1"], prep["b1"], prep["w2"],
      prep["b2"], prep["ln2w"], prep["ln2b"],
      prep["proj_w_t"], prep["proj_b"])


if __name__ == "__main__":
    # TemporalTransformer(embedding_dim=32, n_head=4, depth=2, output_dim=8,
    #                     use_pe=True, input_dim=16)  -> pre_ffn is active.
    B, T = 2, 8
    input_dim, embedding_dim, n_head, depth, output_dim = 16, 32, 4, 2, 8

    key = jax.random.PRNGKey(0)
    pkey, xkey = jax.random.split(key)
    params = init_params(pkey, input_dim, embedding_dim, n_head, depth,
                         output_dim)
    # One-time prep (stacking / scale-fold / bf16 cast / PE rows) — cached.
    prep = prepare_params(params, n_head=n_head, seq_len=T, use_pe=True)
    x = jax.random.normal(xkey, (B, T, input_dim), jnp.float32)

    out = temporal_transformer_forward(x, prep, n_head=n_head)
    out = jax.block_until_ready(out)
    assert out.shape == (B, output_dim), out.shape
    assert bool(jnp.all(jnp.isfinite(out)))
    print("KERNEL_OK")
</pallas_src>

<mosaic_0001>
module attributes {stable_mosaic.version = 11 : i64} {
  func.func @_tt_layer_kernel(%arg0: i32, %arg1: memref<32x16xf32, #tpu.memory_space<vmem>>, %arg2: memref<16x1xf32, #tpu.memory_space<vmem>>, %arg3: memref<16x32xf32, #tpu.memory_space<vmem>>, %arg4: memref<16x32xf32, #tpu.memory_space<vmem>>, %arg5: memref<1x32xf32, #tpu.memory_space<vmem>>, %arg6: memref<1x32x96xf32, #tpu.memory_space<vmem>>, %arg7: memref<1x1x96xf32, #tpu.memory_space<vmem>>, %arg8: memref<1x32x32xf32, #tpu.memory_space<vmem>>, %arg9: memref<1x1x32xf32, #tpu.memory_space<vmem>>, %arg10: memref<1x1x32xf32, #tpu.memory_space<vmem>>, %arg11: memref<1x1x32xf32, #tpu.memory_space<vmem>>, %arg12: memref<1x32x2048xbf16, #tpu.memory_space<vmem>>, %arg13: memref<1x1x2048xf32, #tpu.memory_space<vmem>>, %arg14: memref<1x32x2048xbf16, #tpu.memory_space<vmem>>, %arg15: memref<1x1x32xf32, #tpu.memory_space<vmem>>, %arg16: memref<1x1x32xf32, #tpu.memory_space<vmem>>, %arg17: memref<1x1x32xf32, #tpu.memory_space<vmem>>, %arg18: memref<32x8xf32, #tpu.memory_space<vmem>>, %arg19: memref<1x8xf32, #tpu.memory_space<vmem>>, %arg20: memref<2x8xf32, #tpu.memory_space<vmem>>, %arg21: memref<32x32xf32, #tpu.memory_space<vmem>>) attributes {dimension_semantics = [#tpu.dimension_semantics<arbitrary>], iteration_bounds = array<i64: 2>, scalar_prefetch = 0 : i64, scratch_operands = 1 : i64, tpu.core_type = #tpu.core_type<tc>, window_params = [{pipeline_mode = #tpu.pipeline_mode<synchronous>, transform_indices = @transform_0, window_bounds = array<i64: 32, 16>}, {pipeline_mode = #tpu.pipeline_mode<synchronous>, transform_indices = @transform_1, window_bounds = array<i64: 16, 1>}, {pipeline_mode = #tpu.pipeline_mode<synchronous>, transform_indices = @transform_2, window_bounds = array<i64: 16, 32>}, {pipeline_mode = #tpu.pipeline_mode<synchronous>, transform_indices = @transform_3, window_bounds = array<i64: 16, 32>}, {pipeline_mode = #tpu.pipeline_mode<synchronous>, transform_indices = @transform_4, window_bounds = array<i64: 1, 32>}, {transform_indices = @transform_5, window_bounds = array<i64: 1, 32, 96>}, {transform_indices = @transform_6, window_bounds = array<i64: 1, 1, 96>}, {transform_indices = @transform_7, window_bounds = array<i64: 1, 32, 32>}, {transform_indices = @transform_8, window_bounds = array<i64: 1, 1, 32>}, {transform_indices = @transform_9, window_bounds = array<i64: 1, 1, 32>}, {transform_indices = @transform_10, window_bounds = array<i64: 1, 1, 32>}, {transform_indices = @transform_11, window_bounds = array<i64: 1, 32, 2048>}, {transform_indices = @transform_12, window_bounds = array<i64: 1, 1, 2048>}, {transform_indices = @transform_13, window_bounds = array<i64: 1, 32, 2048>}, {transform_indices = @transform_14, window_bounds = array<i64: 1, 1, 32>}, {transform_indices = @transform_15, window_bounds = array<i64: 1, 1, 32>}, {transform_indices = @transform_16, window_bounds = array<i64: 1, 1, 32>}, {pipeline_mode = #tpu.pipeline_mode<synchronous>, transform_indices = @transform_17, window_bounds = array<i64: 32, 8>}, {pipeline_mode = #tpu.pipeline_mode<synchronous>, transform_indices = @transform_18, window_bounds = array<i64: 1, 8>}, {pipeline_mode = #tpu.pipeline_mode<synchronous>, transform_indices = @transform_19, window_bounds = array<i64: 2, 8>}]} {
    %c0_i32 = arith.constant 0 : i32
    %0 = arith.cmpi eq, %arg0, %c0_i32 : i32
    %1 = arith.extui %0 : i1 to i32
    %c0_i32_0 = arith.constant 0 : i32
    %2 = arith.cmpi ne, %1, %c0_i32_0 : i32
    scf.if %2 {
      %c0_73 = arith.constant 0 : index
      %c0_74 = arith.constant 0 : index
      %167 = vector.load %arg1[%c0_73, %c0_74] : memref<32x16xf32, #tpu.memory_space<vmem>>, vector<32x16xf32>
      %c0_75 = arith.constant 0 : index
      %c0_76 = arith.constant 0 : index
      %168 = vector.load %arg4[%c0_75, %c0_76] : memref<16x32xf32, #tpu.memory_space<vmem>>, vector<16x32xf32>
      %cst_77 = arith.constant dense<0.000000e+00> : vector<32x32xf32>
      %169 = tpu.matmul %167, %168, %cst_77 {dimension_numbers = #tpu.dot_dimension_numbers<[1], [0], [0], [1], [0, 0, 1, 1], [], []>} : vector<32x16xf32>, vector<16x32xf32>, vector<32x32xf32> -> vector<32x32xf32>
      %c0_78 = arith.constant 0 : index
      %c0_79 = arith.constant 0 : index
      %170 = vector.load %arg5[%c0_78, %c0_79] : memref<1x32xf32, #tpu.memory_space<vmem>>, vector<1x32xf32>
      %171 = vector.broadcast %170 : vector<1x32xf32> to vector<32x32xf32>
      %172 = arith.addf %169, %171 : vector<32x32xf32>
      %cst_80 = arith.constant 0.000000e+00 : f32
      %173 = vector.broadcast %cst_80 : f32 to vector<32x32xf32>
      %174 = arith.maximumf %172, %173 : vector<32x32xf32>
      %175 = vector.shape_cast %174 : vector<32x32xf32> to vector<2x16x32xf32>
      %c0_81 = arith.constant 0 : index
      %c0_82 = arith.constant 0 : index
      %176 = vector.load %arg2[%c0_81, %c0_82] : memref<16x1xf32, #tpu.memory_space<vmem>>, vector<16x1xf32>
      %177 = vector.shape_cast %176 : vector<16x1xf32> to vector<1x16x1xf32>
      %178 = vector.broadcast %177 : vector<1x16x1xf32> to vector<2x16x32xf32>
      %179 = arith.mulf %175, %178 : vector<2x16x32xf32>
      %c0_83 = arith.constant 0 : index
      %c0_84 = arith.constant 0 : index
      %180 = vector.load %arg3[%c0_83, %c0_84] : memref<16x32xf32, #tpu.memory_space<vmem>>, vector<16x32xf32>
      %181 = vector.shape_cast %180 : vector<16x32xf32> to vector<1x16x32xf32>
      %182 = vector.broadcast %181 : vector<1x16x32xf32> to vector<2x16x32xf32>
      %183 = arith.addf %179, %182 : vector<2x16x32xf32>
      %184 = vector.shape_cast %183 : vector<2x16x32xf32> to vector<32x32xf32>
      %c0_85 = arith.constant 0 : index
      %c0_86 = arith.constant 0 : index
      %185 = vector.load %arg21[%c0_85, %c0_86] : memref<32x32xf32, #tpu.memory_space<vmem>>, vector<32x32xf32>
      tpu.vector_store %arg21[%c0_85, %c0_86], %184 {strides = array<i32>} : memref<32x32xf32, #tpu.memory_space<vmem>>, vector<32x32xf32>,
    } else {
    }
    %c0 = arith.constant 0 : index
    %c0_1 = arith.constant 0 : index
    %3 = vector.load %arg21[%c0, %c0_1] : memref<32x32xf32, #tpu.memory_space<vmem>>, vector<32x32xf32>
    %4 = tpu.iota {dimensions = array<i32: 2>} : vector<1x16x16xi32>
    %c9_i32 = arith.constant 9 : i32
    %5 = vector.broadcast %c9_i32 : i32 to vector<1x16x16xi32>
    %6 = arith.cmpi slt, %4, %5 : vector<1x16x16xi32>
    %cst = arith.constant 0.000000e+00 : f32
    %cst_2 = arith.constant -1.000000e+30 : f32
    %7 = vector.broadcast %cst : f32 to vector<1x16x16xf32>
    %8 = vector.broadcast %cst_2 : f32 to vector<1x16x16xf32>
    %9 = arith.select %6, %7, %8 : vector<1x16x16xi1>, vector<1x16x16xf32>
    %c0_3 = arith.constant 0 : index
    %c0_4 = arith.constant 0 : index
    %c0_5 = arith.constant 0 : index
    %10 = vector.load %arg6[%c0_3, %c0_4, %c0_5] : memref<1x32x96xf32, #tpu.memory_space<vmem>>, vector<1x32x96xf32>
    %11 = vector.shape_cast %10 : vector<1x32x96xf32> to vector<32x96xf32>
    %cst_6 = arith.constant dense<0.000000e+00> : vector<32x96xf32>
    %12 = tpu.matmul %3, %11, %cst_6 {dimension_numbers = #tpu.dot_dimension_numbers<[1], [0], [0], [1], [0, 0, 1, 1], [], []>} : vector<32x32xf32>, vector<32x96xf32>, vector<32x96xf32> -> vector<32x96xf32>
    %c0_7 = arith.constant 0 : index
    %c0_8 = arith.constant 0 : index
    %c0_9 = arith.constant 0 : index
    %13 = vector.load %arg7[%c0_7, %c0_8, %c0_9] : memref<1x1x96xf32, #tpu.memory_space<vmem>>, vector<1x1x96xf32>
    %14 = vector.shape_cast %13 : vector<1x1x96xf32> to vector<1x96xf32>
    %15 = vector.broadcast %14 : vector<1x96xf32> to vector<32x96xf32>
    %16 = arith.addf %12, %15 : vector<32x96xf32>
    %17 = vector.shape_cast %16 : vector<32x96xf32> to vector<2x16x96xf32>
    %18 = vector.extract_strided_slice %17 {offsets = [0, 0, 0], sizes = [2, 16, 8], strides = [1, 1, 1]} : vector<2x16x96xf32> to vector<2x16x8xf32>
    %19 = vector.extract_strided_slice %17 {offsets = [0, 0, 32], sizes = [2, 16, 8], strides = [1, 1, 1]} : vector<2x16x96xf32> to vector<2x16x8xf32>
    %20 = vector.extract_strided_slice %17 {offsets = [0, 0, 64], sizes = [2, 16, 8], strides = [1, 1, 1]} : vector<2x16x96xf32> to vector<2x16x8xf32>
    "tpu.trace_start"() <{level = 10 : i32, message = "bqd,bkd->bqk"}> : () -> ()
    %cst_10 = arith.constant dense<0.000000e+00> : vector<2x16x16xf32>
    %21 = tpu.matmul %18, %19, %cst_10 {dimension_numbers = #tpu.dot_dimension_numbers<[2], [2], [1], [1], [0, 0, 0, 1, 1, 1], [0], [0]>} : vector<2x16x8xf32>, vector<2x16x8xf32>, vector<2x16x16xf32> -> vector<2x16x16xf32>
    "tpu.trace_stop"() : () -> ()
    %22 = vector.broadcast %9 : vector<1x16x16xf32> to vector<2x16x16xf32>
    %23 = arith.addf %21, %22 : vector<2x16x16xf32>
    %cst_11 = arith.constant dense<0xFF800000> : vector<2x16xf32>
    %24 = vector.multi_reduction <maximumf>, %23, %cst_11 [2] : vector<2x16x16xf32> to vector<2x16xf32>
    %25 = vector.shape_cast %24 : vector<2x16xf32> to vector<2x16x1xf32>
    %26 = vector.broadcast %25 : vector<2x16x1xf32> to vector<2x16x16xf32>
    %27 = arith.subf %23, %26 : vector<2x16x16xf32>
    %28 = math.exp %27 : vector<2x16x16xf32>
    %cst_12 = arith.constant dense<0.000000e+00> : vector<2x16xf32>
    %29 = vector.multi_reduction <add>, %28, %cst_12 [2] : vector<2x16x16xf32> to vector<2x16xf32>
    %30 = vector.shape_cast %29 : vector<2x16xf32> to vector<2x16x1xf32>
    %31 = vector.broadcast %30 : vector<2x16x1xf32> to vector<2x16x16xf32>
    %32 = arith.divf %28, %31 : vector<2x16x16xf32>
    "tpu.trace_start"() <{level = 10 : i32, message = "bqk,bkd->bqd"}> : () -> ()
    %cst_13 = arith.constant dense<0.000000e+00> : vector<2x16x8xf32>
    %33 = tpu.matmul %32, %20, %cst_13 {dimension_numbers = #tpu.dot_dimension_numbers<[2], [1], [1], [2], [0, 0, 0, 1, 1, 2], [0], [0]>} : vector<2x16x16xf32>, vector<2x16x8xf32>, vector<2x16x8xf32> -> vector<2x16x8xf32>
    "tpu.trace_stop"() : () -> ()
    %34 = vector.extract_strided_slice %17 {offsets = [0, 0, 8], sizes = [2, 16, 8], strides = [1, 1, 1]} : vector<2x16x96xf32> to vector<2x16x8xf32>
    %35 = vector.extract_strided_slice %17 {offsets = [0, 0, 40], sizes = [2, 16, 8], strides = [1, 1, 1]} : vector<2x16x96xf32> to vector<2x16x8xf32>
    %36 = vector.extract_strided_slice %17 {offsets = [0, 0, 72], sizes = [2, 16, 8], strides = [1, 1, 1]} : vector<2x16x96xf32> to vector<2x16x8xf32>
    "tpu.trace_start"() <{level = 10 : i32, message = "bqd,bkd->bqk"}> : () -> ()
    %cst_14 = arith.constant dense<0.000000e+00> : vector<2x16x16xf32>
    %37 = tpu.matmul %34, %35, %cst_14 {dimension_numbers = #tpu.dot_dimension_numbers<[2], [2], [1], [1], [0, 0, 0, 1, 1, 1], [0], [0]>} : vector<2x16x8xf32>, vector<2x16x8xf32>, vector<2x16x16xf32> -> vector<2x16x16xf32>
    "tpu.trace_stop"() : () -> ()
    %38 = vector.broadcast %9 : vector<1x16x16xf32> to vector<2x16x16xf32>
    %39 = arith.addf %37, %38 : vector<2x16x16xf32>
    %cst_15 = arith.constant dense<0xFF800000> : vector<2x16xf32>
    %40 = vector.multi_reduction <maximumf>, %39, %cst_15 [2] : vector<2x16x16xf32> to vector<2x16xf32>
    %41 = vector.shape_cast %40 : vector<2x16xf32> to vector<2x16x1xf32>
    %42 = vector.broadcast %41 : vector<2x16x1xf32> to vector<2x16x16xf32>
    %43 = arith.subf %39, %42 : vector<2x16x16xf32>
    %44 = math.exp %43 : vector<2x16x16xf32>
    %cst_16 = arith.constant dense<0.000000e+00> : vector<2x16xf32>
    %45 = vector.multi_reduction <add>, %44, %cst_16 [2] : vector<2x16x16xf32> to vector<2x16xf32>
    %46 = vector.shape_cast %45 : vector<2x16xf32> to vector<2x16x1xf32>
    %47 = vector.broadcast %46 : vector<2x16x1xf32> to vector<2x16x16xf32>
    %48 = arith.divf %44, %47 : vector<2x16x16xf32>
    "tpu.trace_start"() <{level = 10 : i32, message = "bqk,bkd->bqd"}> : () -> ()
    %cst_17 = arith.constant dense<0.000000e+00> : vector<2x16x8xf32>
    %49 = tpu.matmul %48, %36, %cst_17 {dimension_numbers = #tpu.dot_dimension_numbers<[2], [1], [1], [2], [0, 0, 0, 1, 1, 2], [0], [0]>} : vector<2x16x16xf32>, vector<2x16x8xf32>, vector<2x16x8xf32> -> vector<2x16x8xf32>
    "tpu.trace_stop"() : () -> ()
    %50 = vector.extract_strided_slice %17 {offsets = [0, 0, 16], sizes = [2, 16, 8], strides = [1, 1, 1]} : vector<2x16x96xf32> to vector<2x16x8xf32>
    %51 = vector.extract_strided_slice %17 {offsets = [0, 0, 48], sizes = [2, 16, 8], strides = [1, 1, 1]} : vector<2x16x96xf32> to vector<2x16x8xf32>
    %52 = vector.extract_strided_slice %17 {offsets = [0, 0, 80], sizes = [2, 16, 8], strides = [1, 1, 1]} : vector<2x16x96xf32> to vector<2x16x8xf32>
    "tpu.trace_start"() <{level = 10 : i32, message = "bqd,bkd->bqk"}> : () -> ()
    %cst_18 = arith.constant dense<0.000000e+00> : vector<2x16x16xf32>
    %53 = tpu.matmul %50, %51, %cst_18 {dimension_numbers = #tpu.dot_dimension_numbers<[2], [2], [1], [1], [0, 0, 0, 1, 1, 1], [0], [0]>} : vector<2x16x8xf32>, vector<2x16x8xf32>, vector<2x16x16xf32> -> vector<2x16x16xf32>
    "tpu.trace_stop"() : () -> ()
    %54 = vector.broadcast %9 : vector<1x16x16xf32> to vector<2x16x16xf32>
    %55 = arith.addf %53, %54 : vector<2x16x16xf32>
    %cst_19 = arith.constant dense<0xFF800000> : vector<2x16xf32>
    %56 = vector.multi_reduction <maximumf>, %55, %cst_19 [2] : vector<2x16x16xf32> to vector<2x16xf32>
    %57 = vector.shape_cast %56 : vector<2x16xf32> to vector<2x16x1xf32>
    %58 = vector.broadcast %57 : vector<2x16x1xf32> to vector<2x16x16xf32>
    %59 = arith.subf %55, %58 : vector<2x16x16xf32>
    %60 = math.exp %59 : vector<2x16x16xf32>
    %cst_20 = arith.constant dense<0.000000e+00> : vector<2x16xf32>
    %61 = vector.multi_reduction <add>, %60, %cst_20 [2] : vector<2x16x16xf32> to vector<2x16xf32>
    %62 = vector.shape_cast %61 : vector<2x16xf32> to vector<2x16x1xf32>
    %63 = vector.broadcast %62 : vector<2x16x1xf32> to vector<2x16x16xf32>
    %64 = arith.divf %60, %63 : vector<2x16x16xf32>
    "tpu.trace_start"() <{level = 10 : i32, message = "bqk,bkd->bqd"}> : () -> ()
    %cst_21 = arith.constant dense<0.000000e+00> : vector<2x16x8xf32>
    %65 = tpu.matmul %64, %52, %cst_21 {dimension_numbers = #tpu.dot_dimension_numbers<[2], [1], [1], [2], [0, 0, 0, 1, 1, 2], [0], [0]>} : vector<2x16x16xf32>, vector<2x16x8xf32>, vector<2x16x8xf32> -> vector<2x16x8xf32>
    "tpu.trace_stop"() : () -> ()
    %66 = vector.extract_strided_slice %17 {offsets = [0, 0, 24], sizes = [2, 16, 8], strides = [1, 1, 1]} : vector<2x16x96xf32> to vector<2x16x8xf32>
    %67 = vector.extract_strided_slice %17 {offsets = [0, 0, 56], sizes = [2, 16, 8], strides = [1, 1, 1]} : vector<2x16x96xf32> to vector<2x16x8xf32>
    %68 = vector.extract_strided_slice %17 {offsets = [0, 0, 88], sizes = [2, 16, 8], strides = [1, 1, 1]} : vector<2x16x96xf32> to vector<2x16x8xf32>
    "tpu.trace_start"() <{level = 10 : i32, message = "bqd,bkd->bqk"}> : () -> ()
    %cst_22 = arith.constant dense<0.000000e+00> : vector<2x16x16xf32>
    %69 = tpu.matmul %66, %67, %cst_22 {dimension_numbers = #tpu.dot_dimension_numbers<[2], [2], [1], [1], [0, 0, 0, 1, 1, 1], [0], [0]>} : vector<2x16x8xf32>, vector<2x16x8xf32>, vector<2x16x16xf32> -> vector<2x16x16xf32>
    "tpu.trace_stop"() : () -> ()
    %70 = vector.broadcast %9 : vector<1x16x16xf32> to vector<2x16x16xf32>
    %71 = arith.addf %69, %70 : vector<2x16x16xf32>
    %cst_23 = arith.constant dense<0xFF800000> : vector<2x16xf32>
    %72 = vector.multi_reduction <maximumf>, %71, %cst_23 [2] : vector<2x16x16xf32> to vector<2x16xf32>
    %73 = vector.shape_cast %72 : vector<2x16xf32> to vector<2x16x1xf32>
    %74 = vector.broadcast %73 : vector<2x16x1xf32> to vector<2x16x16xf32>
    %75 = arith.subf %71, %74 : vector<2x16x16xf32>
    %76 = math.exp %75 : vector<2x16x16xf32>
    %cst_24 = arith.constant dense<0.000000e+00> : vector<2x16xf32>
    %77 = vector.multi_reduction <add>, %76, %cst_24 [2] : vector<2x16x16xf32> to vector<2x16xf32>
    %78 = vector.shape_cast %77 : vector<2x16xf32> to vector<2x16x1xf32>
    %79 = vector.broadcast %78 : vector<2x16x1xf32> to vector<2x16x16xf32>
    %80 = arith.divf %76, %79 : vector<2x16x16xf32>
    "tpu.trace_start"() <{level = 10 : i32, message = "bqk,bkd->bqd"}> : () -> ()
    %cst_25 = arith.constant dense<0.000000e+00> : vector<2x16x8xf32>
    %81 = tpu.matmul %80, %68, %cst_25 {dimension_numbers = #tpu.dot_dimension_numbers<[2], [1], [1], [2], [0, 0, 0, 1, 1, 2], [0], [0]>} : vector<2x16x16xf32>, vector<2x16x8xf32>, vector<2x16x8xf32> -> vector<2x16x8xf32>
    "tpu.trace_stop"() : () -> ()
    %82 = tpu.concatenate %33, %49, %65, %81 in 2 : vector<2x16x8xf32>, vector<2x16x8xf32>, vector<2x16x8xf32>, vector<2x16x8xf32> -> vector<2x16x32xf32>
    %83 = vector.shape_cast %82 : vector<2x16x32xf32> to vector<32x32xf32>
    %c0_26 = arith.constant 0 : index
    %c0_27 = arith.constant 0 : index
    %c0_28 = arith.constant 0 : index
    %84 = vector.load %arg8[%c0_26, %c0_27, %c0_28] : memref<1x32x32xf32, #tpu.memory_space<vmem>>, vector<1x32x32xf32>
    %85 = vector.shape_cast %84 : vector<1x32x32xf32> to vector<32x32xf32>
    %cst_29 = arith.constant dense<0.000000e+00> : vector<32x32xf32>
    %86 = tpu.matmul %83, %85, %cst_29 {dimension_numbers = #tpu.dot_dimension_numbers<[1], [0], [0], [1], [0, 0, 1, 1], [], []>} : vector<32x32xf32>, vector<32x32xf32>, vector<32x32xf32> -> vector<32x32xf32>
    %c0_30 = arith.constant 0 : index
    %c0_31 = arith.constant 0 : index
    %c0_32 = arith.constant 0 : index
    %87 = vector.load %arg9[%c0_30, %c0_31, %c0_32] : memref<1x1x32xf32, #tpu.memory_space<vmem>>, vector<1x1x32xf32>
    %88 = vector.shape_cast %87 : vector<1x1x32xf32> to vector<1x32xf32>
    %89 = vector.broadcast %88 : vector<1x32xf32> to vector<32x32xf32>
    %90 = arith.addf %86, %89 : vector<32x32xf32>
    %91 = arith.addf %3, %90 : vector<32x32xf32>
    %c0_33 = arith.constant 0 : index
    %c0_34 = arith.constant 0 : index
    %c0_35 = arith.constant 0 : index
    %92 = vector.load %arg10[%c0_33, %c0_34, %c0_35] : memref<1x1x32xf32, #tpu.memory_space<vmem>>, vector<1x1x32xf32>
    %93 = vector.shape_cast %92 : vector<1x1x32xf32> to vector<1x32xf32>
    %c0_36 = arith.constant 0 : index
    %c0_37 = arith.constant 0 : index
    %c0_38 = arith.constant 0 : index
    %94 = vector.load %arg11[%c0_36, %c0_37, %c0_38] : memref<1x1x32xf32, #tpu.memory_space<vmem>>, vector<1x1x32xf32>
    %95 = vector.shape_cast %94 : vector<1x1x32xf32> to vector<1x32xf32>
    %cst_39 = arith.constant dense<0.000000e+00> : vector<32xf32>
    %96 = vector.multi_reduction <add>, %91, %cst_39 [1] : vector<32x32xf32> to vector<32xf32>
    %97 = vector.shape_cast %96 : vector<32xf32> to vector<32x1xf32>
    %cst_40 = arith.constant 3.200000e+01 : f32
    %98 = vector.broadcast %cst_40 : f32 to vector<32x1xf32>
    %99 = arith.divf %97, %98 : vector<32x1xf32>
    %100 = vector.broadcast %99 : vector<32x1xf32> to vector<32x32xf32>
    %101 = arith.subf %91, %100 : vector<32x32xf32>
    %102 = arith.mulf %101, %101 : vector<32x32xf32>
    %cst_41 = arith.constant dense<0.000000e+00> : vector<32xf32>
    %103 = vector.multi_reduction <add>, %102, %cst_41 [1] : vector<32x32xf32> to vector<32xf32>
    %104 = vector.shape_cast %103 : vector<32xf32> to vector<32x1xf32>
    %cst_42 = arith.constant 3.200000e+01 : f32
    %105 = vector.broadcast %cst_42 : f32 to vector<32x1xf32>
    %106 = arith.divf %104, %105 : vector<32x1xf32>
    %107 = vector.broadcast %99 : vector<32x1xf32> to vector<32x32xf32>
    %108 = arith.subf %91, %107 : vector<32x32xf32>
    %cst_43 = arith.constant 9.99999974E-6 : f32
    %109 = vector.broadcast %cst_43 : f32 to vector<32x1xf32>
    %110 = arith.addf %106, %109 : vector<32x1xf32>
    %111 = math.rsqrt %110 : vector<32x1xf32>
    %112 = vector.broadcast %111 : vector<32x1xf32> to vector<32x32xf32>
    %113 = arith.mulf %108, %112 : vector<32x32xf32>
    %114 = vector.broadcast %93 : vector<1x32xf32> to vector<32x32xf32>
    %115 = arith.mulf %113, %114 : vector<32x32xf32>
    %116 = vector.broadcast %95 : vector<1x32xf32> to vector<32x32xf32>
    %117 = arith.addf %115, %116 : vector<32x32xf32>
    %118 = arith.truncf %117 : vector<32x32xf32> to vector<32x32xbf16>
    %c0_44 = arith.constant 0 : index
    %c0_45 = arith.constant 0 : index
    %c0_46 = arith.constant 0 : index
    %119 = vector.load %arg12[%c0_44, %c0_45, %c0_46] : memref<1x32x2048xbf16, #tpu.memory_space<vmem>>, vector<1x32x2048xbf16>
    %120 = vector.shape_cast %119 : vector<1x32x2048xbf16> to vector<32x2048xbf16>
    %cst_47 = arith.constant dense<0.000000e+00> : vector<32x2048xf32>
    %121 = tpu.matmul %118, %120, %cst_47 {dimension_numbers = #tpu.dot_dimension_numbers<[1], [0], [0], [1], [0, 0, 1, 1], [], []>} : vector<32x32xbf16>, vector<32x2048xbf16>, vector<32x2048xf32> -> vector<32x2048xf32>
    %c0_48 = arith.constant 0 : index
    %c0_49 = arith.constant 0 : index
    %c0_50 = arith.constant 0 : index
    %122 = vector.load %arg13[%c0_48, %c0_49, %c0_50] : memref<1x1x2048xf32, #tpu.memory_space<vmem>>, vector<1x1x2048xf32>
    %123 = vector.shape_cast %122 : vector<1x1x2048xf32> to vector<1x2048xf32>
    %124 = vector.broadcast %123 : vector<1x2048xf32> to vector<32x2048xf32>
    %125 = arith.addf %121, %124 : vector<32x2048xf32>
    %cst_51 = arith.constant 0.000000e+00 : f32
    %126 = vector.broadcast %cst_51 : f32 to vector<32x2048xf32>
    %127 = arith.maximumf %125, %126 : vector<32x2048xf32>
    %128 = arith.truncf %127 : vector<32x2048xf32> to vector<32x2048xbf16>
    %c0_52 = arith.constant 0 : index
    %c0_53 = arith.constant 0 : index
    %c0_54 = arith.constant 0 : index
    %129 = vector.load %arg14[%c0_52, %c0_53, %c0_54] : memref<1x32x2048xbf16, #tpu.memory_space<vmem>>, vector<1x32x2048xbf16>
    %130 = vector.shape_cast %129 : vector<1x32x2048xbf16> to vector<32x2048xbf16>
    %cst_55 = arith.constant dense<0.000000e+00> : vector<32x32xf32>
    %131 = tpu.matmul %128, %130, %cst_55 {dimension_numbers = #tpu.dot_dimension_numbers<[1], [1], [0], [0], [0, 0, 1, 0], [], []>} : vector<32x2048xbf16>, vector<32x2048xbf16>, vector<32x32xf32> -> vector<32x32xf32>
    %c0_56 = arith.constant 0 : index
    %c0_57 = arith.constant 0 : index
    %c0_58 = arith.constant 0 : index
    %132 = vector.load %arg15[%c0_56, %c0_57, %c0_58] : memref<1x1x32xf32, #tpu.memory_space<vmem>>, vector<1x1x32xf32>
    %133 = vector.shape_cast %132 : vector<1x1x32xf32> to vector<1x32xf32>
    %134 = vector.broadcast %133 : vector<1x32xf32> to vector<32x32xf32>
    %135 = arith.addf %131, %134 : vector<32x32xf32>
    %136 = arith.addf %117, %135 : vector<32x32xf32>
    %c0_59 = arith.constant 0 : index
    %c0_60 = arith.constant 0 : index
    %c0_61 = arith.constant 0 : index
    %137 = vector.load %arg16[%c0_59, %c0_60, %c0_61] : memref<1x1x32xf32, #tpu.memory_space<vmem>>, vector<1x1x32xf32>
    %138 = vector.shape_cast %137 : vector<1x1x32xf32> to vector<1x32xf32>
    %c0_62 = arith.constant 0 : index
    %c0_63 = arith.constant 0 : index
    %c0_64 = arith.constant 0 : index
    %139 = vector.load %arg17[%c0_62, %c0_63, %c0_64] : memref<1x1x32xf32, #tpu.memory_space<vmem>>, vector<1x1x32xf32>
    %140 = vector.shape_cast %139 : vector<1x1x32xf32> to vector<1x32xf32>
    %cst_65 = arith.constant dense<0.000000e+00> : vector<32xf32>
    %141 = vector.multi_reduction <add>, %136, %cst_65 [1] : vector<32x32xf32> to vector<32xf32>
    %142 = vector.shape_cast %141 : vector<32xf32> to vector<32x1xf32>
    %cst_66 = arith.constant 3.200000e+01 : f32
    %143 = vector.broadcast %cst_66 : f32 to vector<32x1xf32>
    %144 = arith.divf %142, %143 : vector<32x1xf32>
    %145 = vector.broadcast %144 : vector<32x1xf32> to vector<32x32xf32>
    %146 = arith.subf %136, %145 : vector<32x32xf32>
    %147 = arith.mulf %146, %146 : vector<32x32xf32>
    %cst_67 = arith.constant dense<0.000000e+00> : vector<32xf32>
    %148 = vector.multi_reduction <add>, %147, %cst_67 [1] : vector<32x32xf32> to vector<32xf32>
    %149 = vector.shape_cast %148 : vector<32xf32> to vector<32x1xf32>
    %cst_68 = arith.constant 3.200000e+01 : f32
    %150 = vector.broadcast %cst_68 : f32 to vector<32x1xf32>
    %151 = arith.divf %149, %150 : vector<32x1xf32>
    %152 = vector.broadcast %144 : vector<32x1xf32> to vector<32x32xf32>
    %153 = arith.subf %136, %152 : vector<32x32xf32>
    %cst_69 = arith.constant 9.99999974E-6 : f32
    %154 = vector.broadcast %cst_69 : f32 to vector<32x1xf32>
    %155 = arith.addf %151, %154 : vector<32x1xf32>
    %156 = math.rsqrt %155 : vector<32x1xf32>
    %157 = vector.broadcast %156 : vector<32x1xf32> to vector<32x32xf32>
    %158 = arith.mulf %153, %157 : vector<32x32xf32>
    %159 = vector.broadcast %138 : vector<1x32xf32> to vector<32x32xf32>
    %160 = arith.mulf %158, %159 : vector<32x32xf32>
    %161 = vector.broadcast %140 : vector<1x32xf32> to vector<32x32xf32>
    %162 = arith.addf %160, %161 : vector<32x32xf32>
    %c0_70 = arith.constant 0 : index
    %c0_71 = arith.constant 0 : index
    %163 = vector.load %arg21[%c0_70, %c0_71] : memref<32x32xf32, #tpu.memory_space<vmem>>, vector<32x32xf32>
    tpu.vector_store %arg21[%c0_70, %c0_71], %162 {strides = array<i32>} : memref<32x32xf32, #tpu.memory_space<vmem>>, vector<32x32xf32>,
    %c1_i32 = arith.constant 1 : i32
    %164 = arith.cmpi eq, %arg0, %c1_i32 : i32
    %165 = arith.extui %164 : i1 to i32
    %c0_i32_72 = arith.constant 0 : i32
    %166 = arith.cmpi ne, %165, %c0_i32_72 : i32
    scf.if %166 {
      %167 = vector.shape_cast %162 : vector<32x32xf32> to vector<2x16x32xf32>
      %168 = vector.extract_strided_slice %167 {offsets = [0, 0, 0], sizes = [2, 1, 32], strides = [1, 1, 1]} : vector<2x16x32xf32> to vector<2x1x32xf32>
      %169 = vector.shape_cast %168 : vector<2x1x32xf32> to vector<2x32xf32>
      %c0_73 = arith.constant 0 : index
      %c0_74 = arith.constant 0 : index
      %170 = vector.load %arg18[%c0_73, %c0_74] : memref<32x8xf32, #tpu.memory_space<vmem>>, vector<32x8xf32>
      %cst_75 = arith.constant dense<0.000000e+00> : vector<2x8xf32>
      %171 = tpu.matmul %169, %170, %cst_75 {dimension_numbers = #tpu.dot_dimension_numbers<[1], [0], [0], [1], [0, 0, 1, 1], [], []>} : vector<2x32xf32>, vector<32x8xf32>, vector<2x8xf32> -> vector<2x8xf32>
      %c0_76 = arith.constant 0 : index
      %c0_77 = arith.constant 0 : index
      %172 = vector.load %arg19[%c0_76, %c0_77] : memref<1x8xf32, #tpu.memory_space<vmem>>, vector<1x8xf32>
      %173 = vector.broadcast %172 : vector<1x8xf32> to vector<2x8xf32>
      %174 = arith.addf %171, %173 : vector<2x8xf32>
      %c0_78 = arith.constant 0 : index
      %c0_79 = arith.constant 0 : index
      %175 = vector.load %arg20[%c0_78, %c0_79] : memref<2x8xf32, #tpu.memory_space<vmem>>, vector<2x8xf32>
      tpu.vector_store %arg20[%c0_78, %c0_79], %174 {strides = array<i32>} : memref<2x8xf32, #tpu.memory_space<vmem>>, vector<2x8xf32>,
    } else {
    }
    return
  }
  func.func @transform_0(%arg0: i32) -> (i32, i32) {
    %c0_i32 = arith.constant 0 : i32
    %c0_i32_0 = arith.constant 0 : i32
    %c0_i32_1 = arith.constant 0 : i32
    return %c0_i32, %c0_i32_0 : i32, i32
  }
  func.func @transform_1(%arg0: i32) -> (i32, i32) {
    %c0_i32 = arith.constant 0 : i32
    %c0_i32_0 = arith.constant 0 : i32
    %c0_i32_1 = arith.constant 0 : i32
    return %c0_i32, %c0_i32_0 : i32, i32
  }
  func.func @transform_2(%arg0: i32) -> (i32, i32) {
    %c0_i32 = arith.constant 0 : i32
    %c0_i32_0 = arith.constant 0 : i32
    %c0_i32_1 = arith.constant 0 : i32
    return %c0_i32, %c0_i32_0 : i32, i32
  }
  func.func @transform_3(%arg0: i32) -> (i32, i32) {
    %c0_i32 = arith.constant 0 : i32
    %c0_i32_0 = arith.constant 0 : i32
    %c0_i32_1 = arith.constant 0 : i32
    return %c0_i32, %c0_i32_0 : i32, i32
  }
  func.func @transform_4(%arg0: i32) -> (i32, i32) {
    %c0_i32 = arith.constant 0 : i32
    %c0_i32_0 = arith.constant 0 : i32
    %c0_i32_1 = arith.constant 0 : i32
    return %c0_i32, %c0_i32_0 : i32, i32
  }
  func.func @transform_5(%arg0: i32) -> (i32, i32, i32) {
    %c0_i32 = arith.constant 0 : i32
    %c0_i32_0 = arith.constant 0 : i32
    %c0_i32_1 = arith.constant 0 : i32
    return %arg0, %c0_i32, %c0_i32_0 : i32, i32, i32
  }
  func.func @transform_6(%arg0: i32) -> (i32, i32, i32) {
    %c0_i32 = arith.constant 0 : i32
    %c0_i32_0 = arith.constant 0 : i32
    %c0_i32_1 = arith.constant 0 : i32
    return %arg0, %c0_i32, %c0_i32_0 : i32, i32, i32
  }
  func.func @transform_7(%arg0: i32) -> (i32, i32, i32) {
    %c0_i32 = arith.constant 0 : i32
    %c0_i32_0 = arith.constant 0 : i32
    %c0_i32_1 = arith.constant 0 : i32
    return %arg0, %c0_i32, %c0_i32_0 : i32, i32, i32
  }
  func.func @transform_8(%arg0: i32) -> (i32, i32, i32) {
    %c0_i32 = arith.constant 0 : i32
    %c0_i32_0 = arith.constant 0 : i32
    %c0_i32_1 = arith.constant 0 : i32
    return %arg0, %c0_i32, %c0_i32_0 : i32, i32, i32
  }
  func.func @transform_9(%arg0: i32) -> (i32, i32, i32) {
    %c0_i32 = arith.constant 0 : i32
    %c0_i32_0 = arith.constant 0 : i32
    %c0_i32_1 = arith.constant 0 : i32
    return %arg0, %c0_i32, %c0_i32_0 : i32, i32, i32
  }
  func.func @transform_10(%arg0: i32) -> (i32, i32, i32) {
    %c0_i32 = arith.constant 0 : i32
    %c0_i32_0 = arith.constant 0 : i32
    %c0_i32_1 = arith.constant 0 : i32
    return %arg0, %c0_i32, %c0_i32_0 : i32, i32, i32
  }
  func.func @transform_11(%arg0: i32) -> (i32, i32, i32) {
    %c0_i32 = arith.constant 0 : i32
    %c0_i32_0 = arith.constant 0 : i32
    %c0_i32_1 = arith.constant 0 : i32
    return %arg0, %c0_i32, %c0_i32_0 : i32, i32, i32
  }
  func.func @transform_12(%arg0: i32) -> (i32, i32, i32) {
    %c0_i32 = arith.constant 0 : i32
    %c0_i32_0 = arith.constant 0 : i32
    %c0_i32_1 = arith.constant 0 : i32
    return %arg0, %c0_i32, %c0_i32_0 : i32, i32, i32
  }
  func.func @transform_13(%arg0: i32) -> (i32, i32, i32) {
    %c0_i32 = arith.constant 0 : i32
    %c0_i32_0 = arith.constant 0 : i32
    %c0_i32_1 = arith.constant 0 : i32
    return %arg0, %c0_i32, %c0_i32_0 : i32, i32, i32
  }
  func.func @transform_14(%arg0: i32) -> (i32, i32, i32) {
    %c0_i32 = arith.constant 0 : i32
    %c0_i32_0 = arith.constant 0 : i32
    %c0_i32_1 = arith.constant 0 : i32
    return %arg0, %c0_i32, %c0_i32_0 : i32, i32, i32
  }
  func.func @transform_15(%arg0: i32) -> (i32, i32, i32) {
    %c0_i32 = arith.constant 0 : i32
    %c0_i32_0 = arith.constant 0 : i32
    %c0_i32_1 = arith.constant 0 : i32
    return %arg0, %c0_i32, %c0_i32_0 : i32, i32, i32
  }
  func.func @transform_16(%arg0: i32) -> (i32, i32, i32) {
    %c0_i32 = arith.constant 0 : i32
    %c0_i32_0 = arith.constant 0 : i32
    %c0_i32_1 = arith.constant 0 : i32
    return %arg0, %c0_i32, %c0_i32_0 : i32, i32, i32
  }
  func.func @transform_17(%arg0: i32) -> (i32, i32) {
    %c0_i32 = arith.constant 0 : i32
    %c0_i32_0 = arith.constant 0 : i32
    %c0_i32_1 = arith.constant 0 : i32
    return %c0_i32, %c0_i32_0 : i32, i32
  }
  func.func @transform_18(%arg0: i32) -> (i32, i32) {
    %c0_i32 = arith.constant 0 : i32
    %c0_i32_0 = arith.constant 0 : i32
    %c0_i32_1 = arith.constant 0 : i32
    return %c0_i32, %c0_i32_0 : i32, i32
  }
  func.func @transform_19(%arg0: i32) -> (i32, i32) {
    %c0_i32 = arith.constant 0 : i32
    %c0_i32_0 = arith.constant 0 : i32
    %c0_i32_1 = arith.constant 0 : i32
    return %c0_i32, %c0_i32_0 : i32, i32
  }
}

</mosaic_0001>

<llo_original>
// kernel: temporal_transformer_forward.1
$region0: #{temporal_transformer_forward.1}
  #allocation0 [shape = 'u32[]', space=smem, size = 0x4, offset = 0x4, fixed_abs, tag = 'smem constant byte address 0x4 - core index']
  #allocation1 [shape = 'u32[72,128]{1,0:T(1,128)}', space=vmem, size = 0x9000, scoped, tag = 'internal scratch']
  #allocation2 [shape = 'f32[32,32]{1,0:T(8,128)}', space=vmem, size = 0x4000, scoped, tag = 'scratch operand']
  %s0 = inlined_call_operand.vmem [shape: f32[32,16], index: 0, kind: input, shape index: {}]
  %s1 = inlined_call_operand.vmem [shape: f32[16,1], index: 1, kind: input, shape index: {}]
  %s2 = inlined_call_operand.vmem [shape: f32[16,32], index: 2, kind: input, shape index: {}]
  %s3 = inlined_call_operand.hbm [shape: f32[16,32], index: 3, kind: input, shape index: {}]
  %s4 = inlined_call_operand.vmem [shape: f32[1,32], index: 4, kind: input, shape index: {}]
  %s5 = inlined_call_operand.vmem [shape: f32[2,32,96], index: 5, kind: input, shape index: {}]
  %s6 = inlined_call_operand.vmem [shape: f32[2,1,96], index: 6, kind: input, shape index: {}]
  %s7 = inlined_call_operand.hbm [shape: f32[2,32,32], index: 7, kind: input, shape index: {}]
  %s8 = inlined_call_operand.vmem [shape: f32[2,1,32], index: 8, kind: input, shape index: {}]
  %s9 = inlined_call_operand.vmem [shape: f32[2,1,32], index: 9, kind: input, shape index: {}]
  %s10 = inlined_call_operand.hbm [shape: f32[2,1,32], index: 10, kind: input, shape index: {}]
  %s11 = inlined_call_operand.hbm [shape: bf16[2,32,2048], index: 11, kind: input, shape index: {}]
  %s12 = inlined_call_operand.hbm [shape: f32[2,1,2048], index: 12, kind: input, shape index: {}]
  %s13 = inlined_call_operand.hbm [shape: bf16[2,32,2048], index: 13, kind: input, shape index: {}]
  %s14 = inlined_call_operand.hbm [shape: f32[2,1,32], index: 14, kind: input, shape index: {}]
  %s15 = inlined_call_operand.vmem [shape: f32[2,1,32], index: 15, kind: input, shape index: {}]
  %s16 = inlined_call_operand.hbm [shape: f32[2,1,32], index: 16, kind: input, shape index: {}]
  %s17 = inlined_call_operand.vmem [shape: f32[32,8], index: 17, kind: input, shape index: {}]
  %s18 = inlined_call_operand.vmem [shape: f32[1,8], index: 18, kind: input, shape index: {}]
  %s19 = inlined_call_operand.hbm [shape: f32[2,8], index: 19, kind: output, shape index: {}]
  %s20 = sld [smem:[#allocation0]]
  $region149: #{temporal_transformer_forward.1} parent=0
    _
  %s22 = ssub.s32 1, %s20
  %s23 = scalar_select 0, %s22, %s20
  $region1: #{temporal_transformer_forward.1} parent=0
    #allocation3 [shape = 'u8[8192]{0}', space=vmem, size = 0x2000, scoped, tag = 'input window, operand 3, single buffered']
    #allocation4 [shape = 's32[2]{0}', space=sflag, size = 0x8, scoped, tag = 'scoped memory for temporal_transformer_forward.1']
    #allocation5 [shape = 's32[2]{0}', space=sflag, size = 0x8, scoped, tag = 'scoped memory for temporal_transformer_forward.1']
    #allocation6 [shape = 'u8[32768]{0}', space=vmem, size = 0x8000, scoped, tag = 'input window, operand 7']
    #allocation7 [shape = 's32[2]{0}', space=sflag, size = 0x8, scoped, tag = 'scoped memory for temporal_transformer_forward.1']
    #allocation8 [shape = 'u8[1024]{0}', space=vmem, size = 0x400, scoped, tag = 'input window, operand 10']
    #allocation9 [shape = 'u8[262144]{0}', space=vmem, size = 0x40000, scoped, tag = 'input window, operand 11']
    #allocation10 [shape = 's32[2]{0}', space=sflag, size = 0x8, scoped, tag = 'scoped memory for temporal_transformer_forward.1']
    #allocation11 [shape = 'u8[16384]{0}', space=vmem, size = 0x4000, scoped, tag = 'input window, operand 12']
    #allocation12 [shape = 'u8[262144]{0}', space=vmem, size = 0x40000, scoped, tag = 'input window, operand 13']
    #allocation13 [shape = 's32[2]{0}', space=sflag, size = 0x8, scoped, tag = 'scoped memory for temporal_transformer_forward.1']
    #allocation14 [shape = 'u8[1024]{0}', space=vmem, size = 0x400, scoped, tag = 'input window, operand 14']
    #allocation15 [shape = 'u8[1024]{0}', space=vmem, size = 0x400, scoped, tag = 'input window, operand 16']
    #allocation16 [shape = 's32[2]{0}', space=sflag, size = 0x8, scoped, tag = 'scoped memory for temporal_transformer_forward.1']
    #allocation17 [shape = 'u8[1024]{0}', space=vmem, size = 0x400, scoped, tag = 'output window, operand 0, single buffered']
    %24 = vsyncpa [#allocation4], 0
    %25 = vsyncpa [#allocation7], 0
    %s26 = scalar_lea.sflag [#allocation7], 1
    %27 = vsyncpa %s26, 0
    %28 = vsyncpa [#allocation10], 0
    %s29 = scalar_lea.sflag [#allocation10], 1
    %30 = vsyncpa %s29, 0
    %31 = vsyncpa [#allocation13], 0
    %s32 = scalar_lea.sflag [#allocation13], 1
    %33 = vsyncpa %s32, 0
    %34 = vsyncpa [#allocation16], 0
    %s35 = scalar_lea.sflag [#allocation16], 1
    %36 = vsyncpa %s35, 0
    %37 = vsyncpa [#allocation5], 0
    loop: start=0, step=1, limit=4
    $region2: #{temporal_transformer_forward.1} parent=1 // loop_pre_header
      _
    $region3: #{temporal_transformer_forward.1} parent=1 // loop_header
      %s39 = sphi 0, %s43
      %p40 = scmp.ge.s32.totalorder %s39, 4
      %s47 = sphi 0, %s47
      %s49 = sphi 0, %s47
      %s50 = sphi 0, %s49
      %s64 = sphi 0, %s50
      %s68 = sphi 0, %s68
      %s70 = sphi 0, %s68
      %s71 = sphi 0, %s70
      %s85 = sphi 0, %s71
      %s89 = sphi 0, %s89
      %s91 = sphi 0, %s89
      %s92 = sphi 0, %s91
      %s106 = sphi 0, %s92
      %s110 = sphi 0, %s110
      %s112 = sphi 0, %s110
      %s113 = sphi 0, %s112
      %s127 = sphi 0, %s113
      %s131 = sphi 0, %s131
      %s133 = sphi 0, %s131
      %s134 = sphi 0, %s133
      %s148 = sphi 0, %s134
      %s154 = sphi 0, %s156
      %s157 = sphi 0, %s154
      %s158 = sphi 0, %s157
      %s174 = sphi 0, %s158
      %s180 = sphi 0, %s182
      %s183 = sphi 0, %s180
      %s184 = sphi 0, %s183
      %s200 = sphi 0, %s184
      %s206 = sphi 0, %s208
      %s209 = sphi 0, %s206
      %s210 = sphi 0, %s209
      %s226 = sphi 0, %s210
      %s232 = sphi 0, %s234
      %s235 = sphi 0, %s232
      %s236 = sphi 0, %s235
      %s252 = sphi 0, %s236
      %s258 = sphi 0, %s260
      %s261 = sphi 0, %s258
      %s262 = sphi 0, %s261
      %s278 = sphi 0, %s262
      %s284 = sphi 0, %s286
      %s287 = sphi 0, %s284
      %s288 = sphi 0, %s287
      %s304 = sphi 0, %s288
      %s310 = sphi 0, %s312
      %s313 = sphi 0, %s310
      %s314 = sphi 0, %s313
      %s330 = sphi 0, %s314
      %s336 = sphi 0, %s338
      %s339 = sphi 0, %s336
      %s340 = sphi 0, %s339
      %s356 = sphi 0, %s340
      %s362 = sphi 0, %s364
      %s365 = sphi 0, %s362
      %s366 = sphi 0, %s365
      %s382 = sphi 0, %s366
      %s388 = sphi 0, %s390
      %s391 = sphi 0, %s388
      %s392 = sphi 0, %s391
      %s408 = sphi 0, %s392
      %s414 = sphi 0, %s416
      %s417 = sphi 0, %s414
      %s418 = sphi 0, %s417
      %s434 = sphi 0, %s418
      %s440 = sphi 0, %s442
      %s443 = sphi 0, %s440
      %s444 = sphi 0, %s443
      %s460 = sphi 0, %s444
      %s464 = sphi 0, %s464
      %s466 = sphi 0, %s464
      %s467 = sphi 0, %s466
      %s481 = sphi 0, %s467
      %s485 = sphi 0, %s485
      %s487 = sphi 0, %s485
      %s488 = sphi 0, %s487
      %s502 = sphi 0, %s488
      %s506 = sphi 0, %s506
      %s508 = sphi 0, %s506
      %s509 = sphi 0, %s508
      %s523 = sphi 0, %s509
    $region4: #{temporal_transformer_forward.1} parent=1 // loop_header_branch
      %42 = sbr.rel (%p40) target = $region8
    $region5: #{temporal_transformer_forward.1} parent=1 // loop_body
      %s44 = ssub.s32 %s39, 1
      %s45 = ssub.s32 %s39, 2
      %s46 = sadd.s32 %s39, 1
      %s48 = sadd.s32 %s47, 1
      %p51 = scmp.eq.s32.totalorder %s39, 1
      %p52 = scmp.ne.s32.totalorder %s47, %s49
      %p53 = scmp.eq.s32.totalorder %s39, 0
      %p54 = por %p52, %p53
      %p55 = scmp.ne.s32.totalorder %s47, %s49
      %p56 = scmp.eq.s32.totalorder %s44, 1
      %p57 = por %p55, %p56
      %p58 = scmp.ne.s32.totalorder %s49, %s50
      %p59 = scmp.eq.s32.totalorder %s44, 0
      %p60 = por %p58, %p59
      %p61 = scmp.ne.s32.totalorder %s49, %s50
      %p62 = scmp.eq.s32.totalorder %s45, 1
      %p63 = por %p61, %p62
      %p65 = scmp.ne.s32.totalorder %s50, %s64
      %p66 = scmp.eq.s32.totalorder %s45, 0
      %p67 = por %p65, %p66
      %s69 = sadd.s32 %s68, 1
      %p72 = scmp.eq.s32.totalorder %s39, 1
      %p73 = scmp.ne.s32.totalorder %s68, %s70
      %p74 = scmp.eq.s32.totalorder %s39, 0
      %p75 = por %p73, %p74
      %p76 = scmp.ne.s32.totalorder %s68, %s70
      %p77 = scmp.eq.s32.totalorder %s44, 1
      %p78 = por %p76, %p77
      %p79 = scmp.ne.s32.totalorder %s70, %s71
      %p80 = scmp.eq.s32.totalorder %s44, 0
      %p81 = por %p79, %p80
      %p82 = scmp.ne.s32.totalorder %s70, %s71
      %p83 = scmp.eq.s32.totalorder %s45, 1
      %p84 = por %p82, %p83
      %p86 = scmp.ne.s32.totalorder %s71, %s85
      %p87 = scmp.eq.s32.totalorder %s45, 0
      %p88 = por %p86, %p87
      %s90 = sadd.s32 %s89, 1
      %p93 = scmp.eq.s32.totalorder %s39, 1
      %p94 = scmp.ne.s32.totalorder %s89, %s91
      %p95 = scmp.eq.s32.totalorder %s39, 0
      %p96 = por %p94, %p95
      %p97 = scmp.ne.s32.totalorder %s89, %s91
      %p98 = scmp.eq.s32.totalorder %s44, 1
      %p99 = por %p97, %p98
      %p100 = scmp.ne.s32.totalorder %s91, %s92
      %p101 = scmp.eq.s32.totalorder %s44, 0
      %p102 = por %p100, %p101
      %p103 = scmp.ne.s32.totalorder %s91, %s92
      %p104 = scmp.eq.s32.totalorder %s45, 1
      %p105 = por %p103, %p104
      %p107 = scmp.ne.s32.totalorder %s92, %s106
      %p108 = scmp.eq.s32.totalorder %s45, 0
      %p109 = por %p107, %p108
      %s111 = sadd.s32 %s110, 1
      %p114 = scmp.eq.s32.totalorder %s39, 1
      %p115 = scmp.ne.s32.totalorder %s110, %s112
      %p116 = scmp.eq.s32.totalorder %s39, 0
      %p117 = por %p115, %p116
      %p118 = scmp.ne.s32.totalorder %s110, %s112
      %p119 = scmp.eq.s32.totalorder %s44, 1
      %p120 = por %p118, %p119
      %p121 = scmp.ne.s32.totalorder %s112, %s113
      %p122 = scmp.eq.s32.totalorder %s44, 0
      %p123 = por %p121, %p122
      %p124 = scmp.ne.s32.totalorder %s112, %s113
      %p125 = scmp.eq.s32.totalorder %s45, 1
      %p126 = por %p124, %p125
      %p128 = scmp.ne.s32.totalorder %s113, %s127
      %p129 = scmp.eq.s32.totalorder %s45, 0
      %p130 = por %p128, %p129
      %s132 = sadd.s32 %s131, 1
      %p135 = scmp.eq.s32.totalorder %s39, 1
      %p136 = scmp.ne.s32.totalorder %s131, %s133
      %p137 = scmp.eq.s32.totalorder %s39, 0
      %p138 = por %p136, %p137
      %p139 = scmp.ne.s32.totalorder %s131, %s133
      %p140 = scmp.eq.s32.totalorder %s44, 1
      %p141 = por %p139, %p140
      %p142 = scmp.ne.s32.totalorder %s133, %s134
      %p143 = scmp.eq.s32.totalorder %s44, 0
      %p144 = por %p142, %p143
      %p145 = scmp.ne.s32.totalorder %s133, %s134
      %p146 = scmp.eq.s32.totalorder %s45, 1
      %p147 = por %p145, %p146
      %p149 = scmp.ne.s32.totalorder %s134, %s148
      %p150 = scmp.eq.s32.totalorder %s45, 0
      %p151 = por %p149, %p150
      %s152 = ssub.s32 %s39, %s46
      %p153 = scmp.eq.s32.totalorder %s152, 0
      %s155 = sadd.s32 %s154, 1
      %s156 = scalar_select %p153, %s154, %s155
      %p159 = pneg %p153
      %p160 = scmp.eq.s32.totalorder %s39, 1
      %p161 = por %p159, %p160
      %p162 = scmp.ne.s32.totalorder %s154, %s157
      %p163 = scmp.eq.s32.totalorder %s39, 0
      %p164 = por %p162, %p163
      %p165 = scmp.ne.s32.totalorder %s154, %s157
      %p166 = scmp.eq.s32.totalorder %s44, 1
      %p167 = por %p165, %p166
      %p168 = scmp.ne.s32.totalorder %s157, %s158
      %p169 = scmp.eq.s32.totalorder %s44, 0
      %p170 = por %p168, %p169
      %p171 = scmp.ne.s32.totalorder %s157, %s158
      %p172 = scmp.eq.s32.totalorder %s45, 1
      %p173 = por %p171, %p172
      %p175 = scmp.ne.s32.totalorder %s158, %s174
      %p176 = scmp.eq.s32.totalorder %s45, 0
      %p177 = por %p175, %p176
      %s178 = ssub.s32 %s39, %s46
      %p179 = scmp.eq.s32.totalorder %s178, 0
      %s181 = sadd.s32 %s180, 1
      %s182 = scalar_select %p179, %s180, %s181
      %p185 = pneg %p179
      %p186 = scmp.eq.s32.totalorder %s39, 1
      %p187 = por %p185, %p186
      %p188 = scmp.ne.s32.totalorder %s180, %s183
      %p189 = scmp.eq.s32.totalorder %s39, 0
      %p190 = por %p188, %p189
      %p191 = scmp.ne.s32.totalorder %s180, %s183
      %p192 = scmp.eq.s32.totalorder %s44, 1
      %p193 = por %p191, %p192
      %p194 = scmp.ne.s32.totalorder %s183, %s184
      %p195 = scmp.eq.s32.totalorder %s44, 0
      %p196 = por %p194, %p195
      %p197 = scmp.ne.s32.totalorder %s183, %s184
      %p198 = scmp.eq.s32.totalorder %s45, 1
      %p199 = por %p197, %p198
      %p201 = scmp.ne.s32.totalorder %s184, %s200
      %p202 = scmp.eq.s32.totalorder %s45, 0
      %p203 = por %p201, %p202
      %s204 = ssub.s32 %s39, %s46
      %p205 = scmp.eq.s32.totalorder %s204, 0
      %s207 = sadd.s32 %s206, 1
      %s208 = scalar_select %p205, %s206, %s207
      %p211 = pneg %p205
      %p212 = scmp.eq.s32.totalorder %s39, 1
      %p213 = por %p211, %p212
      %p214 = scmp.ne.s32.totalorder %s206, %s209
      %p215 = scmp.eq.s32.totalorder %s39, 0
      %p216 = por %p214, %p215
      %p217 = scmp.ne.s32.totalorder %s206, %s209
      %p218 = scmp.eq.s32.totalorder %s44, 1
      %p219 = por %p217, %p218
      %p220 = scmp.ne.s32.totalorder %s209, %s210
      %p221 = scmp.eq.s32.totalorder %s44, 0
      %p222 = por %p220, %p221
      %p223 = scmp.ne.s32.totalorder %s209, %s210
      %p224 = scmp.eq.s32.totalorder %s45, 1
      %p225 = por %p223, %p224
      %p227 = scmp.ne.s32.totalorder %s210, %s226
      %p228 = scmp.eq.s32.totalorder %s45, 0
      %p229 = por %p227, %p228
      %s230 = ssub.s32 %s39, %s46
      %p231 = scmp.eq.s32.totalorder %s230, 0
      %s233 = sadd.s32 %s232, 1
      %s234 = scalar_select %p231, %s232, %s233
      %p237 = pneg %p231
      %p238 = scmp.eq.s32.totalorder %s39, 1
      %p239 = por %p237, %p238
      %p240 = scmp.ne.s32.totalorder %s232, %s235
      %p241 = scmp.eq.s32.totalorder %s39, 0
      %p242 = por %p240, %p241
      %p243 = scmp.ne.s32.totalorder %s232, %s235
      %p244 = scmp.eq.s32.totalorder %s44, 1
      %p245 = por %p243, %p244
      %p246 = scmp.ne.s32.totalorder %s235, %s236
      %p247 = scmp.eq.s32.totalorder %s44, 0
      %p248 = por %p246, %p247
      %p249 = scmp.ne.s32.totalorder %s235, %s236
      %p250 = scmp.eq.s32.totalorder %s45, 1
      %p251 = por %p249, %p250
      %p253 = scmp.ne.s32.totalorder %s236, %s252
      %p254 = scmp.eq.s32.totalorder %s45, 0
      %p255 = por %p253, %p254
      %s256 = ssub.s32 %s39, %s46
      %p257 = scmp.eq.s32.totalorder %s256, 0
      %s259 = sadd.s32 %s258, 1
      %s260 = scalar_select %p257, %s258, %s259
      %p263 = pneg %p257
      %p264 = scmp.eq.s32.totalorder %s39, 1
      %p265 = por %p263, %p264
      %p266 = scmp.ne.s32.totalorder %s258, %s261
      %p267 = scmp.eq.s32.totalorder %s39, 0
      %p268 = por %p266, %p267
      %p269 = scmp.ne.s32.totalorder %s258, %s261
      %p270 = scmp.eq.s32.totalorder %s44, 1
      %p271 = por %p269, %p270
      %p272 = scmp.ne.s32.totalorder %s261, %s262
      %p273 = scmp.eq.s32.totalorder %s44, 0
      %p274 = por %p272, %p273
      %p275 = scmp.ne.s32.totalorder %s261, %s262
      %p276 = scmp.eq.s32.totalorder %s45, 1
      %p277 = por %p275, %p276
      %p279 = scmp.ne.s32.totalorder %s262, %s278
      %p280 = scmp.eq.s32.totalorder %s45, 0
      %p281 = por %p279, %p280
      %s282 = ssub.s32 %s39, %s46
      %p283 = scmp.eq.s32.totalorder %s282, 0
      %s285 = sadd.s32 %s284, 1
      %s286 = scalar_select %p283, %s284, %s285
      %p289 = pneg %p283
      %p290 = scmp.eq.s32.totalorder %s39, 1
      %p291 = por %p289, %p290
      %p292 = scmp.ne.s32.totalorder %s284, %s287
      %p293 = scmp.eq.s32.totalorder %s39, 0
      %p294 = por %p292, %p293
      %p295 = scmp.ne.s32.totalorder %s284, %s287
      %p296 = scmp.eq.s32.totalorder %s44, 1
      %p297 = por %p295, %p296
      %p298 = scmp.ne.s32.totalorder %s287, %s288
      %p299 = scmp.eq.s32.totalorder %s44, 0
      %p300 = por %p298, %p299
      %p301 = scmp.ne.s32.totalorder %s287, %s288
      %p302 = scmp.eq.s32.totalorder %s45, 1
      %p303 = por %p301, %p302
      %p305 = scmp.ne.s32.totalorder %s288, %s304
      %p306 = scmp.eq.s32.totalorder %s45, 0
      %p307 = por %p305, %p306
      %s308 = ssub.s32 %s39, %s46
      %p309 = scmp.eq.s32.totalorder %s308, 0
      %s311 = sadd.s32 %s310, 1
      %s312 = scalar_select %p309, %s310, %s311
      %p315 = pneg %p309
      %p316 = scmp.eq.s32.totalorder %s39, 1
      %p317 = por %p315, %p316
      %p318 = scmp.ne.s32.totalorder %s310, %s313
      %p319 = scmp.eq.s32.totalorder %s39, 0
      %p320 = por %p318, %p319
      %p321 = scmp.ne.s32.totalorder %s310, %s313
      %p322 = scmp.eq.s32.totalorder %s44, 1
      %p323 = por %p321, %p322
      %p324 = scmp.ne.s32.totalorder %s313, %s314
      %p325 = scmp.eq.s32.totalorder %s44, 0
      %p326 = por %p324, %p325
      %p327 = scmp.ne.s32.totalorder %s313, %s314
      %p328 = scmp.eq.s32.totalorder %s45, 1
      %p329 = por %p327, %p328
      %p331 = scmp.ne.s32.totalorder %s314, %s330
      %p332 = scmp.eq.s32.totalorder %s45, 0
      %p333 = por %p331, %p332
      %s334 = ssub.s32 %s39, %s46
      %p335 = scmp.eq.s32.totalorder %s334, 0
      %s337 = sadd.s32 %s336, 1
      %s338 = scalar_select %p335, %s336, %s337
      %p341 = pneg %p335
      %p342 = scmp.eq.s32.totalorder %s39, 1
      %p343 = por %p341, %p342
      %p344 = scmp.ne.s32.totalorder %s336, %s339
      %p345 = scmp.eq.s32.totalorder %s39, 0
      %p346 = por %p344, %p345
      %p347 = scmp.ne.s32.totalorder %s336, %s339
      %p348 = scmp.eq.s32.totalorder %s44, 1
      %p349 = por %p347, %p348
      %p350 = scmp.ne.s32.totalorder %s339, %s340
      %p351 = scmp.eq.s32.totalorder %s44, 0
      %p352 = por %p350, %p351
      %p353 = scmp.ne.s32.totalorder %s339, %s340
      %p354 = scmp.eq.s32.totalorder %s45, 1
      %p355 = por %p353, %p354
      %p357 = scmp.ne.s32.totalorder %s340, %s356
      %p358 = scmp.eq.s32.totalorder %s45, 0
      %p359 = por %p357, %p358
      %s360 = ssub.s32 %s39, %s46
      %p361 = scmp.eq.s32.totalorder %s360, 0
      %s363 = sadd.s32 %s362, 1
      %s364 = scalar_select %p361, %s362, %s363
      %p367 = pneg %p361
      %p368 = scmp.eq.s32.totalorder %s39, 1
      %p369 = por %p367, %p368
      %p370 = scmp.ne.s32.totalorder %s362, %s365
      %p371 = scmp.eq.s32.totalorder %s39, 0
      %p372 = por %p370, %p371
      %p373 = scmp.ne.s32.totalorder %s362, %s365
      %p374 = scmp.eq.s32.totalorder %s44, 1
      %p375 = por %p373, %p374
      %p376 = scmp.ne.s32.totalorder %s365, %s366
      %p377 = scmp.eq.s32.totalorder %s44, 0
      %p378 = por %p376, %p377
      %p379 = scmp.ne.s32.totalorder %s365, %s366
      %p380 = scmp.eq.s32.totalorder %s45, 1
      %p381 = por %p379, %p380
      %p383 = scmp.ne.s32.totalorder %s366, %s382
      %p384 = scmp.eq.s32.totalorder %s45, 0
      %p385 = por %p383, %p384
      %s386 = ssub.s32 %s39, %s46
      %p387 = scmp.eq.s32.totalorder %s386, 0
      %s389 = sadd.s32 %s388, 1
      %s390 = scalar_select %p387, %s388, %s389
      %p393 = pneg %p387
      %p394 = scmp.eq.s32.totalorder %s39, 1
      %p395 = por %p393, %p394
      %p396 = scmp.ne.s32.totalorder %s388, %s391
      %p397 = scmp.eq.s32.totalorder %s39, 0
      %p398 = por %p396, %p397
      %p399 = scmp.ne.s32.totalorder %s388, %s391
      %p400 = scmp.eq.s32.totalorder %s44, 1
      %p401 = por %p399, %p400
      %p402 = scmp.ne.s32.totalorder %s391, %s392
      %p403 = scmp.eq.s32.totalorder %s44, 0
      %p404 = por %p402, %p403
      %p405 = scmp.ne.s32.totalorder %s391, %s392
      %p406 = scmp.eq.s32.totalorder %s45, 1
      %p407 = por %p405, %p406
      %p409 = scmp.ne.s32.totalorder %s392, %s408
      %p410 = scmp.eq.s32.totalorder %s45, 0
      %p411 = por %p409, %p410
      %s412 = ssub.s32 %s39, %s46
      %p413 = scmp.eq.s32.totalorder %s412, 0
      %s415 = sadd.s32 %s414, 1
      %s416 = scalar_select %p413, %s414, %s415
      %p419 = pneg %p413
      %p420 = scmp.eq.s32.totalorder %s39, 1
      %p421 = por %p419, %p420
      %p422 = scmp.ne.s32.totalorder %s414, %s417
      %p423 = scmp.eq.s32.totalorder %s39, 0
      %p424 = por %p422, %p423
      %p425 = scmp.ne.s32.totalorder %s414, %s417
      %p426 = scmp.eq.s32.totalorder %s44, 1
      %p427 = por %p425, %p426
      %p428 = scmp.ne.s32.totalorder %s417, %s418
      %p429 = scmp.eq.s32.totalorder %s44, 0
      %p430 = por %p428, %p429
      %p431 = scmp.ne.s32.totalorder %s417, %s418
      %p432 = scmp.eq.s32.totalorder %s45, 1
      %p433 = por %p431, %p432
      %p435 = scmp.ne.s32.totalorder %s418, %s434
      %p436 = scmp.eq.s32.totalorder %s45, 0
      %p437 = por %p435, %p436
      %s438 = ssub.s32 %s39, %s46
      %p439 = scmp.eq.s32.totalorder %s438, 0
      %s441 = sadd.s32 %s440, 1
      %s442 = scalar_select %p439, %s440, %s441
      %p445 = pneg %p439
      %p446 = scmp.eq.s32.totalorder %s39, 1
      %p447 = por %p445, %p446
      %p448 = scmp.ne.s32.totalorder %s440, %s443
      %p449 = scmp.eq.s32.totalorder %s39, 0
      %p450 = por %p448, %p449
      %p451 = scmp.ne.s32.totalorder %s440, %s443
      %p452 = scmp.eq.s32.totalorder %s44, 1
      %p453 = por %p451, %p452
      %p454 = scmp.ne.s32.totalorder %s443, %s444
      %p455 = scmp.eq.s32.totalorder %s44, 0
      %p456 = por %p454, %p455
      %p457 = scmp.ne.s32.totalorder %s443, %s444
      %p458 = scmp.eq.s32.totalorder %s45, 1
      %p459 = por %p457, %p458
      %p461 = scmp.ne.s32.totalorder %s444, %s460
      %p462 = scmp.eq.s32.totalorder %s45, 0
      %p463 = por %p461, %p462
      %s465 = sadd.s32 %s464, 1
      %p468 = scmp.eq.s32.totalorder %s39, 1
      %p469 = scmp.ne.s32.totalorder %s464, %s466
      %p470 = scmp.eq.s32.totalorder %s39, 0
      %p471 = por %p469, %p470
      %p472 = scmp.ne.s32.totalorder %s464, %s466
      %p473 = scmp.eq.s32.totalorder %s44, 1
      %p474 = por %p472, %p473
      %p475 = scmp.ne.s32.totalorder %s466, %s467
      %p476 = scmp.eq.s32.totalorder %s44, 0
      %p477 = por %p475, %p476
      %p478 = scmp.ne.s32.totalorder %s466, %s467
      %p479 = scmp.eq.s32.totalorder %s45, 1
      %p480 = por %p478, %p479
      %p482 = scmp.ne.s32.totalorder %s467, %s481
      %p483 = scmp.eq.s32.totalorder %s45, 0
      %p484 = por %p482, %p483
      %s486 = sadd.s32 %s485, 1
      %p489 = scmp.eq.s32.totalorder %s39, 1
      %p490 = scmp.ne.s32.totalorder %s485, %s487
      %p491 = scmp.eq.s32.totalorder %s39, 0
      %p492 = por %p490, %p491
      %p493 = scmp.ne.s32.totalorder %s485, %s487
      %p494 = scmp.eq.s32.totalorder %s44, 1
      %p495 = por %p493, %p494
      %p496 = scmp.ne.s32.totalorder %s487, %s488
      %p497 = scmp.eq.s32.totalorder %s44, 0
      %p498 = por %p496, %p497
      %p499 = scmp.ne.s32.totalorder %s487, %s488
      %p500 = scmp.eq.s32.totalorder %s45, 1
      %p501 = por %p499, %p500
      %p503 = scmp.ne.s32.totalorder %s488, %s502
      %p504 = scmp.eq.s32.totalorder %s45, 0
      %p505 = por %p503, %p504
      %s507 = sadd.s32 %s506, 1
      %p510 = scmp.eq.s32.totalorder %s39, 1
      %p511 = scmp.ne.s32.totalorder %s506, %s508
      %p512 = scmp.eq.s32.totalorder %s39, 0
      %p513 = por %p511, %p512
      %p514 = scmp.ne.s32.totalorder %s506, %s508
      %p515 = scmp.eq.s32.totalorder %s44, 1
      %p516 = por %p514, %p515
      %p517 = scmp.ne.s32.totalorder %s508, %s509
      %p518 = scmp.eq.s32.totalorder %s44, 0
      %p519 = por %p517, %p518
      %p520 = scmp.ne.s32.totalorder %s508, %s509
      %p521 = scmp.eq.s32.totalorder %s45, 1
      %p522 = por %p520, %p521
      %p524 = scmp.ne.s32.totalorder %s509, %s523
      %p525 = scmp.eq.s32.totalorder %s45, 0
      %p526 = por %p524, %p525
      %p527 = scmp.le.s32.totalorder 1, %s39
      %p528 = scmp.lt.s32.totalorder %s39, 3
      %p529 = pnand %p527, %p528
      %p530 = pneg %p529
      // Predicated region
      $region9: #{temporal_transformer_forward.1} parent=5 // pred_check
        _
      $region10: #{temporal_transformer_forward.1} parent=5 // pred_check_branch
        %532 = sbr.rel (%p529) target = $region12
      $region11: #{temporal_transformer_forward.1} parent=5 // pred_region
        %s533 = ssub.s32 %s39, 1
        // Predicated region
        $region13: #{temporal_transformer_forward.1} parent=11 // pred_check
          %p534 = pneg %p60
        $region14: #{temporal_transformer_forward.1} parent=11 // pred_check_branch
          %536 = sbr.rel (%p534) target = $region16
        $region15: #{temporal_transformer_forward.1} parent=11 // pred_region
          _
        $region16: #{temporal_transformer_forward.1} parent=11 // pred_fallthru
          _
        // Predicated region
        $region17: #{temporal_transformer_forward.1} parent=11 // pred_check
          %p537 = pneg %p81
        $region18: #{temporal_transformer_forward.1} parent=11 // pred_check_branch
          %539 = sbr.rel (%p537) target = $region20
        $region19: #{temporal_transformer_forward.1} parent=11 // pred_region
          _
        $region20: #{temporal_transformer_forward.1} parent=11 // pred_fallthru
          _
        // Predicated region
        $region21: #{temporal_transformer_forward.1} parent=11 // pred_check
          %p540 = pneg %p102
        $region22: #{temporal_transformer_forward.1} parent=11 // pred_check_branch
          %542 = sbr.rel (%p540) target = $region24
        $region23: #{temporal_transformer_forward.1} parent=11 // pred_region
          _
        $region24: #{temporal_transformer_forward.1} parent=11 // pred_fallthru
          _
        // Predicated region
        $region25: #{temporal_transformer_forward.1} parent=11 // pred_check
          %p543 = pneg %p123
        $region26: #{temporal_transformer_forward.1} parent=11 // pred_check_branch
          %545 = sbr.rel (%p543) target = $region28
        $region27: #{temporal_transformer_forward.1} parent=11 // pred_region
          %547 = vsyncadd [#allocation4], 0
          %s548 = sshll.u32 %s3, 4
          %s549 = int_to_ptr.hbm [resolvable:$true] %s548
          %s550 = sshll.u32 [#allocation3], 4
          %s551 = int_to_ptr.vmem [resolvable:$true] %s550
          %556 = dma.hbm_to_vmem [thread:$0]  %s549, 256, %s551, [#allocation4], 128, 128, 8
        $region28: #{temporal_transformer_forward.1} parent=11 // pred_fallthru
          _
        // Predicated region
        $region29: #{temporal_transformer_forward.1} parent=11 // pred_check
          %p557 = pneg %p144
        $region30: #{temporal_transformer_forward.1} parent=11 // pred_check_branch
          %559 = sbr.rel (%p557) target = $region32
        $region31: #{temporal_transformer_forward.1} parent=11 // pred_region
          _
        $region32: #{temporal_transformer_forward.1} parent=11 // pred_fallthru
          _
        // Predicated region
        $region33: #{temporal_transformer_forward.1} parent=11 // pred_check
          %p560 = pneg %p477
        $region34: #{temporal_transformer_forward.1} parent=11 // pred_check_branch
          %562 = sbr.rel (%p560) target = $region36
        $region35: #{temporal_transformer_forward.1} parent=11 // pred_region
          _
        $region36: #{temporal_transformer_forward.1} parent=11 // pred_fallthru
          _
        // Predicated region
        $region37: #{temporal_transformer_forward.1} parent=11 // pred_check
          %p563 = pneg %p498
        $region38: #{temporal_transformer_forward.1} parent=11 // pred_check_branch
          %565 = sbr.rel (%p563) target = $region40
        $region39: #{temporal_transformer_forward.1} parent=11 // pred_region
          _
        $region40: #{temporal_transformer_forward.1} parent=11 // pred_fallthru
          _
      $region12: #{temporal_transformer_forward.1} parent=5 // pred_fallthru
        _
      %p566 = scmp.lt.s32.totalorder %s39, 2
      // Predicated region
      $region41: #{temporal_transformer_forward.1} parent=5 // pred_check
        %p567 = pneg %p566
      $region42: #{temporal_transformer_forward.1} parent=5 // pred_check_branch
        %569 = sbr.rel (%p567) target = $region44
      $region43: #{temporal_transformer_forward.1} parent=5 // pred_region
        // Predicated region
        $region45: #{temporal_transformer_forward.1} parent=43 // pred_check
          %p570 = pneg %p164
        $region46: #{temporal_transformer_forward.1} parent=43 // pred_check_branch
          %572 = sbr.rel (%p570) target = $region48
        $region47: #{temporal_transformer_forward.1} parent=43 // pred_region
          %p573 = scmp.lt.s32.totalorder %s39, 1
          %s574 = scalar_select %p573, %s39, 1
          %s575 = smul.addr %s574, 4
          %s576 = smul.addr %s575, 8
          %s577 = scalar_lea.vmem %s5, %s576
        $region48: #{temporal_transformer_forward.1} parent=43 // pred_fallthru
          _
        // Predicated region
        $region49: #{temporal_transformer_forward.1} parent=43 // pred_check
          %p578 = pneg %p190
        $region50: #{temporal_transformer_forward.1} parent=43 // pred_check_branch
          %580 = sbr.rel (%p578) target = $region52
        $region51: #{temporal_transformer_forward.1} parent=43 // pred_region
          %p581 = scmp.lt.s32.totalorder %s39, 1
          %s582 = scalar_select %p581, %s39, 1
          %s583 = scalar_lea.vmem %s6, %s582
        $region52: #{temporal_transformer_forward.1} parent=43 // pred_fallthru
          _
        // Predicated region
        $region53: #{temporal_transformer_forward.1} parent=43 // pred_check
          %p584 = pneg %p216
        $region54: #{temporal_transformer_forward.1} parent=43 // pred_check_branch
          %586 = sbr.rel (%p584) target = $region56
        $region55: #{temporal_transformer_forward.1} parent=43 // pred_region
          %s587 = sand.u32 %s39, 1
          %s588 = scalar_lea.sflag [#allocation7], %s587
          %s589 = sand.u32 %s206, 1
          %s590 = smul.addr %s589, 32
          %s591 = scalar_lea.vmem [#allocation6], %s590
          %593 = vsyncadd %s588, 0
          %s594 = smul.addr %s39, 4
          %s595 = smul.addr %s594, 8
          %s596 = scalar_lea.hbm %s7, %s595
          %s597 = sshll.u32 %s596, 4
          %s598 = int_to_ptr.hbm [resolvable:$true] %s597
          %s599 = sshll.u32 %s591, 4
          %s600 = int_to_ptr.vmem [resolvable:$true] %s599
          %605 = dma.hbm_to_vmem [thread:$0]  %s598, 512, %s600, %s588, 128, 128, 8
        $region56: #{temporal_transformer_forward.1} parent=43 // pred_fallthru
          _
        // Predicated region
        $region57: #{temporal_transformer_forward.1} parent=43 // pred_check
          %p606 = pneg %p242
        $region58: #{temporal_transformer_forward.1} parent=43 // pred_check_branch
          %608 = sbr.rel (%p606) target = $region60
        $region59: #{temporal_transformer_forward.1} parent=43 // pred_region
          %p609 = scmp.lt.s32.totalorder %s39, 1
          %s610 = scalar_select %p609, %s39, 1
          %s611 = scalar_lea.vmem %s8, %s610
        $region60: #{temporal_transformer_forward.1} parent=43 // pred_fallthru
          _
        // Predicated region
        $region61: #{temporal_transformer_forward.1} parent=43 // pred_check
          %p612 = pneg %p268
        $region62: #{temporal_transformer_forward.1} parent=43 // pred_check_branch
          %614 = sbr.rel (%p612) target = $region64
        $region63: #{temporal_transformer_forward.1} parent=43 // pred_region
          %p615 = scmp.lt.s32.totalorder %s39, 1
          %s616 = scalar_select %p615, %s39, 1
          %s617 = scalar_lea.vmem %s9, %s616
        $region64: #{temporal_transformer_forward.1} parent=43 // pred_fallthru
          _
        // Predicated region
        $region65: #{temporal_transformer_forward.1} parent=43 // pred_check
          %p618 = pneg %p294
        $region66: #{temporal_transformer_forward.1} parent=43 // pred_check_branch
          %620 = sbr.rel (%p618) target = $region68
        $region67: #{temporal_transformer_forward.1} parent=43 // pred_region
          %s621 = sand.u32 %s39, 1
          %s622 = scalar_lea.sflag [#allocation7], %s621
          %s623 = sand.u32 %s284, 1
          %s624 = scalar_lea.vmem [#allocation8], %s623
          %626 = vsyncadd %s622, 0
          %s627 = scalar_lea.hbm %s10, %s39
          %s629 = sshll.u32 %s627, 4
          %s630 = int_to_ptr.hbm [resolvable:$true] %s629
          %s631 = sshll.u32 %s624, 4
          %s632 = int_to_ptr.vmem [resolvable:$true] %s631
          %634 = dma.hbm_to_vmem [thread:$0]  %s630, 16, %s632, %s622
        $region68: #{temporal_transformer_forward.1} parent=43 // pred_fallthru
          _
        // Predicated region
        $region69: #{temporal_transformer_forward.1} parent=43 // pred_check
          %p635 = pneg %p320
        $region70: #{temporal_transformer_forward.1} parent=43 // pred_check_branch
          %637 = sbr.rel (%p635) target = $region72
        $region71: #{temporal_transformer_forward.1} parent=43 // pred_region
          %s638 = sand.u32 %s39, 1
          %s639 = scalar_lea.sflag [#allocation10], %s638
          %s640 = sand.u32 %s310, 1
          %s641 = smul.addr %s640, 256
          %s642 = scalar_lea.vmem [#allocation9], %s641
          %644 = vsyncadd %s639, 0
          %s645 = smul.addr %s39, 64
          %s646 = smul.addr %s645, 4
          %s647 = scalar_lea.hbm %s11, %s646
          %s648 = sshll.u32 %s647, 4
          %s649 = int_to_ptr.hbm [resolvable:$true] %s648
          %s650 = sshll.u32 %s642, 4
          %s651 = int_to_ptr.vmem [resolvable:$true] %s650
          %656 = dma.hbm_to_vmem [thread:$0]  %s649, 4096, %s651, %s639, 1024, 1024, 64
        $region72: #{temporal_transformer_forward.1} parent=43 // pred_fallthru
          _
        // Predicated region
        $region73: #{temporal_transformer_forward.1} parent=43 // pred_check
          %p657 = pneg %p346
        $region74: #{temporal_transformer_forward.1} parent=43 // pred_check_branch
          %659 = sbr.rel (%p657) target = $region76
        $region75: #{temporal_transformer_forward.1} parent=43 // pred_region
          %s660 = sand.u32 %s39, 1
          %s661 = scalar_lea.sflag [#allocation10], %s660
          %s662 = sand.u32 %s336, 1
          %s663 = smul.addr %s662, 16
          %s664 = scalar_lea.vmem [#allocation11], %s663
          %666 = vsyncadd %s661, 0
          %s667 = smul.addr %s39, 16
          %s668 = scalar_lea.hbm %s12, %s667
          %s670 = sshll.u32 %s668, 4
          %s671 = int_to_ptr.hbm [resolvable:$true] %s670
          %s672 = sshll.u32 %s664, 4
          %s673 = int_to_ptr.vmem [resolvable:$true] %s672
          %675 = dma.hbm_to_vmem [thread:$0]  %s671, 256, %s673, %s661
        $region76: #{temporal_transformer_forward.1} parent=43 // pred_fallthru
          _
        // Predicated region
        $region77: #{temporal_transformer_forward.1} parent=43 // pred_check
          %p676 = pneg %p372
        $region78: #{temporal_transformer_forward.1} parent=43 // pred_check_branch
          %678 = sbr.rel (%p676) target = $region80
        $region79: #{temporal_transformer_forward.1} parent=43 // pred_region
          %s679 = sand.u32 %s39, 1
          %s680 = scalar_lea.sflag [#allocation13], %s679
          %s681 = sand.u32 %s362, 1
          %s682 = smul.addr %s681, 256
          %s683 = scalar_lea.vmem [#allocation12], %s682
          %685 = vsyncadd %s680, 0
          %s686 = smul.addr %s39, 64
          %s687 = smul.addr %s686, 4
          %s688 = scalar_lea.hbm %s13, %s687
          %s689 = sshll.u32 %s688, 4
          %s690 = int_to_ptr.hbm [resolvable:$true] %s689
          %s691 = sshll.u32 %s683, 4
          %s692 = int_to_ptr.vmem [resolvable:$true] %s691
          %697 = dma.hbm_to_vmem [thread:$0]  %s690, 4096, %s692, %s680, 1024, 1024, 64
        $region80: #{temporal_transformer_forward.1} parent=43 // pred_fallthru
          _
        // Predicated region
        $region81: #{temporal_transformer_forward.1} parent=43 // pred_check
          %p698 = pneg %p398
        $region82: #{temporal_transformer_forward.1} parent=43 // pred_check_branch
          %700 = sbr.rel (%p698) target = $region84
        $region83: #{temporal_transformer_forward.1} parent=43 // pred_region
          %s701 = sand.u32 %s39, 1
          %s702 = scalar_lea.sflag [#allocation13], %s701
          %s703 = sand.u32 %s388, 1
          %s704 = scalar_lea.vmem [#allocation14], %s703
          %706 = vsyncadd %s702, 0
          %s707 = scalar_lea.hbm %s14, %s39
          %s709 = sshll.u32 %s707, 4
          %s710 = int_to_ptr.hbm [resolvable:$true] %s709
          %s711 = sshll.u32 %s704, 4
          %s712 = int_to_ptr.vmem [resolvable:$true] %s711
          %714 = dma.hbm_to_vmem [thread:$0]  %s710, 16, %s712, %s702
        $region84: #{temporal_transformer_forward.1} parent=43 // pred_fallthru
          _
        // Predicated region
        $region85: #{temporal_transformer_forward.1} parent=43 // pred_check
          %p715 = pneg %p424
        $region86: #{temporal_transformer_forward.1} parent=43 // pred_check_branch
          %717 = sbr.rel (%p715) target = $region88
        $region87: #{temporal_transformer_forward.1} parent=43 // pred_region
          %p718 = scmp.lt.s32.totalorder %s39, 1
          %s719 = scalar_select %p718, %s39, 1
          %s720 = scalar_lea.vmem %s15, %s719
        $region88: #{temporal_transformer_forward.1} parent=43 // pred_fallthru
          _
        // Predicated region
        $region89: #{temporal_transformer_forward.1} parent=43 // pred_check
          %p721 = pneg %p450
        $region90: #{temporal_transformer_forward.1} parent=43 // pred_check_branch
          %723 = sbr.rel (%p721) target = $region92
        $region91: #{temporal_transformer_forward.1} parent=43 // pred_region
          %s724 = sand.u32 %s440, 1
          %s725 = scalar_lea.sflag [#allocation16], %s724
          %s726 = sand.u32 %s440, 1
          %s727 = scalar_lea.vmem [#allocation15], %s726
          %729 = vsyncadd %s725, 0
          %s730 = scalar_lea.hbm %s16, %s39
          %s732 = sshll.u32 %s730, 4
          %s733 = int_to_ptr.hbm [resolvable:$true] %s732
          %s734 = sshll.u32 %s727, 4
          %s735 = int_to_ptr.vmem [resolvable:$true] %s734
          %737 = dma.hbm_to_vmem [thread:$0]  %s733, 16, %s735, %s725
        $region92: #{temporal_transformer_forward.1} parent=43 // pred_fallthru
          _
      $region44: #{temporal_transformer_forward.1} parent=5 // pred_fallthru
        _
      %p738 = scmp.le.s32.totalorder 1, %s39
      %p739 = scmp.lt.s32.totalorder %s39, 3
      %p740 = pnand %p738, %p739
      %p741 = pneg %p740
      // Predicated region
      $region93: #{temporal_transformer_forward.1} parent=5 // pred_check
        _
      $region94: #{temporal_transformer_forward.1} parent=5 // pred_check_branch
        %743 = sbr.rel (%p740) target = $region96
      $region95: #{temporal_transformer_forward.1} parent=5 // pred_region
        %s744 = ssub.s32 %s39, 1
        // Predicated region
        $region97: #{temporal_transformer_forward.1} parent=95 // pred_check
          %p745 = pneg %p123
        $region98: #{temporal_transformer_forward.1} parent=95 // pred_check_branch
          %747 = sbr.rel (%p745) target = $region100
        $region99: #{temporal_transformer_forward.1} parent=95 // pred_region
          %749 = dma.done [#allocation4], 256
        $region100: #{temporal_transformer_forward.1} parent=95 // pred_fallthru
          _
        %s750 = sand.u32 %s44, 1
        %s751 = scalar_lea.sflag [#allocation7], %s750
        %s752 = sand.u32 %s209, 1
        %s753 = smul.addr %s752, 32
        %s754 = scalar_lea.vmem [#allocation6], %s753
        // Predicated region
        $region101: #{temporal_transformer_forward.1} parent=95 // pred_check
          %p755 = pneg %p222
        $region102: #{temporal_transformer_forward.1} parent=95 // pred_check_branch
          %757 = sbr.rel (%p755) target = $region104
        $region103: #{temporal_transformer_forward.1} parent=95 // pred_region
          %759 = dma.done %s751, 512
        $region104: #{temporal_transformer_forward.1} parent=95 // pred_fallthru
          _
        %s760 = sand.u32 %s44, 1
        %s761 = scalar_lea.sflag [#allocation7], %s760
        %s762 = sand.u32 %s287, 1
        %s763 = scalar_lea.vmem [#allocation8], %s762
        // Predicated region
        $region105: #{temporal_transformer_forward.1} parent=95 // pred_check
          %p764 = pneg %p300
        $region106: #{temporal_transformer_forward.1} parent=95 // pred_check_branch
          %766 = sbr.rel (%p764) target = $region108
        $region107: #{temporal_transformer_forward.1} parent=95 // pred_region
          %768 = dma.done %s761, 16
        $region108: #{temporal_transformer_forward.1} parent=95 // pred_fallthru
          _
        %s769 = sand.u32 %s44, 1
        %s770 = scalar_lea.sflag [#allocation10], %s769
        %s771 = sand.u32 %s313, 1
        %s772 = smul.addr %s771, 256
        %s773 = scalar_lea.vmem [#allocation9], %s772
        // Predicated region
        $region109: #{temporal_transformer_forward.1} parent=95 // pred_check
          %p774 = pneg %p326
        $region110: #{temporal_transformer_forward.1} parent=95 // pred_check_branch
          %776 = sbr.rel (%p774) target = $region112
        $region111: #{temporal_transformer_forward.1} parent=95 // pred_region
          %778 = dma.done %s770, 4096
        $region112: #{temporal_transformer_forward.1} parent=95 // pred_fallthru
          _
        %s779 = sand.u32 %s44, 1
        %s780 = scalar_lea.sflag [#allocation10], %s779
        %s781 = sand.u32 %s339, 1
        %s782 = smul.addr %s781, 16
        %s783 = scalar_lea.vmem [#allocation11], %s782
        // Predicated region
        $region113: #{temporal_transformer_forward.1} parent=95 // pred_check
          %p784 = pneg %p352
        $region114: #{temporal_transformer_forward.1} parent=95 // pred_check_branch
          %786 = sbr.rel (%p784) target = $region116
        $region115: #{temporal_transformer_forward.1} parent=95 // pred_region
          %788 = dma.done %s780, 256
        $region116: #{temporal_transformer_forward.1} parent=95 // pred_fallthru
          _
        %s789 = sand.u32 %s44, 1
        %s790 = scalar_lea.sflag [#allocation13], %s789
        %s791 = sand.u32 %s365, 1
        %s792 = smul.addr %s791, 256
        %s793 = scalar_lea.vmem [#allocation12], %s792
        // Predicated region
        $region117: #{temporal_transformer_forward.1} parent=95 // pred_check
          %p794 = pneg %p378
        $region118: #{temporal_transformer_forward.1} parent=95 // pred_check_branch
          %796 = sbr.rel (%p794) target = $region120
        $region119: #{temporal_transformer_forward.1} parent=95 // pred_region
          %798 = dma.done %s790, 4096
        $region120: #{temporal_transformer_forward.1} parent=95 // pred_fallthru
          _
        %s799 = sand.u32 %s44, 1
        %s800 = scalar_lea.sflag [#allocation13], %s799
        %s801 = sand.u32 %s391, 1
        %s802 = scalar_lea.vmem [#allocation14], %s801
        // Predicated region
        $region121: #{temporal_transformer_forward.1} parent=95 // pred_check
          %p803 = pneg %p404
        $region122: #{temporal_transformer_forward.1} parent=95 // pred_check_branch
          %805 = sbr.rel (%p803) target = $region124
        $region123: #{temporal_transformer_forward.1} parent=95 // pred_region
          %807 = dma.done %s800, 16
        $region124: #{temporal_transformer_forward.1} parent=95 // pred_fallthru
          _
        %s808 = sand.u32 %s443, 1
        %s809 = scalar_lea.sflag [#allocation16], %s808
        %s810 = sand.u32 %s443, 1
        %s811 = scalar_lea.vmem [#allocation15], %s810
        // Predicated region
        $region125: #{temporal_transformer_forward.1} parent=95 // pred_check
          %p812 = pneg %p456
        $region126: #{temporal_transformer_forward.1} parent=95 // pred_check_branch
          %814 = sbr.rel (%p812) target = $region128
        $region127: #{temporal_transformer_forward.1} parent=95 // pred_region
          %816 = dma.done %s809, 16
        $region128: #{temporal_transformer_forward.1} parent=95 // pred_fallthru
          _
        %p817 = pneg %p60
        %p818 = pneg %p57
        %p819 = pneg %p81
        %p820 = pneg %p78
        %p821 = pneg %p102
        %p822 = pneg %p99
        %p823 = pneg %p123
        %p824 = pneg %p120
        %p825 = pneg %p144
        %p826 = pneg %p141
        %p827 = scmp.lt.s32.totalorder %s44, 1
        %s828 = scalar_select %p827, %s44, 1
        %s829 = smul.addr %s828, 4
        %s830 = smul.addr %s829, 8
        %s831 = scalar_lea.vmem %s5, %s830
        %p832 = pneg %p170
        %p833 = pneg %p167
        %p834 = scmp.lt.s32.totalorder %s44, 1
        %s835 = scalar_select %p834, %s44, 1
        %s836 = scalar_lea.vmem %s6, %s835
        %p837 = pneg %p196
        %p838 = pneg %p193
        %s839 = sand.u32 %s44, 1
        %s840 = scalar_lea.sflag [#allocation7], %s839
        %s841 = sand.u32 %s209, 1
        %s842 = smul.addr %s841, 32
        %s843 = scalar_lea.vmem [#allocation6], %s842
        %p844 = pneg %p222
        %p845 = pneg %p219
        %p846 = scmp.lt.s32.totalorder %s44, 1
        %s847 = scalar_select %p846, %s44, 1
        %s848 = scalar_lea.vmem %s8, %s847
        %p849 = pneg %p248
        %p850 = pneg %p245
        %p851 = scmp.lt.s32.totalorder %s44, 1
        %s852 = scalar_select %p851, %s44, 1
        %s853 = scalar_lea.vmem %s9, %s852
        %p854 = pneg %p274
        %p855 = pneg %p271
        %s856 = sand.u32 %s44, 1
        %s857 = scalar_lea.sflag [#allocation7], %s856
        %s858 = sand.u32 %s287, 1
        %s859 = scalar_lea.vmem [#allocation8], %s858
        %p860 = pneg %p300
        %p861 = pneg %p297
        %s862 = sand.u32 %s44, 1
        %s863 = scalar_lea.sflag [#allocation10], %s862
        %s864 = sand.u32 %s313, 1
        %s865 = smul.addr %s864, 256
        %s866 = scalar_lea.vmem [#allocation9], %s865
        %p867 = pneg %p326
        %p868 = pneg %p323
        %s869 = sand.u32 %s44, 1
        %s870 = scalar_lea.sflag [#allocation10], %s869
        %s871 = sand.u32 %s339, 1
        %s872 = smul.addr %s871, 16
        %s873 = scalar_lea.vmem [#allocation11], %s872
        %p874 = pneg %p352
        %p875 = pneg %p349
        %s876 = sand.u32 %s44, 1
        %s877 = scalar_lea.sflag [#allocation13], %s876
        %s878 = sand.u32 %s365, 1
        %s879 = smul.addr %s878, 256
        %s880 = scalar_lea.vmem [#allocation12], %s879
        %p881 = pneg %p378
        %p882 = pneg %p375
        %s883 = sand.u32 %s44, 1
        %s884 = scalar_lea.sflag [#allocation13], %s883
        %s885 = sand.u32 %s391, 1
        %s886 = scalar_lea.vmem [#allocation14], %s885
        %p887 = pneg %p404
        %p888 = pneg %p401
        %p889 = scmp.lt.s32.totalorder %s44, 1
        %s890 = scalar_select %p889, %s44, 1
        %s891 = scalar_lea.vmem %s15, %s890
        %p892 = pneg %p430
        %p893 = pneg %p427
        %s894 = sand.u32 %s443, 1
        %s895 = scalar_lea.sflag [#allocation16], %s894
        %s896 = sand.u32 %s443, 1
        %s897 = scalar_lea.vmem [#allocation15], %s896
        %p898 = pneg %p456
        %p899 = pneg %p453
        %p900 = pneg %p477
        %p901 = pneg %p474
        %p902 = pneg %p498
        %p903 = pneg %p495
        %p904 = pneg %p519
        %p905 = pneg %p516
        %p906 = scmp.lt.s32.totalorder %s44, 1
        %s907 = scalar_select %p906, %s44, 1
        %s908 = smul.addr %s907, 4
        %s909 = smul.addr %s908, 8
        %s910 = scalar_lea.vmem %s5, %s909
        %p911 = scmp.lt.s32.totalorder %s44, 1
        %s912 = scalar_select %p911, %s44, 1
        %s913 = scalar_lea.vmem %s6, %s912
        %p914 = scmp.lt.s32.totalorder %s44, 1
        %s915 = scalar_select %p914, %s44, 1
        %s916 = scalar_lea.vmem %s8, %s915
        %p917 = scmp.lt.s32.totalorder %s44, 1
        %s918 = scalar_select %p917, %s44, 1
        %s919 = scalar_lea.vmem %s9, %s918
        %p920 = scmp.lt.s32.totalorder %s44, 1
        %s921 = scalar_select %p920, %s44, 1
        %s922 = scalar_lea.vmem %s15, %s921
        %p924 = scmp.eq.s32.totalorder %s44, 0
        // Predicated region
        $region129: #{temporal_transformer_forward.1} parent=95 // pred_check
          %p925 = pneg %p924
        $region130: #{temporal_transformer_forward.1} parent=95 // pred_check_branch
          %927 = sbr.rel (%p925) target = $region132
        $region131: #{temporal_transformer_forward.1} parent=95 // pred_region
          %v928 = vld [vmem:[%s0] sm:$0xff]
          %v929 = vld [vmem:[%s0 + $0x8] sm:$0xff]
          %v930 = vld [vmem:[%s0 + $0x10] sm:$0xff]
          %v931 = vld [vmem:[%s0 + $0x18] sm:$0xff]
          %v932 = vld [vmem:[#allocation3] sm:$0xff]
          %v933 = vld [vmem:[#allocation3 + $0x8] sm:$0xff]
          %v934 = vld [vmem:[%s4] sm:$0x1]
          %v936 = vperm.slane %v934, 0
          %vm938 = vcmask 130048
          %v940 = vsel %vm938, %v928, 0
          %v943 = vsel %vm938, %v929, 0
          %v946 = vsel %vm938, %v930, 0
          %v949 = vsel %vm938, %v931, 0
          %951 = vmatpush.msra.mxu0 0.0
          %952 = vmatpush.msra.mxu0 0.0
          %953 = vmatpush.msra.mxu0 0.0
          %954 = vmatpush.msra.mxu0 0.0
          %955 = vmatpush.msra.mxu0 0.0
          %956 = vmatpush.msra.mxu0 0.0
          %957 = vmatpush.msra.mxu0 0.0
          %958 = vmatpush.msra.mxu0 0.0
          %959 = vmatpush.msra.mxu0 0.0
          %960 = vmatpush.msra.mxu0 0.0
          %961 = vmatpush.msra.mxu0 0.0
          %962 = vmatpush.msra.mxu0 0.0
          %963 = vmatpush.msra.mxu0 0.0
          %964 = vmatpush.msra.mxu0 0.0
          %965 = vmatpush.msra.mxu0 %v933
          %966 = vmatpush.msra.mxu0 %v932
          %967 = vmatmul.f32.gmra.mxu0 %v940
          %v968 = vpop.f32.mrf.mxu0
          %v969 = vadd.f32 %v936, %v968
          %970 = vmatmul.f32.gmra.mxu0 %v943
          %v971 = vpop.f32.mrf.mxu0
          %v972 = vadd.f32 %v936, %v971
          %973 = vmatmul.f32.gmra.mxu0 %v946
          %v974 = vpop.f32.mrf.mxu0
          %v975 = vadd.f32 %v936, %v974
          %976 = vmatmul.f32.gmra.mxu0 %v949
          %v977 = vpop.f32.mrf.mxu0
          %v978 = vadd.f32 %v936, %v977
          %979 = vdwg.mxu0
          %v980 = vmax.f32 %v969, 0.0
          %v981 = vmax.f32 %v972, 0.0
          %v982 = vmax.f32 %v975, 0.0
          %v983 = vmax.f32 %v978, 0.0
          %v984 = vld [vmem:[%s1] sm:$0xff]
          %v985 = vld [vmem:[%s1 + $0x8] sm:$0xff]
          %987 = vset.pattern.permute.xlu0 0
          %988 = vperm.xlu0 %987, %v984
          %v989 = vpop.permute.xlu0 %988
          %992 = vset.pattern.permute.xlu0 0
          %993 = vperm.xlu0 %992, %v985
          %v994 = vpop.permute.xlu0 %993
          %v996 = vmul.f32 %v980, %v989
          %v997 = vmul.f32 %v981, %v994
          %v998 = vmul.f32 %v982, %v989
          %v999 = vmul.f32 %v983, %v994
          %v1000 = vld [vmem:[%s2] sm:$0xff]
          %v1001 = vld [vmem:[%s2 + $0x8] sm:$0xff]
          %v1002 = vadd.f32 %v996, %v1000
          %v1003 = vadd.f32 %v997, %v1001
          %v1004 = vadd.f32 %v998, %v1000
          %v1005 = vadd.f32 %v999, %v1001
          %vm1006 = vcmask 261120
          %1007 = vst.msk [vmem:[#allocation2] sm:$0xff] %vm1006, %v1002
          %1008 = vst.msk [vmem:[#allocation2 + $0x8] sm:$0xff] %vm1006, %v1003
          %1009 = vst.msk [vmem:[#allocation2 + $0x10] sm:$0xff] %vm1006, %v1004
          %1010 = vst.msk [vmem:[#allocation2 + $0x18] sm:$0xff] %vm1006, %v1005
        $region132: #{temporal_transformer_forward.1} parent=95 // pred_fallthru
          _
        %v1011 = vld [vmem:[#allocation2] sm:$0xff]
        %v1012 = vld [vmem:[#allocation2 + $0x8] sm:$0xff]
        %v1013 = vld [vmem:[#allocation2 + $0x10] sm:$0xff]
        %v1014 = vld [vmem:[#allocation2 + $0x18] sm:$0xff]
        %v1015 = vlaneseq
        %v1016 = vand.u32 %v1015, 127
        %vm1017 = vcmp.lt.s32.totalorder %v1016, 9
        %v1018 = vsel %vm1017, 0.0, -1e+30
        %v1019 = vld [vmem:[%s910] sm:$0xff]
        %v1020 = vld [vmem:[%s910 + $0x8] sm:$0xff]
        %v1021 = vld [vmem:[%s910 + $0x10] sm:$0xff]
        %v1022 = vld [vmem:[%s910 + $0x18] sm:$0xff]
        %v1023 = vld [vmem:[%s913] sm:$0x1]
        %v1025 = vperm.slane %v1023, 0
        %vm1027 = vcmask 261120
        %v1029 = vsel %vm1027, %v1011, 0
        %v1032 = vsel %vm1027, %v1012, 0
        %v1035 = vsel %vm1027, %v1013, 0
        %v1038 = vsel %vm1027, %v1014, 0
        %1040 = vmatpush.msra.mxu0 0.0
        %1041 = vmatpush.msra.mxu0 0.0
        %1042 = vmatpush.msra.mxu0 0.0
        %1043 = vmatpush.msra.mxu0 0.0
        %1044 = vmatpush.msra.mxu0 0.0
        %1045 = vmatpush.msra.mxu0 0.0
        %1046 = vmatpush.msra.mxu0 0.0
        %1047 = vmatpush.msra.mxu0 0.0
        %1048 = vmatpush.msra.mxu0 0.0
        %1049 = vmatpush.msra.mxu0 0.0
        %1050 = vmatpush.msra.mxu0 0.0
        %1051 = vmatpush.msra.mxu0 0.0
        %1052 = vmatpush.msra.mxu0 %v1022
        %1053 = vmatpush.msra.mxu0 %v1021
        %1054 = vmatpush.msra.mxu0 %v1020
        %1055 = vmatpush.msra.mxu0 %v1019
        %1056 = vmatmul.f32.gmra.mxu0 %v1029
        %v1057 = vpop.f32.mrf.mxu0
        %v1058 = vadd.f32 %v1025, %v1057
        %1059 = vmatmul.f32.gmra.mxu0 %v1032
        %v1060 = vpop.f32.mrf.mxu0
        %v1061 = vadd.f32 %v1025, %v1060
        %1062 = vmatmul.f32.gmra.mxu0 %v1035
        %v1063 = vpop.f32.mrf.mxu0
        %v1064 = vadd.f32 %v1025, %v1063
        %1065 = vmatmul.f32.gmra.mxu0 %v1038
        %v1066 = vpop.f32.mrf.mxu0
        %v1067 = vadd.f32 %v1025, %v1066
        %1068 = vdwg.mxu0
        %1071 = vrot.lane.b32.xlu0 %v1058, 96
        %v1072 = vpop.permute.xlu0 %1071
        %1073 = vrot.lane.b32.xlu0 %v1061, 96
        %v1074 = vpop.permute.xlu0 %1073
        %vm1075 = vcmask 64512
        %v1076 = vsel %vm1075, %v1058, 0
        %v1078 = vsel %vm1075, %v1061, 0
        %v1080 = vsel %vm1075, %v1072, 0
        %v1082 = vsel %vm1075, %v1074, 0
        %1084 = vmatpush.xpose.msra.mxu0 0.0
        %1085 = vmatpush.xpose.msra.mxu0 0.0
        %1086 = vmatpush.xpose.msra.mxu0 0.0
        %1087 = vmatpush.xpose.msra.mxu0 0.0
        %1088 = vmatpush.xpose.msra.mxu0 0.0
        %1089 = vmatpush.xpose.msra.mxu0 0.0
        %1090 = vmatpush.xpose.msra.mxu0 0.0
        %1091 = vmatpush.xpose.msra.mxu0 0.0
        %1092 = vmatpush.xpose.msra.mxu0 0.0
        %1093 = vmatpush.xpose.msra.mxu0 0.0
        %1094 = vmatpush.xpose.msra.mxu0 0.0
        %1095 = vmatpush.xpose.msra.mxu0 0.0
        %1096 = vmatpush.xpose.msra.mxu0 0.0
        %1097 = vmatpush.xpose.msra.mxu0 0.0
        %1098 = vmatpush.xpose.msra.mxu0 %v1082
        %1099 = vmatpush.xpose.msra.mxu0 %v1080
        %1100 = vmatmul.f32.gmra.mxu0 %v1076
        %v1101 = vpop.f32.mrf.mxu0
        %v1102 = vadd.f32 %v1018, %v1101
        %1103 = vmatmul.f32.gmra.mxu0 %v1078
        %v1104 = vpop.f32.mrf.mxu0
        %v1105 = vadd.f32 %v1018, %v1104
        %1106 = vdwg.mxu0
        %1109 = vrot.lane.b32.xlu0 %v1064, 96
        %v1110 = vpop.permute.xlu0 %1109
        %1111 = vrot.lane.b32.xlu0 %v1067, 96
        %v1112 = vpop.permute.xlu0 %1111
        %v1113 = vsel %vm1075, %v1064, 0
        %v1115 = vsel %vm1075, %v1067, 0
        %v1117 = vsel %vm1075, %v1110, 0
        %v1119 = vsel %vm1075, %v1112, 0
        %1121 = vmatpush.xpose.msra.mxu0 0.0
        %1122 = vmatpush.xpose.msra.mxu0 0.0
        %1123 = vmatpush.xpose.msra.mxu0 0.0
        %1124 = vmatpush.xpose.msra.mxu0 0.0
        %1125 = vmatpush.xpose.msra.mxu0 0.0
        %1126 = vmatpush.xpose.msra.mxu0 0.0
        %1127 = vmatpush.xpose.msra.mxu0 0.0
        %1128 = vmatpush.xpose.msra.mxu0 0.0
        %1129 = vmatpush.xpose.msra.mxu0 0.0
        %1130 = vmatpush.xpose.msra.mxu0 0.0
        %1131 = vmatpush.xpose.msra.mxu0 0.0
        %1132 = vmatpush.xpose.msra.mxu0 0.0
        %1133 = vmatpush.xpose.msra.mxu0 0.0
        %1134 = vmatpush.xpose.msra.mxu0 0.0
        %1135 = vmatpush.xpose.msra.mxu0 %v1119
        %1136 = vmatpush.xpose.msra.mxu0 %v1117
        %1137 = vmatmul.f32.gmra.mxu0 %v1113
        %v1138 = vpop.f32.mrf.mxu0
        %v1139 = vadd.f32 %v1018, %v1138
        %1140 = vmatmul.f32.gmra.mxu0 %v1115
        %v1141 = vpop.f32.mrf.mxu0
        %v1142 = vadd.f32 %v1018, %v1141
        %1143 = vdwg.mxu0
        %vm1144 = vcmask 130048
        %v1145 = vsel %vm1144, %v1102, -inf
        %1146 = vmax.xlane.f32.xlu0 %v1145
        %v1147 = vpop.xlane.xlu0 %1146
        %v1148 = vsel %vm1144, %v1105, -inf
        %1149 = vmax.xlane.f32.xlu0 %v1148
        %v1150 = vpop.xlane.xlu0 %1149
        %v1151 = vsel %vm1144, %v1139, -inf
        %1152 = vmax.xlane.f32.xlu0 %v1151
        %v1153 = vpop.xlane.xlu0 %1152
        %v1154 = vsel %vm1144, %v1142, -inf
        %1155 = vmax.xlane.f32.xlu0 %v1154
        %v1156 = vpop.xlane.xlu0 %1155
        %v1157 = vsub.f32 %v1102, %v1147
        %v1158 = vsub.f32 %v1105, %v1150
        %v1159 = vsub.f32 %v1139, %v1153
        %v1160 = vsub.f32 %v1142, %v1156
        %v1161 = vmul.f32 %v1157, 1.442695
        %v1162 = vpow.pop %v1161
        %v1163 = vmul.f32 %v1158, 1.442695
        %v1164 = vpow.pop %v1163
        %v1165 = vmul.f32 %v1159, 1.442695
        %v1166 = vpow.pop %v1165
        %v1167 = vmul.f32 %v1160, 1.442695
        %v1168 = vpow.pop %v1167
        %v1169 = vsel %vm1144, %v1162, 0.0
        %1170 = vadd.xlane.f32.xlu0 %v1169
        %v1171 = vpop.xlane.xlu0 %1170
        %v1172 = vsel %vm1144, %v1164, 0.0
        %1173 = vadd.xlane.f32.xlu0 %v1172
        %v1174 = vpop.xlane.xlu0 %1173
        %v1175 = vsel %vm1144, %v1166, 0.0
        %1176 = vadd.xlane.f32.xlu0 %v1175
        %v1177 = vpop.xlane.xlu0 %1176
        %v1178 = vsel %vm1144, %v1168, 0.0
        %1179 = vadd.xlane.f32.xlu0 %v1178
        %v1180 = vpop.xlane.xlu0 %1179
        %v1181 = vrcp.pop %v1171
        %v1182 = vmul.f32 %v1171, %v1181
        %v1183 = vsub.f32 1.0, %v1182
        %v1184 = vmul.f32 %v1181, %v1183
        %v1185 = vadd.f32 %v1181, %v1184
        %vm1186 = vweird.f32 %v1171
        %vm1187 = vweird.f32 %v1181
        %vm1188 = vmor %vm1186, %vm1187
        %v1189 = vsel %vm1188, %v1181, %v1185
        %v1190 = vand.u32 2147483647, %v1171
        %vm1191 = vcmp.eq.f32.partialorder %v1190, 8.507059e+37
        %v1192 = vand.u32 %v1171, 2147483648
        %v1193 = vor.u32 1.1754944e-38, %v1192
        %v1194 = vsel %vm1191, %v1193, %v1189
        %v1195 = vmul.f32 %v1162, %v1194
        %v1196 = vrcp.pop %v1174
        %v1197 = vmul.f32 %v1174, %v1196
        %v1198 = vsub.f32 1.0, %v1197
        %v1199 = vmul.f32 %v1196, %v1198
        %v1200 = vadd.f32 %v1196, %v1199
        %vm1201 = vweird.f32 %v1174
        %vm1202 = vweird.f32 %v1196
        %vm1203 = vmor %vm1201, %vm1202
        %v1204 = vsel %vm1203, %v1196, %v1200
        %v1205 = vand.u32 2147483647, %v1174
        %vm1206 = vcmp.eq.f32.partialorder %v1205, 8.507059e+37
        %v1207 = vand.u32 %v1174, 2147483648
        %v1208 = vor.u32 1.1754944e-38, %v1207
        %v1209 = vsel %vm1206, %v1208, %v1204
        %v1210 = vmul.f32 %v1164, %v1209
        %v1211 = vrcp.pop %v1177
        %v1212 = vmul.f32 %v1177, %v1211
        %v1213 = vsub.f32 1.0, %v1212
        %v1214 = vmul.f32 %v1211, %v1213
        %v1215 = vadd.f32 %v1211, %v1214
        %vm1216 = vweird.f32 %v1177
        %vm1217 = vweird.f32 %v1211
        %vm1218 = vmor %vm1216, %vm1217
        %v1219 = vsel %vm1218, %v1211, %v1215
        %v1220 = vand.u32 2147483647, %v1177
        %vm1221 = vcmp.eq.f32.partialorder %v1220, 8.507059e+37
        %v1222 = vand.u32 %v1177, 2147483648
        %v1223 = vor.u32 1.1754944e-38, %v1222
        %v1224 = vsel %vm1221, %v1223, %v1219
        %v1225 = vmul.f32 %v1166, %v1224
        %v1226 = vrcp.pop %v1180
        %v1227 = vmul.f32 %v1180, %v1226
        %v1228 = vsub.f32 1.0, %v1227
        %v1229 = vmul.f32 %v1226, %v1228
        %v1230 = vadd.f32 %v1226, %v1229
        %vm1231 = vweird.f32 %v1180
        %vm1232 = vweird.f32 %v1226
        %vm1233 = vmor %vm1231, %vm1232
        %v1234 = vsel %vm1233, %v1226, %v1230
        %v1235 = vand.u32 2147483647, %v1180
        %vm1236 = vcmp.eq.f32.partialorder %v1235, 8.507059e+37
        %v1237 = vand.u32 %v1180, 2147483648
        %v1238 = vor.u32 1.1754944e-38, %v1237
        %v1239 = vsel %vm1236, %v1238, %v1234
        %v1240 = vmul.f32 %v1168, %v1239
        %1241 = vrot.lane.b32.xlu0 %v1058, 64
        %v1242 = vpop.permute.xlu0 %1241
        %1243 = vrot.lane.b32.xlu0 %v1061, 64
        %v1244 = vpop.permute.xlu0 %1243
        %v1248 = vsel %vm1144, %v1195, 0
        %v1251 = vsel %vm1144, %v1210, 0
        %1253 = vmatpush.msra.mxu0 0.0
        %1254 = vmatpush.msra.mxu0 0.0
        %1255 = vmatpush.msra.mxu0 0.0
        %1256 = vmatpush.msra.mxu0 0.0
        %1257 = vmatpush.msra.mxu0 0.0
        %1258 = vmatpush.msra.mxu0 0.0
        %1259 = vmatpush.msra.mxu0 0.0
        %1260 = vmatpush.msra.mxu0 0.0
        %1261 = vmatpush.msra.mxu0 0.0
        %1262 = vmatpush.msra.mxu0 0.0
        %1263 = vmatpush.msra.mxu0 0.0
        %1264 = vmatpush.msra.mxu0 0.0
        %1265 = vmatpush.msra.mxu0 0.0
        %1266 = vmatpush.msra.mxu0 0.0
        %1267 = vmatpush.msra.mxu0 %v1244
        %1268 = vmatpush.msra.mxu0 %v1242
        %1269 = vmatmul.f32.gmra.mxu0 %v1248
        %v1270 = vpop.f32.mrf.mxu0
        %v1271 = vadd.f32 0.0, %v1270
        %1272 = vmatmul.f32.gmra.mxu0 %v1251
        %v1273 = vpop.f32.mrf.mxu0
        %v1274 = vadd.f32 0.0, %v1273
        %1275 = vdwg.mxu0
        %1276 = vrot.lane.b32.xlu0 %v1064, 64
        %v1277 = vpop.permute.xlu0 %1276
        %1278 = vrot.lane.b32.xlu0 %v1067, 64
        %v1279 = vpop.permute.xlu0 %1278
        %v1283 = vsel %vm1144, %v1225, 0
        %v1286 = vsel %vm1144, %v1240, 0
        %1288 = vmatpush.msra.mxu0 0.0
        %1289 = vmatpush.msra.mxu0 0.0
        %1290 = vmatpush.msra.mxu0 0.0
        %1291 = vmatpush.msra.mxu0 0.0
        %1292 = vmatpush.msra.mxu0 0.0
        %1293 = vmatpush.msra.mxu0 0.0
        %1294 = vmatpush.msra.mxu0 0.0
        %1295 = vmatpush.msra.mxu0 0.0
        %1296 = vmatpush.msra.mxu0 0.0
        %1297 = vmatpush.msra.mxu0 0.0
        %1298 = vmatpush.msra.mxu0 0.0
        %1299 = vmatpush.msra.mxu0 0.0
        %1300 = vmatpush.msra.mxu0 0.0
        %1301 = vmatpush.msra.mxu0 0.0
        %1302 = vmatpush.msra.mxu0 %v1279
        %1303 = vmatpush.msra.mxu0 %v1277
        %1304 = vmatmul.f32.gmra.mxu0 %v1283
        %v1305 = vpop.f32.mrf.mxu0
        %v1306 = vadd.f32 0.0, %v1305
        %1307 = vmatmul.f32.gmra.mxu0 %v1286
        %v1308 = vpop.f32.mrf.mxu0
        %v1309 = vadd.f32 0.0, %v1308
        %1310 = vdwg.mxu0
        %1311 = vrot.lane.b32.xlu0 %v1058, 120
        %v1312 = vpop.permute.xlu0 %1311
        %1313 = vrot.lane.b32.xlu0 %v1061, 120
        %v1314 = vpop.permute.xlu0 %1313
        %1315 = vrot.lane.b32.xlu0 %v1058, 88
        %v1316 = vpop.permute.xlu0 %1315
        %1317 = vrot.lane.b32.xlu0 %v1061, 88
        %v1318 = vpop.permute.xlu0 %1317
        %v1319 = vsel %vm1075, %v1312, 0
        %v1321 = vsel %vm1075, %v1314, 0
        %v1323 = vsel %vm1075, %v1316, 0
        %v1325 = vsel %vm1075, %v1318, 0
        %1327 = vmatpush.xpose.msra.mxu0 0.0
        %1328 = vmatpush.xpose.msra.mxu0 0.0
        %1329 = vmatpush.xpose.msra.mxu0 0.0
        %1330 = vmatpush.xpose.msra.mxu0 0.0
        %1331 = vmatpush.xpose.msra.mxu0 0.0
        %1332 = vmatpush.xpose.msra.mxu0 0.0
        %1333 = vmatpush.xpose.msra.mxu0 0.0
        %1334 = vmatpush.xpose.msra.mxu0 0.0
        %1335 = vmatpush.xpose.msra.mxu0 0.0
        %1336 = vmatpush.xpose.msra.mxu0 0.0
        %1337 = vmatpush.xpose.msra.mxu0 0.0
        %1338 = vmatpush.xpose.msra.mxu0 0.0
        %1339 = vmatpush.xpose.msra.mxu0 0.0
        %1340 = vmatpush.xpose.msra.mxu0 0.0
        %1341 = vmatpush.xpose.msra.mxu0 %v1325
        %1342 = vmatpush.xpose.msra.mxu0 %v1323
        %1343 = vmatmul.f32.gmra.mxu0 %v1319
        %v1344 = vpop.f32.mrf.mxu0
        %v1345 = vadd.f32 %v1018, %v1344
        %1346 = vmatmul.f32.gmra.mxu0 %v1321
        %v1347 = vpop.f32.mrf.mxu0
        %v1348 = vadd.f32 %v1018, %v1347
        %1349 = vdwg.mxu0
        %1350 = vrot.lane.b32.xlu0 %v1064, 120
        %v1351 = vpop.permute.xlu0 %1350
        %1352 = vrot.lane.b32.xlu0 %v1067, 120
        %v1353 = vpop.permute.xlu0 %1352
        %1354 = vrot.lane.b32.xlu0 %v1064, 88
        %v1355 = vpop.permute.xlu0 %1354
        %1356 = vrot.lane.b32.xlu0 %v1067, 88
        %v1357 = vpop.permute.xlu0 %1356
        %v1358 = vsel %vm1075, %v1351, 0
        %v1360 = vsel %vm1075, %v1353, 0
        %v1362 = vsel %vm1075, %v1355, 0
        %v1364 = vsel %vm1075, %v1357, 0
        %1366 = vmatpush.xpose.msra.mxu0 0.0
        %1367 = vmatpush.xpose.msra.mxu0 0.0
        %1368 = vmatpush.xpose.msra.mxu0 0.0
        %1369 = vmatpush.xpose.msra.mxu0 0.0
        %1370 = vmatpush.xpose.msra.mxu0 0.0
        %1371 = vmatpush.xpose.msra.mxu0 0.0
        %1372 = vmatpush.xpose.msra.mxu0 0.0
        %1373 = vmatpush.xpose.msra.mxu0 0.0
        %1374 = vmatpush.xpose.msra.mxu0 0.0
        %1375 = vmatpush.xpose.msra.mxu0 0.0
        %1376 = vmatpush.xpose.msra.mxu0 0.0
        %1377 = vmatpush.xpose.msra.mxu0 0.0
        %1378 = vmatpush.xpose.msra.mxu0 0.0
        %1379 = vmatpush.xpose.msra.mxu0 0.0
        %1380 = vmatpush.xpose.msra.mxu0 %v1364
        %1381 = vmatpush.xpose.msra.mxu0 %v1362
        %1382 = vmatmul.f32.gmra.mxu0 %v1358
        %v1383 = vpop.f32.mrf.mxu0
        %v1384 = vadd.f32 %v1018, %v1383
        %1385 = vmatmul.f32.gmra.mxu0 %v1360
        %v1386 = vpop.f32.mrf.mxu0
        %v1387 = vadd.f32 %v1018, %v1386
        %1388 = vdwg.mxu0
        %v1389 = vsel %vm1144, %v1345, -inf
        %1390 = vmax.xlane.f32.xlu0 %v1389
        %v1391 = vpop.xlane.xlu0 %1390
        %v1392 = vsel %vm1144, %v1348, -inf
        %1393 = vmax.xlane.f32.xlu0 %v1392
        %v1394 = vpop.xlane.xlu0 %1393
        %v1395 = vsel %vm1144, %v1384, -inf
        %1396 = vmax.xlane.f32.xlu0 %v1395
        %v1397 = vpop.xlane.xlu0 %1396
        %v1398 = vsel %vm1144, %v1387, -inf
        %1399 = vmax.xlane.f32.xlu0 %v1398
        %v1400 = vpop.xlane.xlu0 %1399
        %v1401 = vsub.f32 %v1345, %v1391
        %v1402 = vsub.f32 %v1348, %v1394
        %v1403 = vsub.f32 %v1384, %v1397
        %v1404 = vsub.f32 %v1387, %v1400
        %v1405 = vmul.f32 %v1401, 1.442695
        %v1406 = vpow.pop %v1405
        %v1407 = vmul.f32 %v1402, 1.442695
        %v1408 = vpow.pop %v1407
        %v1409 = vmul.f32 %v1403, 1.442695
        %v1410 = vpow.pop %v1409
        %v1411 = vmul.f32 %v1404, 1.442695
        %v1412 = vpow.pop %v1411
        %v1413 = vsel %vm1144, %v1406, 0.0
        %1414 = vadd.xlane.f32.xlu0 %v1413
        %v1415 = vpop.xlane.xlu0 %1414
        %v1416 = vsel %vm1144, %v1408, 0.0
        %1417 = vadd.xlane.f32.xlu0 %v1416
        %v1418 = vpop.xlane.xlu0 %1417
        %v1419 = vsel %vm1144, %v1410, 0.0
        %1420 = vadd.xlane.f32.xlu0 %v1419
        %v1421 = vpop.xlane.xlu0 %1420
        %v1422 = vsel %vm1144, %v1412, 0.0
        %1423 = vadd.xlane.f32.xlu0 %v1422
        %v1424 = vpop.xlane.xlu0 %1423
        %v1425 = vrcp.pop %v1415
        %v1426 = vmul.f32 %v1415, %v1425
        %v1427 = vsub.f32 1.0, %v1426
        %v1428 = vmul.f32 %v1425, %v1427
        %v1429 = vadd.f32 %v1425, %v1428
        %vm1430 = vweird.f32 %v1415
        %vm1431 = vweird.f32 %v1425
        %vm1432 = vmor %vm1430, %vm1431
        %v1433 = vsel %vm1432, %v1425, %v1429
        %v1434 = vand.u32 2147483647, %v1415
        %vm1435 = vcmp.eq.f32.partialorder %v1434, 8.507059e+37
        %v1436 = vand.u32 %v1415, 2147483648
        %v1437 = vor.u32 1.1754944e-38, %v1436
        %v1438 = vsel %vm1435, %v1437, %v1433
        %v1439 = vmul.f32 %v1406, %v1438
        %v1440 = vrcp.pop %v1418
        %v1441 = vmul.f32 %v1418, %v1440
        %v1442 = vsub.f32 1.0, %v1441
        %v1443 = vmul.f32 %v1440, %v1442
        %v1444 = vadd.f32 %v1440, %v1443
        %vm1445 = vweird.f32 %v1418
        %vm1446 = vweird.f32 %v1440
        %vm1447 = vmor %vm1445, %vm1446
        %v1448 = vsel %vm1447, %v1440, %v1444
        %v1449 = vand.u32 2147483647, %v1418
        %vm1450 = vcmp.eq.f32.partialorder %v1449, 8.507059e+37
        %v1451 = vand.u32 %v1418, 2147483648
        %v1452 = vor.u32 1.1754944e-38, %v1451
        %v1453 = vsel %vm1450, %v1452, %v1448
        %v1454 = vmul.f32 %v1408, %v1453
        %v1455 = vrcp.pop %v1421
        %v1456 = vmul.f32 %v1421, %v1455
        %v1457 = vsub.f32 1.0, %v1456
        %v1458 = vmul.f32 %v1455, %v1457
        %v1459 = vadd.f32 %v1455, %v1458
        %vm1460 = vweird.f32 %v1421
        %vm1461 = vweird.f32 %v1455
        %vm1462 = vmor %vm1460, %vm1461
        %v1463 = vsel %vm1462, %v1455, %v1459
        %v1464 = vand.u32 2147483647, %v1421
        %vm1465 = vcmp.eq.f32.partialorder %v1464, 8.507059e+37
        %v1466 = vand.u32 %v1421, 2147483648
        %v1467 = vor.u32 1.1754944e-38, %v1466
        %v1468 = vsel %vm1465, %v1467, %v1463
        %v1469 = vmul.f32 %v1410, %v1468
        %v1470 = vrcp.pop %v1424
        %v1471 = vmul.f32 %v1424, %v1470
        %v1472 = vsub.f32 1.0, %v1471
        %v1473 = vmul.f32 %v1470, %v1472
        %v1474 = vadd.f32 %v1470, %v1473
        %vm1475 = vweird.f32 %v1424
        %vm1476 = vweird.f32 %v1470
        %vm1477 = vmor %vm1475, %vm1476
        %v1478 = vsel %vm1477, %v1470, %v1474
        %v1479 = vand.u32 2147483647, %v1424
        %vm1480 = vcmp.eq.f32.partialorder %v1479, 8.507059e+37
        %v1481 = vand.u32 %v1424, 2147483648
        %v1482 = vor.u32 1.1754944e-38, %v1481
        %v1483 = vsel %vm1480, %v1482, %v1478
        %v1484 = vmul.f32 %v1412, %v1483
        %1485 = vrot.lane.b32.xlu0 %v1058, 56
        %v1486 = vpop.permute.xlu0 %1485
        %1487 = vrot.lane.b32.xlu0 %v1061, 56
        %v1488 = vpop.permute.xlu0 %1487
        %v1492 = vsel %vm1144, %v1439, 0
        %v1495 = vsel %vm1144, %v1454, 0
        %1497 = vmatpush.msra.mxu0 0.0
        %1498 = vmatpush.msra.mxu0 0.0
        %1499 = vmatpush.msra.mxu0 0.0
        %1500 = vmatpush.msra.mxu0 0.0
        %1501 = vmatpush.msra.mxu0 0.0
        %1502 = vmatpush.msra.mxu0 0.0
        %1503 = vmatpush.msra.mxu0 0.0
        %1504 = vmatpush.msra.mxu0 0.0
        %1505 = vmatpush.msra.mxu0 0.0
        %1506 = vmatpush.msra.mxu0 0.0
        %1507 = vmatpush.msra.mxu0 0.0
        %1508 = vmatpush.msra.mxu0 0.0
        %1509 = vmatpush.msra.mxu0 0.0
        %1510 = vmatpush.msra.mxu0 0.0
        %1511 = vmatpush.msra.mxu0 %v1488
        %1512 = vmatpush.msra.mxu0 %v1486
        %1513 = vmatmul.f32.gmra.mxu0 %v1492
        %v1514 = vpop.f32.mrf.mxu0
        %v1515 = vadd.f32 0.0, %v1514
        %1516 = vmatmul.f32.gmra.mxu0 %v1495
        %v1517 = vpop.f32.mrf.mxu0
        %v1518 = vadd.f32 0.0, %v1517
        %1519 = vdwg.mxu0
        %1520 = vrot.lane.b32.xlu0 %v1064, 56
        %v1521 = vpop.permute.xlu0 %1520
        %1522 = vrot.lane.b32.xlu0 %v1067, 56
        %v1523 = vpop.permute.xlu0 %1522
        %v1527 = vsel %vm1144, %v1469, 0
        %v1530 = vsel %vm1144, %v1484, 0
        %1532 = vmatpush.msra.mxu0 0.0
        %1533 = vmatpush.msra.mxu0 0.0
        %1534 = vmatpush.msra.mxu0 0.0
        %1535 = vmatpush.msra.mxu0 0.0
        %1536 = vmatpush.msra.mxu0 0.0
        %1537 = vmatpush.msra.mxu0 0.0
        %1538 = vmatpush.msra.mxu0 0.0
        %1539 = vmatpush.msra.mxu0 0.0
        %1540 = vmatpush.msra.mxu0 0.0
        %1541 = vmatpush.msra.mxu0 0.0
        %1542 = vmatpush.msra.mxu0 0.0
        %1543 = vmatpush.msra.mxu0 0.0
        %1544 = vmatpush.msra.mxu0 0.0
        %1545 = vmatpush.msra.mxu0 0.0
        %1546 = vmatpush.msra.mxu0 %v1523
        %1547 = vmatpush.msra.mxu0 %v1521
        %1548 = vmatmul.f32.gmra.mxu0 %v1527
        %v1549 = vpop.f32.mrf.mxu0
        %v1550 = vadd.f32 0.0, %v1549
        %1551 = vmatmul.f32.gmra.mxu0 %v1530
        %v1552 = vpop.f32.mrf.mxu0
        %v1553 = vadd.f32 0.0, %v1552
        %1554 = vdwg.mxu0
        %1555 = vrot.lane.b32.xlu0 %v1058, 112
        %v1556 = vpop.permute.xlu0 %1555
        %1557 = vrot.lane.b32.xlu0 %v1061, 112
        %v1558 = vpop.permute.xlu0 %1557
        %1559 = vrot.lane.b32.xlu0 %v1058, 80
        %v1560 = vpop.permute.xlu0 %1559
        %1561 = vrot.lane.b32.xlu0 %v1061, 80
        %v1562 = vpop.permute.xlu0 %1561
        %v1563 = vsel %vm1075, %v1556, 0
        %v1565 = vsel %vm1075, %v1558, 0
        %v1567 = vsel %vm1075, %v1560, 0
        %v1569 = vsel %vm1075, %v1562, 0
        %1571 = vmatpush.xpose.msra.mxu0 0.0
        %1572 = vmatpush.xpose.msra.mxu0 0.0
        %1573 = vmatpush.xpose.msra.mxu0 0.0
        %1574 = vmatpush.xpose.msra.mxu0 0.0
        %1575 = vmatpush.xpose.msra.mxu0 0.0
        %1576 = vmatpush.xpose.msra.mxu0 0.0
        %1577 = vmatpush.xpose.msra.mxu0 0.0
        %1578 = vmatpush.xpose.msra.mxu0 0.0
        %1579 = vmatpush.xpose.msra.mxu0 0.0
        %1580 = vmatpush.xpose.msra.mxu0 0.0
        %1581 = vmatpush.xpose.msra.mxu0 0.0
        %1582 = vmatpush.xpose.msra.mxu0 0.0
        %1583 = vmatpush.xpose.msra.mxu0 0.0
        %1584 = vmatpush.xpose.msra.mxu0 0.0
        %1585 = vmatpush.xpose.msra.mxu0 %v1569
        %1586 = vmatpush.xpose.msra.mxu0 %v1567
        %1587 = vmatmul.f32.gmra.mxu0 %v1563
        %v1588 = vpop.f32.mrf.mxu0
        %v1589 = vadd.f32 %v1018, %v1588
        %1590 = vmatmul.f32.gmra.mxu0 %v1565
        %v1591 = vpop.f32.mrf.mxu0
        %v1592 = vadd.f32 %v1018, %v1591
        %1593 = vdwg.mxu0
        %1594 = vrot.lane.b32.xlu0 %v1064, 112
        %v1595 = vpop.permute.xlu0 %1594
        %1596 = vrot.lane.b32.xlu0 %v1067, 112
        %v1597 = vpop.permute.xlu0 %1596
        %1598 = vrot.lane.b32.xlu0 %v1064, 80
        %v1599 = vpop.permute.xlu0 %1598
        %1600 = vrot.lane.b32.xlu0 %v1067, 80
        %v1601 = vpop.permute.xlu0 %1600
        %v1602 = vsel %vm1075, %v1595, 0
        %v1604 = vsel %vm1075, %v1597, 0
        %v1606 = vsel %vm1075, %v1599, 0
        %v1608 = vsel %vm1075, %v1601, 0
        %1610 = vmatpush.xpose.msra.mxu0 0.0
        %1611 = vmatpush.xpose.msra.mxu0 0.0
        %1612 = vmatpush.xpose.msra.mxu0 0.0
        %1613 = vmatpush.xpose.msra.mxu0 0.0
        %1614 = vmatpush.xpose.msra.mxu0 0.0
        %1615 = vmatpush.xpose.msra.mxu0 0.0
        %1616 = vmatpush.xpose.msra.mxu0 0.0
        %1617 = vmatpush.xpose.msra.mxu0 0.0
        %1618 = vmatpush.xpose.msra.mxu0 0.0
        %1619 = vmatpush.xpose.msra.mxu0 0.0
        %1620 = vmatpush.xpose.msra.mxu0 0.0
        %1621 = vmatpush.xpose.msra.mxu0 0.0
        %1622 = vmatpush.xpose.msra.mxu0 0.0
        %1623 = vmatpush.xpose.msra.mxu0 0.0
        %1624 = vmatpush.xpose.msra.mxu0 %v1608
        %1625 = vmatpush.xpose.msra.mxu0 %v1606
        %1626 = vmatmul.f32.gmra.mxu0 %v1602
        %v1627 = vpop.f32.mrf.mxu0
        %v1628 = vadd.f32 %v1018, %v1627
        %1629 = vmatmul.f32.gmra.mxu0 %v1604
        %v1630 = vpop.f32.mrf.mxu0
        %v1631 = vadd.f32 %v1018, %v1630
        %1632 = vdwg.mxu0
        %v1633 = vsel %vm1144, %v1589, -inf
        %1634 = vmax.xlane.f32.xlu0 %v1633
        %v1635 = vpop.xlane.xlu0 %1634
        %v1636 = vsel %vm1144, %v1592, -inf
        %1637 = vmax.xlane.f32.xlu0 %v1636
        %v1638 = vpop.xlane.xlu0 %1637
        %v1639 = vsel %vm1144, %v1628, -inf
        %1640 = vmax.xlane.f32.xlu0 %v1639
        %v1641 = vpop.xlane.xlu0 %1640
        %v1642 = vsel %vm1144, %v1631, -inf
        %1643 = vmax.xlane.f32.xlu0 %v1642
        %v1644 = vpop.xlane.xlu0 %1643
        %v1645 = vsub.f32 %v1589, %v1635
        %v1646 = vsub.f32 %v1592, %v1638
        %v1647 = vsub.f32 %v1628, %v1641
        %v1648 = vsub.f32 %v1631, %v1644
        %v1649 = vmul.f32 %v1645, 1.442695
        %v1650 = vpow.pop %v1649
        %v1651 = vmul.f32 %v1646, 1.442695
        %v1652 = vpow.pop %v1651
        %v1653 = vmul.f32 %v1647, 1.442695
        %v1654 = vpow.pop %v1653
        %v1655 = vmul.f32 %v1648, 1.442695
        %v1656 = vpow.pop %v1655
        %v1657 = vsel %vm1144, %v1650, 0.0
        %1658 = vadd.xlane.f32.xlu0 %v1657
        %v1659 = vpop.xlane.xlu0 %1658
        %v1660 = vsel %vm1144, %v1652, 0.0
        %1661 = vadd.xlane.f32.xlu0 %v1660
        %v1662 = vpop.xlane.xlu0 %1661
        %v1663 = vsel %vm1144, %v1654, 0.0
        %1664 = vadd.xlane.f32.xlu0 %v1663
        %v1665 = vpop.xlane.xlu0 %1664
        %v1666 = vsel %vm1144, %v1656, 0.0
        %1667 = vadd.xlane.f32.xlu0 %v1666
        %v1668 = vpop.xlane.xlu0 %1667
        %v1669 = vrcp.pop %v1659
        %v1670 = vmul.f32 %v1659, %v1669
        %v1671 = vsub.f32 1.0, %v1670
        %v1672 = vmul.f32 %v1669, %v1671
        %v1673 = vadd.f32 %v1669, %v1672
        %vm1674 = vweird.f32 %v1659
        %vm1675 = vweird.f32 %v1669
        %vm1676 = vmor %vm1674, %vm1675
        %v1677 = vsel %vm1676, %v1669, %v1673
        %v1678 = vand.u32 2147483647, %v1659
        %vm1679 = vcmp.eq.f32.partialorder %v1678, 8.507059e+37
        %v1680 = vand.u32 %v1659, 2147483648
        %v1681 = vor.u32 1.1754944e-38, %v1680
        %v1682 = vsel %vm1679, %v1681, %v1677
        %v1683 = vmul.f32 %v1650, %v1682
        %v1684 = vrcp.pop %v1662
        %v1685 = vmul.f32 %v1662, %v1684
        %v1686 = vsub.f32 1.0, %v1685
        %v1687 = vmul.f32 %v1684, %v1686
        %v1688 = vadd.f32 %v1684, %v1687
        %vm1689 = vweird.f32 %v1662
        %vm1690 = vweird.f32 %v1684
        %vm1691 = vmor %vm1689, %vm1690
        %v1692 = vsel %vm1691, %v1684, %v1688
        %v1693 = vand.u32 2147483647, %v1662
        %vm1694 = vcmp.eq.f32.partialorder %v1693, 8.507059e+37
        %v1695 = vand.u32 %v1662, 2147483648
        %v1696 = vor.u32 1.1754944e-38, %v1695
        %v1697 = vsel %vm1694, %v1696, %v1692
        %v1698 = vmul.f32 %v1652, %v1697
        %v1699 = vrcp.pop %v1665
        %v1700 = vmul.f32 %v1665, %v1699
        %v1701 = vsub.f32 1.0, %v1700
        %v1702 = vmul.f32 %v1699, %v1701
        %v1703 = vadd.f32 %v1699, %v1702
        %vm1704 = vweird.f32 %v1665
        %vm1705 = vweird.f32 %v1699
        %vm1706 = vmor %vm1704, %vm1705
        %v1707 = vsel %vm1706, %v1699, %v1703
        %v1708 = vand.u32 2147483647, %v1665
        %vm1709 = vcmp.eq.f32.partialorder %v1708, 8.507059e+37
        %v1710 = vand.u32 %v1665, 2147483648
        %v1711 = vor.u32 1.1754944e-38, %v1710
        %v1712 = vsel %vm1709, %v1711, %v1707
        %v1713 = vmul.f32 %v1654, %v1712
        %v1714 = vrcp.pop %v1668
        %v1715 = vmul.f32 %v1668, %v1714
        %v1716 = vsub.f32 1.0, %v1715
        %v1717 = vmul.f32 %v1714, %v1716
        %v1718 = vadd.f32 %v1714, %v1717
        %vm1719 = vweird.f32 %v1668
        %vm1720 = vweird.f32 %v1714
        %vm1721 = vmor %vm1719, %vm1720
        %v1722 = vsel %vm1721, %v1714, %v1718
        %v1723 = vand.u32 2147483647, %v1668
        %vm1724 = vcmp.eq.f32.partialorder %v1723, 8.507059e+37
        %v1725 = vand.u32 %v1668, 2147483648
        %v1726 = vor.u32 1.1754944e-38, %v1725
        %v1727 = vsel %vm1724, %v1726, %v1722
        %v1728 = vmul.f32 %v1656, %v1727
        %1729 = vrot.lane.b32.xlu0 %v1058, 48
        %v1730 = vpop.permute.xlu0 %1729
        %1731 = vrot.lane.b32.xlu0 %v1061, 48
        %v1732 = vpop.permute.xlu0 %1731
        %v1736 = vsel %vm1144, %v1683, 0
        %v1739 = vsel %vm1144, %v1698, 0
        %1741 = vmatpush.msra.mxu0 0.0
        %1742 = vmatpush.msra.mxu0 0.0
        %1743 = vmatpush.msra.mxu0 0.0
        %1744 = vmatpush.msra.mxu0 0.0
        %1745 = vmatpush.msra.mxu0 0.0
        %1746 = vmatpush.msra.mxu0 0.0
        %1747 = vmatpush.msra.mxu0 0.0
        %1748 = vmatpush.msra.mxu0 0.0
        %1749 = vmatpush.msra.mxu0 0.0
        %1750 = vmatpush.msra.mxu0 0.0
        %1751 = vmatpush.msra.mxu0 0.0
        %1752 = vmatpush.msra.mxu0 0.0
        %1753 = vmatpush.msra.mxu0 0.0
        %1754 = vmatpush.msra.mxu0 0.0
        %1755 = vmatpush.msra.mxu0 %v1732
        %1756 = vmatpush.msra.mxu0 %v1730
        %1757 = vmatmul.f32.gmra.mxu0 %v1736
        %v1758 = vpop.f32.mrf.mxu0
        %v1759 = vadd.f32 0.0, %v1758
        %1760 = vmatmul.f32.gmra.mxu0 %v1739
        %v1761 = vpop.f32.mrf.mxu0
        %v1762 = vadd.f32 0.0, %v1761
        %1763 = vdwg.mxu0
        %1764 = vrot.lane.b32.xlu0 %v1064, 48
        %v1765 = vpop.permute.xlu0 %1764
        %1766 = vrot.lane.b32.xlu0 %v1067, 48
        %v1767 = vpop.permute.xlu0 %1766
        %v1771 = vsel %vm1144, %v1713, 0
        %v1774 = vsel %vm1144, %v1728, 0
        %1776 = vmatpush.msra.mxu0 0.0
        %1777 = vmatpush.msra.mxu0 0.0
        %1778 = vmatpush.msra.mxu0 0.0
        %1779 = vmatpush.msra.mxu0 0.0
        %1780 = vmatpush.msra.mxu0 0.0
        %1781 = vmatpush.msra.mxu0 0.0
        %1782 = vmatpush.msra.mxu0 0.0
        %1783 = vmatpush.msra.mxu0 0.0
        %1784 = vmatpush.msra.mxu0 0.0
        %1785 = vmatpush.msra.mxu0 0.0
        %1786 = vmatpush.msra.mxu0 0.0
        %1787 = vmatpush.msra.mxu0 0.0
        %1788 = vmatpush.msra.mxu0 0.0
        %1789 = vmatpush.msra.mxu0 0.0
        %1790 = vmatpush.msra.mxu0 %v1767
        %1791 = vmatpush.msra.mxu0 %v1765
        %1792 = vmatmul.f32.gmra.mxu0 %v1771
        %v1793 = vpop.f32.mrf.mxu0
        %v1794 = vadd.f32 0.0, %v1793
        %1795 = vmatmul.f32.gmra.mxu0 %v1774
        %v1796 = vpop.f32.mrf.mxu0
        %v1797 = vadd.f32 0.0, %v1796
        %1798 = vdwg.mxu0
        %1799 = vrot.lane.b32.xlu0 %v1058, 104
        %v1800 = vpop.permute.xlu0 %1799
        %1801 = vrot.lane.b32.xlu0 %v1061, 104
        %v1802 = vpop.permute.xlu0 %1801
        %1803 = vrot.lane.b32.xlu0 %v1058, 72
        %v1804 = vpop.permute.xlu0 %1803
        %1805 = vrot.lane.b32.xlu0 %v1061, 72
        %v1806 = vpop.permute.xlu0 %1805
        %v1807 = vsel %vm1075, %v1800, 0
        %v1809 = vsel %vm1075, %v1802, 0
        %v1811 = vsel %vm1075, %v1804, 0
        %v1813 = vsel %vm1075, %v1806, 0
        %1815 = vmatpush.xpose.msra.mxu0 0.0
        %1816 = vmatpush.xpose.msra.mxu0 0.0
        %1817 = vmatpush.xpose.msra.mxu0 0.0
        %1818 = vmatpush.xpose.msra.mxu0 0.0
        %1819 = vmatpush.xpose.msra.mxu0 0.0
        %1820 = vmatpush.xpose.msra.mxu0 0.0
        %1821 = vmatpush.xpose.msra.mxu0 0.0
        %1822 = vmatpush.xpose.msra.mxu0 0.0
        %1823 = vmatpush.xpose.msra.mxu0 0.0
        %1824 = vmatpush.xpose.msra.mxu0 0.0
        %1825 = vmatpush.xpose.msra.mxu0 0.0
        %1826 = vmatpush.xpose.msra.mxu0 0.0
        %1827 = vmatpush.xpose.msra.mxu0 0.0
        %1828 = vmatpush.xpose.msra.mxu0 0.0
        %1829 = vmatpush.xpose.msra.mxu0 %v1813
        %1830 = vmatpush.xpose.msra.mxu0 %v1811
        %1831 = vmatmul.f32.gmra.mxu0 %v1807
        %v1832 = vpop.f32.mrf.mxu0
        %v1833 = vadd.f32 %v1018, %v1832
        %1834 = vmatmul.f32.gmra.mxu0 %v1809
        %v1835 = vpop.f32.mrf.mxu0
        %v1836 = vadd.f32 %v1018, %v1835
        %1837 = vdwg.mxu0
        %1838 = vrot.lane.b32.xlu0 %v1064, 104
        %v1839 = vpop.permute.xlu0 %1838
        %1840 = vrot.lane.b32.xlu0 %v1067, 104
        %v1841 = vpop.permute.xlu0 %1840
        %1842 = vrot.lane.b32.xlu0 %v1064, 72
        %v1843 = vpop.permute.xlu0 %1842
        %1844 = vrot.lane.b32.xlu0 %v1067, 72
        %v1845 = vpop.permute.xlu0 %1844
        %v1846 = vsel %vm1075, %v1839, 0
        %v1848 = vsel %vm1075, %v1841, 0
        %v1850 = vsel %vm1075, %v1843, 0
        %v1852 = vsel %vm1075, %v1845, 0
        %1854 = vmatpush.xpose.msra.mxu0 0.0
        %1855 = vmatpush.xpose.msra.mxu0 0.0
        %1856 = vmatpush.xpose.msra.mxu0 0.0
        %1857 = vmatpush.xpose.msra.mxu0 0.0
        %1858 = vmatpush.xpose.msra.mxu0 0.0
        %1859 = vmatpush.xpose.msra.mxu0 0.0
        %1860 = vmatpush.xpose.msra.mxu0 0.0
        %1861 = vmatpush.xpose.msra.mxu0 0.0
        %1862 = vmatpush.xpose.msra.mxu0 0.0
        %1863 = vmatpush.xpose.msra.mxu0 0.0
        %1864 = vmatpush.xpose.msra.mxu0 0.0
        %1865 = vmatpush.xpose.msra.mxu0 0.0
        %1866 = vmatpush.xpose.msra.mxu0 0.0
        %1867 = vmatpush.xpose.msra.mxu0 0.0
        %1868 = vmatpush.xpose.msra.mxu0 %v1852
        %1869 = vmatpush.xpose.msra.mxu0 %v1850
        %1870 = vmatmul.f32.gmra.mxu0 %v1846
        %v1871 = vpop.f32.mrf.mxu0
        %v1872 = vadd.f32 %v1018, %v1871
        %1873 = vmatmul.f32.gmra.mxu0 %v1848
        %v1874 = vpop.f32.mrf.mxu0
        %v1875 = vadd.f32 %v1018, %v1874
        %1876 = vdwg.mxu0
        %v1877 = vsel %vm1144, %v1833, -inf
        %1878 = vmax.xlane.f32.xlu0 %v1877
        %v1879 = vpop.xlane.xlu0 %1878
        %v1880 = vsel %vm1144, %v1836, -inf
        %1881 = vmax.xlane.f32.xlu0 %v1880
        %v1882 = vpop.xlane.xlu0 %1881
        %v1883 = vsel %vm1144, %v1872, -inf
        %1884 = vmax.xlane.f32.xlu0 %v1883
        %v1885 = vpop.xlane.xlu0 %1884
        %v1886 = vsel %vm1144, %v1875, -inf
        %1887 = vmax.xlane.f32.xlu0 %v1886
        %v1888 = vpop.xlane.xlu0 %1887
        %v1889 = vsub.f32 %v1833, %v1879
        %v1890 = vsub.f32 %v1836, %v1882
        %v1891 = vsub.f32 %v1872, %v1885
        %v1892 = vsub.f32 %v1875, %v1888
        %v1893 = vmul.f32 %v1889, 1.442695
        %v1894 = vpow.pop %v1893
        %v1895 = vmul.f32 %v1890, 1.442695
        %v1896 = vpow.pop %v1895
        %v1897 = vmul.f32 %v1891, 1.442695
        %v1898 = vpow.pop %v1897
        %v1899 = vmul.f32 %v1892, 1.442695
        %v1900 = vpow.pop %v1899
        %v1901 = vsel %vm1144, %v1894, 0.0
        %1902 = vadd.xlane.f32.xlu0 %v1901
        %v1903 = vpop.xlane.xlu0 %1902
        %v1904 = vsel %vm1144, %v1896, 0.0
        %1905 = vadd.xlane.f32.xlu0 %v1904
        %v1906 = vpop.xlane.xlu0 %1905
        %v1907 = vsel %vm1144, %v1898, 0.0
        %1908 = vadd.xlane.f32.xlu0 %v1907
        %v1909 = vpop.xlane.xlu0 %1908
        %v1910 = vsel %vm1144, %v1900, 0.0
        %1911 = vadd.xlane.f32.xlu0 %v1910
        %v1912 = vpop.xlane.xlu0 %1911
        %v1913 = vrcp.pop %v1903
        %v1914 = vmul.f32 %v1903, %v1913
        %v1915 = vsub.f32 1.0, %v1914
        %v1916 = vmul.f32 %v1913, %v1915
        %v1917 = vadd.f32 %v1913, %v1916
        %vm1918 = vweird.f32 %v1903
        %vm1919 = vweird.f32 %v1913
        %vm1920 = vmor %vm1918, %vm1919
        %v1921 = vsel %vm1920, %v1913, %v1917
        %v1922 = vand.u32 2147483647, %v1903
        %vm1923 = vcmp.eq.f32.partialorder %v1922, 8.507059e+37
        %v1924 = vand.u32 %v1903, 2147483648
        %v1925 = vor.u32 1.1754944e-38, %v1924
        %v1926 = vsel %vm1923, %v1925, %v1921
        %v1927 = vmul.f32 %v1894, %v1926
        %v1928 = vrcp.pop %v1906
        %v1929 = vmul.f32 %v1906, %v1928
        %v1930 = vsub.f32 1.0, %v1929
        %v1931 = vmul.f32 %v1928, %v1930
        %v1932 = vadd.f32 %v1928, %v1931
        %vm1933 = vweird.f32 %v1906
        %vm1934 = vweird.f32 %v1928
        %vm1935 = vmor %vm1933, %vm1934
        %v1936 = vsel %vm1935, %v1928, %v1932
        %v1937 = vand.u32 2147483647, %v1906
        %vm1938 = vcmp.eq.f32.partialorder %v1937, 8.507059e+37
        %v1939 = vand.u32 %v1906, 2147483648
        %v1940 = vor.u32 1.1754944e-38, %v1939
        %v1941 = vsel %vm1938, %v1940, %v1936
        %v1942 = vmul.f32 %v1896, %v1941
        %v1943 = vrcp.pop %v1909
        %v1944 = vmul.f32 %v1909, %v1943
        %v1945 = vsub.f32 1.0, %v1944
        %v1946 = vmul.f32 %v1943, %v1945
        %v1947 = vadd.f32 %v1943, %v1946
        %vm1948 = vweird.f32 %v1909
        %vm1949 = vweird.f32 %v1943
        %vm1950 = vmor %vm1948, %vm1949
        %v1951 = vsel %vm1950, %v1943, %v1947
        %v1952 = vand.u32 2147483647, %v1909
        %vm1953 = vcmp.eq.f32.partialorder %v1952, 8.507059e+37
        %v1954 = vand.u32 %v1909, 2147483648
        %v1955 = vor.u32 1.1754944e-38, %v1954
        %v1956 = vsel %vm1953, %v1955, %v1951
        %v1957 = vmul.f32 %v1898, %v1956
        %v1958 = vrcp.pop %v1912
        %v1959 = vmul.f32 %v1912, %v1958
        %v1960 = vsub.f32 1.0, %v1959
        %v1961 = vmul.f32 %v1958, %v1960
        %v1962 = vadd.f32 %v1958, %v1961
        %vm1963 = vweird.f32 %v1912
        %vm1964 = vweird.f32 %v1958
        %vm1965 = vmor %vm1963, %vm1964
        %v1966 = vsel %vm1965, %v1958, %v1962
        %v1967 = vand.u32 2147483647, %v1912
        %vm1968 = vcmp.eq.f32.partialorder %v1967, 8.507059e+37
        %v1969 = vand.u32 %v1912, 2147483648
        %v1970 = vor.u32 1.1754944e-38, %v1969
        %v1971 = vsel %vm1968, %v1970, %v1966
        %v1972 = vmul.f32 %v1900, %v1971
        %1973 = vrot.lane.b32.xlu0 %v1058, 40
        %v1974 = vpop.permute.xlu0 %1973
        %1975 = vrot.lane.b32.xlu0 %v1061, 40
        %v1976 = vpop.permute.xlu0 %1975
        %v1980 = vsel %vm1144, %v1927, 0
        %v1983 = vsel %vm1144, %v1942, 0
        %1985 = vmatpush.msra.mxu0 0.0
        %1986 = vmatpush.msra.mxu0 0.0
        %1987 = vmatpush.msra.mxu0 0.0
        %1988 = vmatpush.msra.mxu0 0.0
        %1989 = vmatpush.msra.mxu0 0.0
        %1990 = vmatpush.msra.mxu0 0.0
        %1991 = vmatpush.msra.mxu0 0.0
        %1992 = vmatpush.msra.mxu0 0.0
        %1993 = vmatpush.msra.mxu0 0.0
        %1994 = vmatpush.msra.mxu0 0.0
        %1995 = vmatpush.msra.mxu0 0.0
        %1996 = vmatpush.msra.mxu0 0.0
        %1997 = vmatpush.msra.mxu0 0.0
        %1998 = vmatpush.msra.mxu0 0.0
        %1999 = vmatpush.msra.mxu0 %v1976
        %2000 = vmatpush.msra.mxu0 %v1974
        %2001 = vmatmul.f32.gmra.mxu0 %v1980
        %v2002 = vpop.f32.mrf.mxu0
        %v2003 = vadd.f32 0.0, %v2002
        %2004 = vmatmul.f32.gmra.mxu0 %v1983
        %v2005 = vpop.f32.mrf.mxu0
        %v2006 = vadd.f32 0.0, %v2005
        %2007 = vdwg.mxu0
        %2008 = vrot.lane.b32.xlu0 %v1064, 40
        %v2009 = vpop.permute.xlu0 %2008
        %2010 = vrot.lane.b32.xlu0 %v1067, 40
        %v2011 = vpop.permute.xlu0 %2010
        %v2015 = vsel %vm1144, %v1957, 0
        %v2018 = vsel %vm1144, %v1972, 0
        %2020 = vmatpush.msra.mxu0 0.0
        %2021 = vmatpush.msra.mxu0 0.0
        %2022 = vmatpush.msra.mxu0 0.0
        %2023 = vmatpush.msra.mxu0 0.0
        %2024 = vmatpush.msra.mxu0 0.0
        %2025 = vmatpush.msra.mxu0 0.0
        %2026 = vmatpush.msra.mxu0 0.0
        %2027 = vmatpush.msra.mxu0 0.0
        %2028 = vmatpush.msra.mxu0 0.0
        %2029 = vmatpush.msra.mxu0 0.0
        %2030 = vmatpush.msra.mxu0 0.0
        %2031 = vmatpush.msra.mxu0 0.0
        %2032 = vmatpush.msra.mxu0 0.0
        %2033 = vmatpush.msra.mxu0 0.0
        %2034 = vmatpush.msra.mxu0 %v2011
        %2035 = vmatpush.msra.mxu0 %v2009
        %2036 = vmatmul.f32.gmra.mxu0 %v2015
        %v2037 = vpop.f32.mrf.mxu0
        %v2038 = vadd.f32 0.0, %v2037
        %2039 = vmatmul.f32.gmra.mxu0 %v2018
        %v2040 = vpop.f32.mrf.mxu0
        %v2041 = vadd.f32 0.0, %v2040
        %2042 = vdwg.mxu0
        %2047 = vrot.lane.b32.xlu0 %v1515, 8
        %v2048 = vpop.permute.xlu0 %2047
        %2049 = vrot.lane.b32.xlu0 %v1518, 8
        %v2050 = vpop.permute.xlu0 %2049
        %2051 = vrot.lane.b32.xlu0 %v1550, 8
        %v2052 = vpop.permute.xlu0 %2051
        %2053 = vrot.lane.b32.xlu0 %v1553, 8
        %v2054 = vpop.permute.xlu0 %2053
        %2063 = vrot.lane.b32.xlu0 %v1759, 16
        %v2064 = vpop.permute.xlu0 %2063
        %2065 = vrot.lane.b32.xlu0 %v1762, 16
        %v2066 = vpop.permute.xlu0 %2065
        %2067 = vrot.lane.b32.xlu0 %v1794, 16
        %v2068 = vpop.permute.xlu0 %2067
        %2069 = vrot.lane.b32.xlu0 %v1797, 16
        %v2070 = vpop.permute.xlu0 %2069
        %2079 = vrot.lane.b32.xlu0 %v2003, 24
        %v2080 = vpop.permute.xlu0 %2079
        %2081 = vrot.lane.b32.xlu0 %v2006, 24
        %v2082 = vpop.permute.xlu0 %2081
        %2083 = vrot.lane.b32.xlu0 %v2038, 24
        %v2084 = vpop.permute.xlu0 %2083
        %2085 = vrot.lane.b32.xlu0 %v2041, 24
        %v2086 = vpop.permute.xlu0 %2085
        %v2091 = vsel %vm1075, %v1271, %v2048
        %v2092 = vsel %vm1075, %v1274, %v2050
        %v2093 = vsel %vm1075, %v1306, %v2052
        %v2094 = vsel %vm1075, %v1309, %v2054
        %v2095 = vsel %vm1144, %v2091, %v2064
        %v2096 = vsel %vm1144, %v2092, %v2066
        %v2097 = vsel %vm1144, %v2093, %v2068
        %v2098 = vsel %vm1144, %v2094, %v2070
        %vm2099 = vcmask 195584
        %v2100 = vsel %vm2099, %v2095, %v2080
        %v2101 = vsel %vm2099, %v2096, %v2082
        %v2102 = vsel %vm2099, %v2097, %v2084
        %v2103 = vsel %vm2099, %v2098, %v2086
        %v2104 = vld [vmem:[%s754] sm:$0xff]
        %v2105 = vld [vmem:[%s754 + $0x8] sm:$0xff]
        %v2106 = vld [vmem:[%s754 + $0x10] sm:$0xff]
        %v2107 = vld [vmem:[%s754 + $0x18] sm:$0xff]
        %v2108 = vld [vmem:[%s916] sm:$0x1]
        %v2110 = vperm.slane %v2108, 0
        %v2113 = vsel %vm1027, %v2100, 0
        %v2116 = vsel %vm1027, %v2101, 0
        %v2119 = vsel %vm1027, %v2102, 0
        %v2122 = vsel %vm1027, %v2103, 0
        %2124 = vmatpush.msra.mxu0 0.0
        %2125 = vmatpush.msra.mxu0 0.0
        %2126 = vmatpush.msra.mxu0 0.0
        %2127 = vmatpush.msra.mxu0 0.0
        %2128 = vmatpush.msra.mxu0 0.0
        %2129 = vmatpush.msra.mxu0 0.0
        %2130 = vmatpush.msra.mxu0 0.0
        %2131 = vmatpush.msra.mxu0 0.0
        %2132 = vmatpush.msra.mxu0 0.0
        %2133 = vmatpush.msra.mxu0 0.0
        %2134 = vmatpush.msra.mxu0 0.0
        %2135 = vmatpush.msra.mxu0 0.0
        %2136 = vmatpush.msra.mxu0 %v2107
        %2137 = vmatpush.msra.mxu0 %v2106
        %2138 = vmatpush.msra.mxu0 %v2105
        %2139 = vmatpush.msra.mxu0 %v2104
        %2140 = vmatmul.f32.gmra.mxu0 %v2113
        %v2141 = vpop.f32.mrf.mxu0
        %v2142 = vadd.f32 %v2110, %v2141
        %2143 = vmatmul.f32.gmra.mxu0 %v2116
        %v2144 = vpop.f32.mrf.mxu0
        %v2145 = vadd.f32 %v2110, %v2144
        %2146 = vmatmul.f32.gmra.mxu0 %v2119
        %v2147 = vpop.f32.mrf.mxu0
        %v2148 = vadd.f32 %v2110, %v2147
        %2149 = vmatmul.f32.gmra.mxu0 %v2122
        %v2150 = vpop.f32.mrf.mxu0
        %v2151 = vadd.f32 %v2110, %v2150
        %2152 = vdwg.mxu0
        %v2153 = vadd.f32 %v1011, %v2142
        %v2154 = vadd.f32 %v1012, %v2145
        %v2155 = vadd.f32 %v1013, %v2148
        %v2156 = vadd.f32 %v1014, %v2151
        %v2157 = vld [vmem:[%s919] sm:$0x1]
        %v2158 = vld [vmem:[%s763] sm:$0x1]
        %v2159 = vsel %vm1027, %v2153, 0.0
        %2160 = vadd.xlane.f32.xlu0 %v2159
        %v2161 = vpop.xlane.xlu0 %2160
        %v2162 = vsel %vm1027, %v2154, 0.0
        %2163 = vadd.xlane.f32.xlu0 %v2162
        %v2164 = vpop.xlane.xlu0 %2163
        %v2165 = vsel %vm1027, %v2155, 0.0
        %2166 = vadd.xlane.f32.xlu0 %v2165
        %v2167 = vpop.xlane.xlu0 %2166
        %v2168 = vsel %vm1027, %v2156, 0.0
        %2169 = vadd.xlane.f32.xlu0 %v2168
        %v2170 = vpop.xlane.xlu0 %2169
        %v2171 = vrcp.pop 32.0
        %v2172 = vmul.f32 32.0, %v2171
        %v2173 = vsub.f32 1.0, %v2172
        %v2174 = vmul.f32 %v2171, %v2173
        %v2175 = vadd.f32 %v2171, %v2174
        %vm2176 = vweird.f32 %v2171
        %v2177 = vsel %vm2176, %v2171, %v2175
        %v2178 = vmul.f32 %v2161, %v2177
        %v2179 = vmul.f32 %v2164, %v2177
        %v2180 = vmul.f32 %v2167, %v2177
        %v2181 = vmul.f32 %v2170, %v2177
        %v2182 = vsub.f32 %v2153, %v2178
        %v2183 = vsub.f32 %v2154, %v2179
        %v2184 = vsub.f32 %v2155, %v2180
        %v2185 = vsub.f32 %v2156, %v2181
        %v2186 = vmul.f32 %v2182, %v2182
        %v2187 = vmul.f32 %v2183, %v2183
        %v2188 = vmul.f32 %v2184, %v2184
        %v2189 = vmul.f32 %v2185, %v2185
        %v2190 = vsel %vm1027, %v2186, 0.0
        %2191 = vadd.xlane.f32.xlu0 %v2190
        %v2192 = vpop.xlane.xlu0 %2191
        %v2193 = vsel %vm1027, %v2187, 0.0
        %2194 = vadd.xlane.f32.xlu0 %v2193
        %v2195 = vpop.xlane.xlu0 %2194
        %v2196 = vsel %vm1027, %v2188, 0.0
        %2197 = vadd.xlane.f32.xlu0 %v2196
        %v2198 = vpop.xlane.xlu0 %2197
        %v2199 = vsel %vm1027, %v2189, 0.0
        %2200 = vadd.xlane.f32.xlu0 %v2199
        %v2201 = vpop.xlane.xlu0 %2200
        %v2202 = vmul.f32 %v2192, %v2177
        %v2203 = vmul.f32 %v2195, %v2177
        %v2204 = vmul.f32 %v2198, %v2177
        %v2205 = vmul.f32 %v2201, %v2177
        %v2206 = vadd.f32 %v2202, 1e-05
        %v2207 = vadd.f32 %v2203, 1e-05
        %v2208 = vadd.f32 %v2204, 1e-05
        %v2209 = vadd.f32 %v2205, 1e-05
        %v2210 = vrsqrt.pop %v2206
        %v2211 = vmul.f32 %v2210, %v2206
        %v2212 = vmul.f32 %v2211, %v2210
        %v2213 = vmul.f32 0.5, %v2212
        %v2214 = vsub.f32 1.5, %v2213
        %v2215 = vmul.f32 %v2210, %v2214
        %vm2216 = vweird.f32 %v2206
        %vm2217 = vweird.f32 %v2210
        %vm2218 = vmor %vm2216, %vm2217
        %v2219 = vsel %vm2218, %v2210, %v2215
        %v2220 = vrsqrt.pop %v2207
        %v2221 = vmul.f32 %v2220, %v2207
        %v2222 = vmul.f32 %v2221, %v2220
        %v2223 = vmul.f32 0.5, %v2222
        %v2224 = vsub.f32 1.5, %v2223
        %v2225 = vmul.f32 %v2220, %v2224
        %vm2226 = vweird.f32 %v2207
        %vm2227 = vweird.f32 %v2220
        %vm2228 = vmor %vm2226, %vm2227
        %v2229 = vsel %vm2228, %v2220, %v2225
        %v2230 = vrsqrt.pop %v2208
        %v2231 = vmul.f32 %v2230, %v2208
        %v2232 = vmul.f32 %v2231, %v2230
        %v2233 = vmul.f32 0.5, %v2232
        %v2234 = vsub.f32 1.5, %v2233
        %v2235 = vmul.f32 %v2230, %v2234
        %vm2236 = vweird.f32 %v2208
        %vm2237 = vweird.f32 %v2230
        %vm2238 = vmor %vm2236, %vm2237
        %v2239 = vsel %vm2238, %v2230, %v2235
        %v2240 = vrsqrt.pop %v2209
        %v2241 = vmul.f32 %v2240, %v2209
        %v2242 = vmul.f32 %v2241, %v2240
        %v2243 = vmul.f32 0.5, %v2242
        %v2244 = vsub.f32 1.5, %v2243
        %v2245 = vmul.f32 %v2240, %v2244
        %vm2246 = vweird.f32 %v2209
        %vm2247 = vweird.f32 %v2240
        %vm2248 = vmor %vm2246, %vm2247
        %v2249 = vsel %vm2248, %v2240, %v2245
        %v2250 = vmul.f32 %v2182, %v2219
        %v2251 = vmul.f32 %v2183, %v2229
        %v2252 = vmul.f32 %v2184, %v2239
        %v2253 = vmul.f32 %v2185, %v2249
        %v2255 = vperm.slane %v2157, 0
        %v2257 = vmul.f32 %v2250, %v2255
        %v2258 = vmul.f32 %v2251, %v2255
        %v2259 = vmul.f32 %v2252, %v2255
        %v2260 = vmul.f32 %v2253, %v2255
        %v2262 = vperm.slane %v2158, 0
        %v2264 = vadd.f32 %v2257, %v2262
        %v2265 = vadd.f32 %v2258, %v2262
        %v2266 = vadd.f32 %v2259, %v2262
        %v2267 = vadd.f32 %v2260, %v2262
        %v2268 = vpack.c.bf16 %v2265, %v2264
        %v2269 = vpack.c.bf16 %v2267, %v2266
        %v2270 = vld [vmem:[%s773] sm:$0xff]
        %v2271 = vld [vmem:[%s773 + $0x8] sm:$0xff]
        %v2272 = vld [vmem:[%s773 + $0x10] sm:$0xff]
        %v2273 = vld [vmem:[%s773 + $0x18] sm:$0xff]
        %v2274 = vld [vmem:[%s773 + $0x20] sm:$0xff]
        %v2275 = vld [vmem:[%s773 + $0x28] sm:$0xff]
        %v2276 = vld [vmem:[%s773 + $0x30] sm:$0xff]
        %v2277 = vld [vmem:[%s773 + $0x38] sm:$0xff]
        %v2278 = vld [vmem:[%s773 + $0x40] sm:$0xff]
        %v2279 = vld [vmem:[%s773 + $0x48] sm:$0xff]
        %v2280 = vld [vmem:[%s773 + $0x50] sm:$0xff]
        %v2281 = vld [vmem:[%s773 + $0x58] sm:$0xff]
        %v2282 = vld [vmem:[%s773 + $0x60] sm:$0xff]
        %v2283 = vld [vmem:[%s773 + $0x68] sm:$0xff]
        %v2284 = vld [vmem:[%s773 + $0x70] sm:$0xff]
        %v2285 = vld [vmem:[%s773 + $0x78] sm:$0xff]
        %v2286 = vld [vmem:[%s773 + $0x80] sm:$0xff]
        %v2287 = vld [vmem:[%s773 + $0x88] sm:$0xff]
        %v2288 = vld [vmem:[%s773 + $0x90] sm:$0xff]
        %v2289 = vld [vmem:[%s773 + $0x98] sm:$0xff]
        %v2290 = vld [vmem:[%s773 + $0xa0] sm:$0xff]
        %v2291 = vld [vmem:[%s773 + $0xa8] sm:$0xff]
        %v2292 = vld [vmem:[%s773 + $0xb0] sm:$0xff]
        %v2293 = vld [vmem:[%s773 + $0xb8] sm:$0xff]
        %v2294 = vld [vmem:[%s773 + $0xc0] sm:$0xff]
        %v2295 = vld [vmem:[%s773 + $0xc8] sm:$0xff]
        %v2296 = vld [vmem:[%s773 + $0xd0] sm:$0xff]
        %v2297 = vld [vmem:[%s773 + $0xd8] sm:$0xff]
        %v2298 = vld [vmem:[%s773 + $0xe0] sm:$0xff]
        %v2299 = vld [vmem:[%s773 + $0xe8] sm:$0xff]
        %v2300 = vld [vmem:[%s773 + $0xf0] sm:$0xff]
        %v2301 = vld [vmem:[%s773 + $0xf8] sm:$0xff]
        %v2302 = vld [vmem:[%s783] sm:$0xff]
        %v2303 = vld [vmem:[%s783 + $0x8] sm:$0xff]
        %v2306 = vperm.slane %v2302, 0
        %v2307 = vperm.slane %v2302, 1
        %v2308 = vperm.slane %v2302, 2
        %v2309 = vperm.slane %v2302, 3
        %v2310 = vperm.slane %v2302, 4
        %v2311 = vperm.slane %v2302, 5
        %v2312 = vperm.slane %v2302, 6
        %v2313 = vperm.slane %v2302, 7
        %v2314 = vperm.slane %v2303, 0
        %v2315 = vperm.slane %v2303, 1
        %v2316 = vperm.slane %v2303, 2
        %v2317 = vperm.slane %v2303, 3
        %v2318 = vperm.slane %v2303, 4
        %v2319 = vperm.slane %v2303, 5
        %v2320 = vperm.slane %v2303, 6
        %v2321 = vperm.slane %v2303, 7
        %v2370 = vunpack.c.l.b16 %v2270
        %v2371 = vunpack.c.h.b16 %v2270
        %v2372 = vunpack.c.l.b16 %v2271
        %v2373 = vunpack.c.h.b16 %v2271
        %v2374 = vunpack.c.l.b16 %v2272
        %v2375 = vunpack.c.h.b16 %v2272
        %v2376 = vunpack.c.l.b16 %v2273
        %v2377 = vunpack.c.h.b16 %v2273
        %v2378 = vunpack.c.l.b16 %v2274
        %v2379 = vunpack.c.h.b16 %v2274
        %v2380 = vunpack.c.l.b16 %v2275
        %v2381 = vunpack.c.h.b16 %v2275
        %v2382 = vunpack.c.l.b16 %v2276
        %v2383 = vunpack.c.h.b16 %v2276
        %v2384 = vunpack.c.l.b16 %v2277
        %v2385 = vunpack.c.h.b16 %v2277
        %v2386 = vunpack.c.l.b16 %v2278
        %v2387 = vunpack.c.h.b16 %v2278
        %v2388 = vunpack.c.l.b16 %v2279
        %v2389 = vunpack.c.h.b16 %v2279
        %v2390 = vunpack.c.l.b16 %v2280
        %v2391 = vunpack.c.h.b16 %v2280
        %v2392 = vunpack.c.l.b16 %v2281
        %v2393 = vunpack.c.h.b16 %v2281
        %v2394 = vunpack.c.l.b16 %v2282
        %v2395 = vunpack.c.h.b16 %v2282
        %v2396 = vunpack.c.l.b16 %v2283
        %v2397 = vunpack.c.h.b16 %v2283
        %v2398 = vunpack.c.l.b16 %v2284
        %v2399 = vunpack.c.h.b16 %v2284
        %v2400 = vunpack.c.l.b16 %v2285
        %v2401 = vunpack.c.h.b16 %v2285
        %v2402 = vunpack.c.l.b16 %v2286
        %v2403 = vunpack.c.h.b16 %v2286
        %v2404 = vunpack.c.l.b16 %v2287
        %v2405 = vunpack.c.h.b16 %v2287
        %v2406 = vunpack.c.l.b16 %v2288
        %v2407 = vunpack.c.h.b16 %v2288
        %v2408 = vunpack.c.l.b16 %v2289
        %v2409 = vunpack.c.h.b16 %v2289
        %v2410 = vunpack.c.l.b16 %v2290
        %v2411 = vunpack.c.h.b16 %v2290
        %v2412 = vunpack.c.l.b16 %v2291
        %v2413 = vunpack.c.h.b16 %v2291
        %v2414 = vunpack.c.l.b16 %v2292
        %v2415 = vunpack.c.h.b16 %v2292
        %v2416 = vunpack.c.l.b16 %v2293
        %v2417 = vunpack.c.h.b16 %v2293
        %v2418 = vunpack.c.l.b16 %v2294
        %v2419 = vunpack.c.h.b16 %v2294
        %v2420 = vunpack.c.l.b16 %v2295
        %v2421 = vunpack.c.h.b16 %v2295
        %v2422 = vunpack.c.l.b16 %v2296
        %v2423 = vunpack.c.h.b16 %v2296
        %v2424 = vunpack.c.l.b16 %v2297
        %v2425 = vunpack.c.h.b16 %v2297
        %v2426 = vunpack.c.l.b16 %v2298
        %v2427 = vunpack.c.h.b16 %v2298
        %v2428 = vunpack.c.l.b16 %v2299
        %v2429 = vunpack.c.h.b16 %v2299
        %v2430 = vunpack.c.l.b16 %v2300
        %v2431 = vunpack.c.h.b16 %v2300
        %v2432 = vunpack.c.l.b16 %v2301
        %v2433 = vunpack.c.h.b16 %v2301
        %v2434 = vpack.c.b16 %v2386, %v2370
        %v2435 = vpack.c.b16 %v2387, %v2371
        %v2436 = vpack.c.b16 %v2388, %v2372
        %v2437 = vpack.c.b16 %v2389, %v2373
        %v2438 = vpack.c.b16 %v2390, %v2374
        %v2439 = vpack.c.b16 %v2391, %v2375
        %v2440 = vpack.c.b16 %v2392, %v2376
        %v2441 = vpack.c.b16 %v2393, %v2377
        %v2442 = vpack.c.b16 %v2394, %v2378
        %v2443 = vpack.c.b16 %v2395, %v2379
        %v2444 = vpack.c.b16 %v2396, %v2380
        %v2445 = vpack.c.b16 %v2397, %v2381
        %v2446 = vpack.c.b16 %v2398, %v2382
        %v2447 = vpack.c.b16 %v2399, %v2383
        %v2448 = vpack.c.b16 %v2400, %v2384
        %v2449 = vpack.c.b16 %v2401, %v2385
        %v2450 = vpack.c.b16 %v2418, %v2402
        %v2451 = vpack.c.b16 %v2419, %v2403
        %v2452 = vpack.c.b16 %v2420, %v2404
        %v2453 = vpack.c.b16 %v2421, %v2405
        %v2454 = vpack.c.b16 %v2422, %v2406
        %v2455 = vpack.c.b16 %v2423, %v2407
        %v2456 = vpack.c.b16 %v2424, %v2408
        %v2457 = vpack.c.b16 %v2425, %v2409
        %v2458 = vpack.c.b16 %v2426, %v2410
        %v2459 = vpack.c.b16 %v2427, %v2411
        %v2460 = vpack.c.b16 %v2428, %v2412
        %v2461 = vpack.c.b16 %v2429, %v2413
        %v2462 = vpack.c.b16 %v2430, %v2414
        %v2463 = vpack.c.b16 %v2431, %v2415
        %v2464 = vpack.c.b16 %v2432, %v2416
        %v2465 = vpack.c.b16 %v2433, %v2417
        %v2499 = vsel %vm1027, %v2268, 0
        %v2502 = vsel %vm1027, %v2269, 0
        %2504 = vmatpush.bf16.msra.mxu0 0
        %2505 = vmatpush.bf16.msra.mxu0 0
        %2506 = vmatpush.bf16.msra.mxu0 0
        %2507 = vmatpush.bf16.msra.mxu0 0
        %2508 = vmatpush.bf16.msra.mxu0 0
        %2509 = vmatpush.bf16.msra.mxu0 0
        %2510 = vmatpush.bf16.msra.mxu0 %v2450
        %2511 = vmatpush.bf16.msra.mxu0 %v2434
        %2512 = vmatmul.bf16.gmra.mxu0 %v2499
        %v2513 = vpop.f32.mrf.mxu0
        %v2514 = vadd.f32 %v2306, %v2513
        %v2515 = vpop.f32.mrf.mxu0
        %v2516 = vadd.f32 %v2306, %v2515
        %2517 = vmatmul.bf16.gmra.mxu0 %v2502
        %v2518 = vpop.f32.mrf.mxu0
        %v2519 = vadd.f32 %v2306, %v2518
        %v2520 = vpop.f32.mrf.mxu0
        %v2521 = vadd.f32 %v2306, %v2520
        %2522 = vdwg.mxu0
        %2523 = vmatpush.bf16.msra.mxu0 0
        %2524 = vmatpush.bf16.msra.mxu0 0
        %2525 = vmatpush.bf16.msra.mxu0 0
        %2526 = vmatpush.bf16.msra.mxu0 0
        %2527 = vmatpush.bf16.msra.mxu0 0
        %2528 = vmatpush.bf16.msra.mxu0 0
        %2529 = vmatpush.bf16.msra.mxu0 %v2451
        %2530 = vmatpush.bf16.msra.mxu0 %v2435
        %2531 = vmatmul.bf16.gmra.mxu0 %v2499
        %v2532 = vpop.f32.mrf.mxu0
        %v2533 = vadd.f32 %v2307, %v2532
        %v2534 = vpop.f32.mrf.mxu0
        %v2535 = vadd.f32 %v2307, %v2534
        %2536 = vmatmul.bf16.gmra.mxu0 %v2502
        %v2537 = vpop.f32.mrf.mxu0
        %v2538 = vadd.f32 %v2307, %v2537
        %v2539 = vpop.f32.mrf.mxu0
        %v2540 = vadd.f32 %v2307, %v2539
        %2541 = vdwg.mxu0
        %2542 = vmatpush.bf16.msra.mxu0 0
        %2543 = vmatpush.bf16.msra.mxu0 0
        %2544 = vmatpush.bf16.msra.mxu0 0
        %2545 = vmatpush.bf16.msra.mxu0 0
        %2546 = vmatpush.bf16.msra.mxu0 0
        %2547 = vmatpush.bf16.msra.mxu0 0
        %2548 = vmatpush.bf16.msra.mxu0 %v2452
        %2549 = vmatpush.bf16.msra.mxu0 %v2436
        %2550 = vmatmul.bf16.gmra.mxu0 %v2499
        %v2551 = vpop.f32.mrf.mxu0
        %v2552 = vadd.f32 %v2308, %v2551
        %v2553 = vpop.f32.mrf.mxu0
        %v2554 = vadd.f32 %v2308, %v2553
        %2555 = vmatmul.bf16.gmra.mxu0 %v2502
        %v2556 = vpop.f32.mrf.mxu0
        %v2557 = vadd.f32 %v2308, %v2556
        %v2558 = vpop.f32.mrf.mxu0
        %v2559 = vadd.f32 %v2308, %v2558
        %2560 = vdwg.mxu0
        %2561 = vmatpush.bf16.msra.mxu0 0
        %2562 = vmatpush.bf16.msra.mxu0 0
        %2563 = vmatpush.bf16.msra.mxu0 0
        %2564 = vmatpush.bf16.msra.mxu0 0
        %2565 = vmatpush.bf16.msra.mxu0 0
        %2566 = vmatpush.bf16.msra.mxu0 0
        %2567 = vmatpush.bf16.msra.mxu0 %v2453
        %2568 = vmatpush.bf16.msra.mxu0 %v2437
        %2569 = vmatmul.bf16.gmra.mxu0 %v2499
        %v2570 = vpop.f32.mrf.mxu0
        %v2571 = vadd.f32 %v2309, %v2570
        %v2572 = vpop.f32.mrf.mxu0
        %v2573 = vadd.f32 %v2309, %v2572
        %2574 = vmatmul.bf16.gmra.mxu0 %v2502
        %v2575 = vpop.f32.mrf.mxu0
        %v2576 = vadd.f32 %v2309, %v2575
        %v2577 = vpop.f32.mrf.mxu0
        %v2578 = vadd.f32 %v2309, %v2577
        %2579 = vdwg.mxu0
        %2580 = vmatpush.bf16.msra.mxu0 0
        %2581 = vmatpush.bf16.msra.mxu0 0
        %2582 = vmatpush.bf16.msra.mxu0 0
        %2583 = vmatpush.bf16.msra.mxu0 0
        %2584 = vmatpush.bf16.msra.mxu0 0
        %2585 = vmatpush.bf16.msra.mxu0 0
        %2586 = vmatpush.bf16.msra.mxu0 %v2454
        %2587 = vmatpush.bf16.msra.mxu0 %v2438
        %2588 = vmatmul.bf16.gmra.mxu0 %v2499
        %v2589 = vpop.f32.mrf.mxu0
        %v2590 = vadd.f32 %v2310, %v2589
        %v2591 = vpop.f32.mrf.mxu0
        %v2592 = vadd.f32 %v2310, %v2591
        %2593 = vmatmul.bf16.gmra.mxu0 %v2502
        %v2594 = vpop.f32.mrf.mxu0
        %v2595 = vadd.f32 %v2310, %v2594
        %v2596 = vpop.f32.mrf.mxu0
        %v2597 = vadd.f32 %v2310, %v2596
        %2598 = vdwg.mxu0
        %2599 = vmatpush.bf16.msra.mxu0 0
        %2600 = vmatpush.bf16.msra.mxu0 0
        %2601 = vmatpush.bf16.msra.mxu0 0
        %2602 = vmatpush.bf16.msra.mxu0 0
        %2603 = vmatpush.bf16.msra.mxu0 0
        %2604 = vmatpush.bf16.msra.mxu0 0
        %2605 = vmatpush.bf16.msra.mxu0 %v2455
        %2606 = vmatpush.bf16.msra.mxu0 %v2439
        %2607 = vmatmul.bf16.gmra.mxu0 %v2499
        %v2608 = vpop.f32.mrf.mxu0
        %v2609 = vadd.f32 %v2311, %v2608
        %v2610 = vpop.f32.mrf.mxu0
        %v2611 = vadd.f32 %v2311, %v2610
        %2612 = vmatmul.bf16.gmra.mxu0 %v2502
        %v2613 = vpop.f32.mrf.mxu0
        %v2614 = vadd.f32 %v2311, %v2613
        %v2615 = vpop.f32.mrf.mxu0
        %v2616 = vadd.f32 %v2311, %v2615
        %2617 = vdwg.mxu0
        %2618 = vmatpush.bf16.msra.mxu0 0
        %2619 = vmatpush.bf16.msra.mxu0 0
        %2620 = vmatpush.bf16.msra.mxu0 0
        %2621 = vmatpush.bf16.msra.mxu0 0
        %2622 = vmatpush.bf16.msra.mxu0 0
        %2623 = vmatpush.bf16.msra.mxu0 0
        %2624 = vmatpush.bf16.msra.mxu0 %v2456
        %2625 = vmatpush.bf16.msra.mxu0 %v2440
        %2626 = vmatmul.bf16.gmra.mxu0 %v2499
        %v2627 = vpop.f32.mrf.mxu0
        %v2628 = vadd.f32 %v2312, %v2627
        %v2629 = vpop.f32.mrf.mxu0
        %v2630 = vadd.f32 %v2312, %v2629
        %2631 = vmatmul.bf16.gmra.mxu0 %v2502
        %v2632 = vpop.f32.mrf.mxu0
        %v2633 = vadd.f32 %v2312, %v2632
        %v2634 = vpop.f32.mrf.mxu0
        %v2635 = vadd.f32 %v2312, %v2634
        %2636 = vdwg.mxu0
        %2637 = vmatpush.bf16.msra.mxu0 0
        %2638 = vmatpush.bf16.msra.mxu0 0
        %2639 = vmatpush.bf16.msra.mxu0 0
        %2640 = vmatpush.bf16.msra.mxu0 0
        %2641 = vmatpush.bf16.msra.mxu0 0
        %2642 = vmatpush.bf16.msra.mxu0 0
        %2643 = vmatpush.bf16.msra.mxu0 %v2457
        %2644 = vmatpush.bf16.msra.mxu0 %v2441
        %2645 = vmatmul.bf16.gmra.mxu0 %v2499
        %v2646 = vpop.f32.mrf.mxu0
        %v2647 = vadd.f32 %v2313, %v2646
        %v2648 = vpop.f32.mrf.mxu0
        %v2649 = vadd.f32 %v2313, %v2648
        %2650 = vmatmul.bf16.gmra.mxu0 %v2502
        %v2651 = vpop.f32.mrf.mxu0
        %v2652 = vadd.f32 %v2313, %v2651
        %v2653 = vpop.f32.mrf.mxu0
        %v2654 = vadd.f32 %v2313, %v2653
        %2655 = vdwg.mxu0
        %2656 = vmatpush.bf16.msra.mxu0 0
        %2657 = vmatpush.bf16.msra.mxu0 0
        %2658 = vmatpush.bf16.msra.mxu0 0
        %2659 = vmatpush.bf16.msra.mxu0 0
        %2660 = vmatpush.bf16.msra.mxu0 0
        %2661 = vmatpush.bf16.msra.mxu0 0
        %2662 = vmatpush.bf16.msra.mxu0 %v2458
        %2663 = vmatpush.bf16.msra.mxu0 %v2442
        %2664 = vmatmul.bf16.gmra.mxu0 %v2499
        %v2665 = vpop.f32.mrf.mxu0
        %v2666 = vadd.f32 %v2314, %v2665
        %v2667 = vpop.f32.mrf.mxu0
        %v2668 = vadd.f32 %v2314, %v2667
        %2669 = vmatmul.bf16.gmra.mxu0 %v2502
        %v2670 = vpop.f32.mrf.mxu0
        %v2671 = vadd.f32 %v2314, %v2670
        %v2672 = vpop.f32.mrf.mxu0
        %v2673 = vadd.f32 %v2314, %v2672
        %2674 = vdwg.mxu0
        %2675 = vmatpush.bf16.msra.mxu0 0
        %2676 = vmatpush.bf16.msra.mxu0 0
        %2677 = vmatpush.bf16.msra.mxu0 0
        %2678 = vmatpush.bf16.msra.mxu0 0
        %2679 = vmatpush.bf16.msra.mxu0 0
        %2680 = vmatpush.bf16.msra.mxu0 0
        %2681 = vmatpush.bf16.msra.mxu0 %v2459
        %2682 = vmatpush.bf16.msra.mxu0 %v2443
        %2683 = vmatmul.bf16.gmra.mxu0 %v2499
        %v2684 = vpop.f32.mrf.mxu0
        %v2685 = vadd.f32 %v2315, %v2684
        %v2686 = vpop.f32.mrf.mxu0
        %v2687 = vadd.f32 %v2315, %v2686
        %2688 = vmatmul.bf16.gmra.mxu0 %v2502
        %v2689 = vpop.f32.mrf.mxu0
        %v2690 = vadd.f32 %v2315, %v2689
        %v2691 = vpop.f32.mrf.mxu0
        %v2692 = vadd.f32 %v2315, %v2691
        %2693 = vdwg.mxu0
        %2694 = vmatpush.bf16.msra.mxu0 0
        %2695 = vmatpush.bf16.msra.mxu0 0
        %2696 = vmatpush.bf16.msra.mxu0 0
        %2697 = vmatpush.bf16.msra.mxu0 0
        %2698 = vmatpush.bf16.msra.mxu0 0
        %2699 = vmatpush.bf16.msra.mxu0 0
        %2700 = vmatpush.bf16.msra.mxu0 %v2460
        %2701 = vmatpush.bf16.msra.mxu0 %v2444
        %2702 = vmatmul.bf16.gmra.mxu0 %v2499
        %v2703 = vpop.f32.mrf.mxu0
        %v2704 = vadd.f32 %v2316, %v2703
        %v2705 = vpop.f32.mrf.mxu0
        %v2706 = vadd.f32 %v2316, %v2705
        %2707 = vmatmul.bf16.gmra.mxu0 %v2502
        %v2708 = vpop.f32.mrf.mxu0
        %v2709 = vadd.f32 %v2316, %v2708
        %v2710 = vpop.f32.mrf.mxu0
        %v2711 = vadd.f32 %v2316, %v2710
        %2712 = vdwg.mxu0
        %2713 = vmatpush.bf16.msra.mxu0 0
        %2714 = vmatpush.bf16.msra.mxu0 0
        %2715 = vmatpush.bf16.msra.mxu0 0
        %2716 = vmatpush.bf16.msra.mxu0 0
        %2717 = vmatpush.bf16.msra.mxu0 0
        %2718 = vmatpush.bf16.msra.mxu0 0
        %2719 = vmatpush.bf16.msra.mxu0 %v2461
        %2720 = vmatpush.bf16.msra.mxu0 %v2445
        %2721 = vmatmul.bf16.gmra.mxu0 %v2499
        %v2722 = vpop.f32.mrf.mxu0
        %v2723 = vadd.f32 %v2317, %v2722
        %v2724 = vpop.f32.mrf.mxu0
        %v2725 = vadd.f32 %v2317, %v2724
        %2726 = vmatmul.bf16.gmra.mxu0 %v2502
        %v2727 = vpop.f32.mrf.mxu0
        %v2728 = vadd.f32 %v2317, %v2727
        %v2729 = vpop.f32.mrf.mxu0
        %v2730 = vadd.f32 %v2317, %v2729
        %2731 = vdwg.mxu0
        %2732 = vmatpush.bf16.msra.mxu0 0
        %2733 = vmatpush.bf16.msra.mxu0 0
        %2734 = vmatpush.bf16.msra.mxu0 0
        %2735 = vmatpush.bf16.msra.mxu0 0
        %2736 = vmatpush.bf16.msra.mxu0 0
        %2737 = vmatpush.bf16.msra.mxu0 0
        %2738 = vmatpush.bf16.msra.mxu0 %v2462
        %2739 = vmatpush.bf16.msra.mxu0 %v2446
        %2740 = vmatmul.bf16.gmra.mxu0 %v2499
        %v2741 = vpop.f32.mrf.mxu0
        %v2742 = vadd.f32 %v2318, %v2741
        %v2743 = vpop.f32.mrf.mxu0
        %v2744 = vadd.f32 %v2318, %v2743
        %2745 = vmatmul.bf16.gmra.mxu0 %v2502
        %v2746 = vpop.f32.mrf.mxu0
        %v2747 = vadd.f32 %v2318, %v2746
        %v2748 = vpop.f32.mrf.mxu0
        %v2749 = vadd.f32 %v2318, %v2748
        %2750 = vdwg.mxu0
        %2751 = vmatpush.bf16.msra.mxu0 0
        %2752 = vmatpush.bf16.msra.mxu0 0
        %2753 = vmatpush.bf16.msra.mxu0 0
        %2754 = vmatpush.bf16.msra.mxu0 0
        %2755 = vmatpush.bf16.msra.mxu0 0
        %2756 = vmatpush.bf16.msra.mxu0 0
        %2757 = vmatpush.bf16.msra.mxu0 %v2463
        %2758 = vmatpush.bf16.msra.mxu0 %v2447
        %2759 = vmatmul.bf16.gmra.mxu0 %v2499
        %v2760 = vpop.f32.mrf.mxu0
        %v2761 = vadd.f32 %v2319, %v2760
        %v2762 = vpop.f32.mrf.mxu0
        %v2763 = vadd.f32 %v2319, %v2762
        %2764 = vmatmul.bf16.gmra.mxu0 %v2502
        %v2765 = vpop.f32.mrf.mxu0
        %v2766 = vadd.f32 %v2319, %v2765
        %v2767 = vpop.f32.mrf.mxu0
        %v2768 = vadd.f32 %v2319, %v2767
        %2769 = vdwg.mxu0
        %2770 = vmatpush.bf16.msra.mxu0 0
        %2771 = vmatpush.bf16.msra.mxu0 0
        %2772 = vmatpush.bf16.msra.mxu0 0
        %2773 = vmatpush.bf16.msra.mxu0 0
        %2774 = vmatpush.bf16.msra.mxu0 0
        %2775 = vmatpush.bf16.msra.mxu0 0
        %2776 = vmatpush.bf16.msra.mxu0 %v2464
        %2777 = vmatpush.bf16.msra.mxu0 %v2448
        %2778 = vmatmul.bf16.gmra.mxu0 %v2499
        %v2779 = vpop.f32.mrf.mxu0
        %v2780 = vadd.f32 %v2320, %v2779
        %v2781 = vpop.f32.mrf.mxu0
        %v2782 = vadd.f32 %v2320, %v2781
        %2783 = vmatmul.bf16.gmra.mxu0 %v2502
        %v2784 = vpop.f32.mrf.mxu0
        %v2785 = vadd.f32 %v2320, %v2784
        %v2786 = vpop.f32.mrf.mxu0
        %v2787 = vadd.f32 %v2320, %v2786
        %2788 = vdwg.mxu0
        %2789 = vmatpush.bf16.msra.mxu0 0
        %2790 = vmatpush.bf16.msra.mxu0 0
        %2791 = vmatpush.bf16.msra.mxu0 0
        %2792 = vmatpush.bf16.msra.mxu0 0
        %2793 = vmatpush.bf16.msra.mxu0 0
        %2794 = vmatpush.bf16.msra.mxu0 0
        %2795 = vmatpush.bf16.msra.mxu0 %v2465
        %2796 = vmatpush.bf16.msra.mxu0 %v2449
        %2797 = vmatmul.bf16.gmra.mxu0 %v2499
        %v2798 = vpop.f32.mrf.mxu0
        %v2799 = vadd.f32 %v2321, %v2798
        %v2800 = vpop.f32.mrf.mxu0
        %v2801 = vadd.f32 %v2321, %v2800
        %2802 = vmatmul.bf16.gmra.mxu0 %v2502
        %v2803 = vpop.f32.mrf.mxu0
        %v2804 = vadd.f32 %v2321, %v2803
        %v2805 = vpop.f32.mrf.mxu0
        %v2806 = vadd.f32 %v2321, %v2805
        %2807 = vdwg.mxu0
        %v2808 = vmax.f32 %v2514, 0.0
        %v2809 = vmax.f32 %v2533, 0.0
        %v2810 = vmax.f32 %v2552, 0.0
        %v2811 = vmax.f32 %v2571, 0.0
        %v2812 = vmax.f32 %v2590, 0.0
        %v2813 = vmax.f32 %v2609, 0.0
        %v2814 = vmax.f32 %v2628, 0.0
        %v2815 = vmax.f32 %v2647, 0.0
        %v2816 = vmax.f32 %v2666, 0.0
        %v2817 = vmax.f32 %v2685, 0.0
        %v2818 = vmax.f32 %v2704, 0.0
        %v2819 = vmax.f32 %v2723, 0.0
        %v2820 = vmax.f32 %v2742, 0.0
        %v2821 = vmax.f32 %v2761, 0.0
        %v2822 = vmax.f32 %v2780, 0.0
        %v2823 = vmax.f32 %v2799, 0.0
        %v2824 = vmax.f32 %v2516, 0.0
        %v2825 = vmax.f32 %v2535, 0.0
        %v2826 = vmax.f32 %v2554, 0.0
        %v2827 = vmax.f32 %v2573, 0.0
        %v2828 = vmax.f32 %v2592, 0.0
        %v2829 = vmax.f32 %v2611, 0.0
        %v2830 = vmax.f32 %v2630, 0.0
        %v2831 = vmax.f32 %v2649, 0.0
        %v2832 = vmax.f32 %v2668, 0.0
        %v2833 = vmax.f32 %v2687, 0.0
        %v2834 = vmax.f32 %v2706, 0.0
        %v2835 = vmax.f32 %v2725, 0.0
        %v2836 = vmax.f32 %v2744, 0.0
        %v2837 = vmax.f32 %v2763, 0.0
        %v2838 = vmax.f32 %v2782, 0.0
        %v2839 = vmax.f32 %v2801, 0.0
        %v2840 = vmax.f32 %v2519, 0.0
        %v2841 = vmax.f32 %v2538, 0.0
        %v2842 = vmax.f32 %v2557, 0.0
        %v2843 = vmax.f32 %v2576, 0.0
        %v2844 = vmax.f32 %v2595, 0.0
        %v2845 = vmax.f32 %v2614, 0.0
        %v2846 = vmax.f32 %v2633, 0.0
        %v2847 = vmax.f32 %v2652, 0.0
        %v2848 = vmax.f32 %v2671, 0.0
        %v2849 = vmax.f32 %v2690, 0.0
        %v2850 = vmax.f32 %v2709, 0.0
        %v2851 = vmax.f32 %v2728, 0.0
        %v2852 = vmax.f32 %v2747, 0.0
        %v2853 = vmax.f32 %v2766, 0.0
        %v2854 = vmax.f32 %v2785, 0.0
        %v2855 = vmax.f32 %v2804, 0.0
        %v2856 = vmax.f32 %v2521, 0.0
        %v2857 = vmax.f32 %v2540, 0.0
        %v2858 = vmax.f32 %v2559, 0.0
        %v2859 = vmax.f32 %v2578, 0.0
        %v2860 = vmax.f32 %v2597, 0.0
        %v2861 = vmax.f32 %v2616, 0.0
        %v2862 = vmax.f32 %v2635, 0.0
        %v2863 = vmax.f32 %v2654, 0.0
        %v2864 = vmax.f32 %v2673, 0.0
        %v2865 = vmax.f32 %v2692, 0.0
        %v2866 = vmax.f32 %v2711, 0.0
        %v2867 = vmax.f32 %v2730, 0.0
        %v2868 = vmax.f32 %v2749, 0.0
        %v2869 = vmax.f32 %v2768, 0.0
        %v2870 = vmax.f32 %v2787, 0.0
        %v2871 = vmax.f32 %v2806, 0.0
        %v2872 = vpack.c.bf16 %v2824, %v2808
        %v2873 = vpack.c.bf16 %v2825, %v2809
        %v2874 = vpack.c.bf16 %v2826, %v2810
        %v2875 = vpack.c.bf16 %v2827, %v2811
        %v2876 = vpack.c.bf16 %v2828, %v2812
        %v2877 = vpack.c.bf16 %v2829, %v2813
        %v2878 = vpack.c.bf16 %v2830, %v2814
        %v2879 = vpack.c.bf16 %v2831, %v2815
        %v2880 = vpack.c.bf16 %v2832, %v2816
        %v2881 = vpack.c.bf16 %v2833, %v2817
        %v2882 = vpack.c.bf16 %v2834, %v2818
        %v2883 = vpack.c.bf16 %v2835, %v2819
        %v2884 = vpack.c.bf16 %v2836, %v2820
        %v2885 = vpack.c.bf16 %v2837, %v2821
        %v2886 = vpack.c.bf16 %v2838, %v2822
        %v2887 = vpack.c.bf16 %v2839, %v2823
        %v2888 = vpack.c.bf16 %v2856, %v2840
        %v2889 = vpack.c.bf16 %v2857, %v2841
        %v2890 = vpack.c.bf16 %v2858, %v2842
        %v2891 = vpack.c.bf16 %v2859, %v2843
        %v2892 = vpack.c.bf16 %v2860, %v2844
        %v2893 = vpack.c.bf16 %v2861, %v2845
        %v2894 = vpack.c.bf16 %v2862, %v2846
        %v2895 = vpack.c.bf16 %v2863, %v2847
        %v2896 = vpack.c.bf16 %v2864, %v2848
        %v2897 = vpack.c.bf16 %v2865, %v2849
        %v2898 = vpack.c.bf16 %v2866, %v2850
        %v2899 = vpack.c.bf16 %v2867, %v2851
        %v2900 = vpack.c.bf16 %v2868, %v2852
        %v2901 = vpack.c.bf16 %v2869, %v2853
        %v2902 = vpack.c.bf16 %v2870, %v2854
        %v2903 = vpack.c.bf16 %v2871, %v2855
        %v2904 = vld [vmem:[%s793] sm:$0xff]
        %v2905 = vld [vmem:[%s793 + $0x8] sm:$0xff]
        %v2906 = vld [vmem:[%s793 + $0x10] sm:$0xff]
        %v2907 = vld [vmem:[%s793 + $0x18] sm:$0xff]
        %v2908 = vld [vmem:[%s793 + $0x20] sm:$0xff]
        %v2909 = vld [vmem:[%s793 + $0x28] sm:$0xff]
        %v2910 = vld [vmem:[%s793 + $0x30] sm:$0xff]
        %v2911 = vld [vmem:[%s793 + $0x38] sm:$0xff]
        %v2912 = vld [vmem:[%s793 + $0x40] sm:$0xff]
        %v2913 = vld [vmem:[%s793 + $0x48] sm:$0xff]
        %v2914 = vld [vmem:[%s793 + $0x50] sm:$0xff]
        %v2915 = vld [vmem:[%s793 + $0x58] sm:$0xff]
        %v2916 = vld [vmem:[%s793 + $0x60] sm:$0xff]
        %v2917 = vld [vmem:[%s793 + $0x68] sm:$0xff]
        %v2918 = vld [vmem:[%s793 + $0x70] sm:$0xff]
        %v2919 = vld [vmem:[%s793 + $0x78] sm:$0xff]
        %v2920 = vld [vmem:[%s793 + $0x80] sm:$0xff]
        %v2921 = vld [vmem:[%s793 + $0x88] sm:$0xff]
        %v2922 = vld [vmem:[%s793 + $0x90] sm:$0xff]
        %v2923 = vld [vmem:[%s793 + $0x98] sm:$0xff]
        %v2924 = vld [vmem:[%s793 + $0xa0] sm:$0xff]
        %v2925 = vld [vmem:[%s793 + $0xa8] sm:$0xff]
        %v2926 = vld [vmem:[%s793 + $0xb0] sm:$0xff]
        %v2927 = vld [vmem:[%s793 + $0xb8] sm:$0xff]
        %v2928 = vld [vmem:[%s793 + $0xc0] sm:$0xff]
        %v2929 = vld [vmem:[%s793 + $0xc8] sm:$0xff]
        %v2930 = vld [vmem:[%s793 + $0xd0] sm:$0xff]
        %v2931 = vld [vmem:[%s793 + $0xd8] sm:$0xff]
        %v2932 = vld [vmem:[%s793 + $0xe0] sm:$0xff]
        %v2933 = vld [vmem:[%s793 + $0xe8] sm:$0xff]
        %v2934 = vld [vmem:[%s793 + $0xf0] sm:$0xff]
        %v2935 = vld [vmem:[%s793 + $0xf8] sm:$0xff]
        %v2936 = vld [vmem:[%s802] sm:$0x1]
        %v2938 = vperm.slane %v2936, 0
        %v2972 = vunpack.c.l.b16 %v2904
        %v2973 = vunpack.c.h.b16 %v2904
        %v2974 = vunpack.c.l.b16 %v2905
        %v2975 = vunpack.c.h.b16 %v2905
        %v2976 = vunpack.c.l.b16 %v2906
        %v2977 = vunpack.c.h.b16 %v2906
        %v2978 = vunpack.c.l.b16 %v2907
        %v2979 = vunpack.c.h.b16 %v2907
        %v2980 = vunpack.c.l.b16 %v2908
        %v2981 = vunpack.c.h.b16 %v2908
        %v2982 = vunpack.c.l.b16 %v2909
        %v2983 = vunpack.c.h.b16 %v2909
        %v2984 = vunpack.c.l.b16 %v2910
        %v2985 = vunpack.c.h.b16 %v2910
        %v2986 = vunpack.c.l.b16 %v2911
        %v2987 = vunpack.c.h.b16 %v2911
        %v2988 = vunpack.c.l.b16 %v2912
        %v2989 = vunpack.c.h.b16 %v2912
        %v2990 = vunpack.c.l.b16 %v2913
        %v2991 = vunpack.c.h.b16 %v2913
        %v2992 = vunpack.c.l.b16 %v2914
        %v2993 = vunpack.c.h.b16 %v2914
        %v2994 = vunpack.c.l.b16 %v2915
        %v2995 = vunpack.c.h.b16 %v2915
        %v2996 = vunpack.c.l.b16 %v2916
        %v2997 = vunpack.c.h.b16 %v2916
        %v2998 = vunpack.c.l.b16 %v2917
        %v2999 = vunpack.c.h.b16 %v2917
        %v3000 = vunpack.c.l.b16 %v2918
        %v3001 = vunpack.c.h.b16 %v2918
        %v3002 = vunpack.c.l.b16 %v2919
        %v3003 = vunpack.c.h.b16 %v2919
        %v3004 = vunpack.c.l.b16 %v2920
        %v3005 = vunpack.c.h.b16 %v2920
        %v3006 = vunpack.c.l.b16 %v2921
        %v3007 = vunpack.c.h.b16 %v2921
        %v3008 = vunpack.c.l.b16 %v2922
        %v3009 = vunpack.c.h.b16 %v2922
        %v3010 = vunpack.c.l.b16 %v2923
        %v3011 = vunpack.c.h.b16 %v2923
        %v3012 = vunpack.c.l.b16 %v2924
        %v3013 = vunpack.c.h.b16 %v2924
        %v3014 = vunpack.c.l.b16 %v2925
        %v3015 = vunpack.c.h.b16 %v2925
        %v3016 = vunpack.c.l.b16 %v2926
        %v3017 = vunpack.c.h.b16 %v2926
        %v3018 = vunpack.c.l.b16 %v2927
        %v3019 = vunpack.c.h.b16 %v2927
        %v3020 = vunpack.c.l.b16 %v2928
        %v3021 = vunpack.c.h.b16 %v2928
        %v3022 = vunpack.c.l.b16 %v2929
        %v3023 = vunpack.c.h.b16 %v2929
        %v3024 = vunpack.c.l.b16 %v2930
        %v3025 = vunpack.c.h.b16 %v2930
        %v3026 = vunpack.c.l.b16 %v2931
        %v3027 = vunpack.c.h.b16 %v2931
        %v3028 = vunpack.c.l.b16 %v2932
        %v3029 = vunpack.c.h.b16 %v2932
        %v3030 = vunpack.c.l.b16 %v2933
        %v3031 = vunpack.c.h.b16 %v2933
        %v3032 = vunpack.c.l.b16 %v2934
        %v3033 = vunpack.c.h.b16 %v2934
        %v3034 = vunpack.c.l.b16 %v2935
        %v3035 = vunpack.c.h.b16 %v2935
        %v3036 = vpack.c.b16 %v2988, %v2972
        %v3037 = vpack.c.b16 %v2989, %v2973
        %v3038 = vpack.c.b16 %v2990, %v2974
        %v3039 = vpack.c.b16 %v2991, %v2975
        %v3040 = vpack.c.b16 %v2992, %v2976
        %v3041 = vpack.c.b16 %v2993, %v2977
        %v3042 = vpack.c.b16 %v2994, %v2978
        %v3043 = vpack.c.b16 %v2995, %v2979
        %v3044 = vpack.c.b16 %v2996, %v2980
        %v3045 = vpack.c.b16 %v2997, %v2981
        %v3046 = vpack.c.b16 %v2998, %v2982
        %v3047 = vpack.c.b16 %v2999, %v2983
        %v3048 = vpack.c.b16 %v3000, %v2984
        %v3049 = vpack.c.b16 %v3001, %v2985
        %v3050 = vpack.c.b16 %v3002, %v2986
        %v3051 = vpack.c.b16 %v3003, %v2987
        %v3052 = vpack.c.b16 %v3020, %v3004
        %v3053 = vpack.c.b16 %v3021, %v3005
        %v3054 = vpack.c.b16 %v3022, %v3006
        %v3055 = vpack.c.b16 %v3023, %v3007
        %v3056 = vpack.c.b16 %v3024, %v3008
        %v3057 = vpack.c.b16 %v3025, %v3009
        %v3058 = vpack.c.b16 %v3026, %v3010
        %v3059 = vpack.c.b16 %v3027, %v3011
        %v3060 = vpack.c.b16 %v3028, %v3012
        %v3061 = vpack.c.b16 %v3029, %v3013
        %v3062 = vpack.c.b16 %v3030, %v3014
        %v3063 = vpack.c.b16 %v3031, %v3015
        %v3064 = vpack.c.b16 %v3032, %v3016
        %v3065 = vpack.c.b16 %v3033, %v3017
        %v3066 = vpack.c.b16 %v3034, %v3018
        %v3067 = vpack.c.b16 %v3035, %v3019
        %3100 = vmatpush.bf16.xpose.msra.mxu0 0
        %3101 = vmatpush.bf16.xpose.msra.mxu0 0
        %3102 = vmatpush.bf16.xpose.msra.mxu0 0
        %3103 = vmatpush.bf16.xpose.msra.mxu0 0
        %3104 = vmatpush.bf16.xpose.msra.mxu0 0
        %3105 = vmatpush.bf16.xpose.msra.mxu0 0
        %3106 = vmatpush.bf16.xpose.msra.mxu0 %v3052
        %3107 = vmatpush.bf16.xpose.msra.mxu0 %v3036
        %3108 = vmatmul.bf16.gmra.mxu0 %v2872
        %v3109 = vpop.f32.mrf.mxu0
        %v3110 = vadd.f32 %v2938, %v3109
        %v3111 = vpop.f32.mrf.mxu0
        %v3112 = vadd.f32 %v2938, %v3111
        %3113 = vmatmul.bf16.gmra.mxu0 %v2888
        %v3114 = vpop.f32.mrf.mxu0
        %v3115 = vadd.f32 %v2938, %v3114
        %v3116 = vpop.f32.mrf.mxu0
        %v3117 = vadd.f32 %v2938, %v3116
        %3118 = vdwg.mxu0
        %3119 = vmatpush.bf16.xpose.msra.mxu0 0
        %3120 = vmatpush.bf16.xpose.msra.mxu0 0
        %3121 = vmatpush.bf16.xpose.msra.mxu0 0
        %3122 = vmatpush.bf16.xpose.msra.mxu0 0
        %3123 = vmatpush.bf16.xpose.msra.mxu0 0
        %3124 = vmatpush.bf16.xpose.msra.mxu0 0
        %3125 = vmatpush.bf16.xpose.msra.mxu0 %v3053
        %3126 = vmatpush.bf16.xpose.msra.mxu0 %v3037
        %3127 = vmatmul.bf16.gmra.mxu0 %v2873
        %v3128 = vpop.f32.mrf.mxu0
        %v3129 = vadd.f32 %v3110, %v3128
        %v3130 = vpop.f32.mrf.mxu0
        %v3131 = vadd.f32 %v3112, %v3130
        %3132 = vmatmul.bf16.gmra.mxu0 %v2889
        %v3133 = vpop.f32.mrf.mxu0
        %v3134 = vadd.f32 %v3115, %v3133
        %v3135 = vpop.f32.mrf.mxu0
        %v3136 = vadd.f32 %v3117, %v3135
        %3137 = vdwg.mxu0
        %3138 = vmatpush.bf16.xpose.msra.mxu0 0
        %3139 = vmatpush.bf16.xpose.msra.mxu0 0
        %3140 = vmatpush.bf16.xpose.msra.mxu0 0
        %3141 = vmatpush.bf16.xpose.msra.mxu0 0
        %3142 = vmatpush.bf16.xpose.msra.mxu0 0
        %3143 = vmatpush.bf16.xpose.msra.mxu0 0
        %3144 = vmatpush.bf16.xpose.msra.mxu0 %v3054
        %3145 = vmatpush.bf16.xpose.msra.mxu0 %v3038
        %3146 = vmatmul.bf16.gmra.mxu0 %v2874
        %v3147 = vpop.f32.mrf.mxu0
        %v3148 = vadd.f32 %v3129, %v3147
        %v3149 = vpop.f32.mrf.mxu0
        %v3150 = vadd.f32 %v3131, %v3149
        %3151 = vmatmul.bf16.gmra.mxu0 %v2890
        %v3152 = vpop.f32.mrf.mxu0
        %v3153 = vadd.f32 %v3134, %v3152
        %v3154 = vpop.f32.mrf.mxu0
        %v3155 = vadd.f32 %v3136, %v3154
        %3156 = vdwg.mxu0
        %3157 = vmatpush.bf16.xpose.msra.mxu0 0
        %3158 = vmatpush.bf16.xpose.msra.mxu0 0
        %3159 = vmatpush.bf16.xpose.msra.mxu0 0
        %3160 = vmatpush.bf16.xpose.msra.mxu0 0
        %3161 = vmatpush.bf16.xpose.msra.mxu0 0
        %3162 = vmatpush.bf16.xpose.msra.mxu0 0
        %3163 = vmatpush.bf16.xpose.msra.mxu0 %v3055
        %3164 = vmatpush.bf16.xpose.msra.mxu0 %v3039
        %3165 = vmatmul.bf16.gmra.mxu0 %v2875
        %v3166 = vpop.f32.mrf.mxu0
        %v3167 = vadd.f32 %v3148, %v3166
        %v3168 = vpop.f32.mrf.mxu0
        %v3169 = vadd.f32 %v3150, %v3168
        %3170 = vmatmul.bf16.gmra.mxu0 %v2891
        %v3171 = vpop.f32.mrf.mxu0
        %v3172 = vadd.f32 %v3153, %v3171
        %v3173 = vpop.f32.mrf.mxu0
        %v3174 = vadd.f32 %v3155, %v3173
        %3175 = vdwg.mxu0
        %3176 = vmatpush.bf16.xpose.msra.mxu0 0
        %3177 = vmatpush.bf16.xpose.msra.mxu0 0
        %3178 = vmatpush.bf16.xpose.msra.mxu0 0
        %3179 = vmatpush.bf16.xpose.msra.mxu0 0
        %3180 = vmatpush.bf16.xpose.msra.mxu0 0
        %3181 = vmatpush.bf16.xpose.msra.mxu0 0
        %3182 = vmatpush.bf16.xpose.msra.mxu0 %v3056
        %3183 = vmatpush.bf16.xpose.msra.mxu0 %v3040
        %3184 = vmatmul.bf16.gmra.mxu0 %v2876
        %v3185 = vpop.f32.mrf.mxu0
        %v3186 = vadd.f32 %v3167, %v3185
        %v3187 = vpop.f32.mrf.mxu0
        %v3188 = vadd.f32 %v3169, %v3187
        %3189 = vmatmul.bf16.gmra.mxu0 %v2892
        %v3190 = vpop.f32.mrf.mxu0
        %v3191 = vadd.f32 %v3172, %v3190
        %v3192 = vpop.f32.mrf.mxu0
        %v3193 = vadd.f32 %v3174, %v3192
        %3194 = vdwg.mxu0
        %3195 = vmatpush.bf16.xpose.msra.mxu0 0
        %3196 = vmatpush.bf16.xpose.msra.mxu0 0
        %3197 = vmatpush.bf16.xpose.msra.mxu0 0
        %3198 = vmatpush.bf16.xpose.msra.mxu0 0
        %3199 = vmatpush.bf16.xpose.msra.mxu0 0
        %3200 = vmatpush.bf16.xpose.msra.mxu0 0
        %3201 = vmatpush.bf16.xpose.msra.mxu0 %v3057
        %3202 = vmatpush.bf16.xpose.msra.mxu0 %v3041
        %3203 = vmatmul.bf16.gmra.mxu0 %v2877
        %v3204 = vpop.f32.mrf.mxu0
        %v3205 = vadd.f32 %v3186, %v3204
        %v3206 = vpop.f32.mrf.mxu0
        %v3207 = vadd.f32 %v3188, %v3206
        %3208 = vmatmul.bf16.gmra.mxu0 %v2893
        %v3209 = vpop.f32.mrf.mxu0
        %v3210 = vadd.f32 %v3191, %v3209
        %v3211 = vpop.f32.mrf.mxu0
        %v3212 = vadd.f32 %v3193, %v3211
        %3213 = vdwg.mxu0
        %3214 = vmatpush.bf16.xpose.msra.mxu0 0
        %3215 = vmatpush.bf16.xpose.msra.mxu0 0
        %3216 = vmatpush.bf16.xpose.msra.mxu0 0
        %3217 = vmatpush.bf16.xpose.msra.mxu0 0
        %3218 = vmatpush.bf16.xpose.msra.mxu0 0
        %3219 = vmatpush.bf16.xpose.msra.mxu0 0
        %3220 = vmatpush.bf16.xpose.msra.mxu0 %v3058
        %3221 = vmatpush.bf16.xpose.msra.mxu0 %v3042
        %3222 = vmatmul.bf16.gmra.mxu0 %v2878
        %v3223 = vpop.f32.mrf.mxu0
        %v3224 = vadd.f32 %v3205, %v3223
        %v3225 = vpop.f32.mrf.mxu0
        %v3226 = vadd.f32 %v3207, %v3225
        %3227 = vmatmul.bf16.gmra.mxu0 %v2894
        %v3228 = vpop.f32.mrf.mxu0
        %v3229 = vadd.f32 %v3210, %v3228
        %v3230 = vpop.f32.mrf.mxu0
        %v3231 = vadd.f32 %v3212, %v3230
        %3232 = vdwg.mxu0
        %3233 = vmatpush.bf16.xpose.msra.mxu0 0
        %3234 = vmatpush.bf16.xpose.msra.mxu0 0
        %3235 = vmatpush.bf16.xpose.msra.mxu0 0
        %3236 = vmatpush.bf16.xpose.msra.mxu0 0
        %3237 = vmatpush.bf16.xpose.msra.mxu0 0
        %3238 = vmatpush.bf16.xpose.msra.mxu0 0
        %3239 = vmatpush.bf16.xpose.msra.mxu0 %v3059
        %3240 = vmatpush.bf16.xpose.msra.mxu0 %v3043
        %3241 = vmatmul.bf16.gmra.mxu0 %v2879
        %v3242 = vpop.f32.mrf.mxu0
        %v3243 = vadd.f32 %v3224, %v3242
        %v3244 = vpop.f32.mrf.mxu0
        %v3245 = vadd.f32 %v3226, %v3244
        %3246 = vmatmul.bf16.gmra.mxu0 %v2895
        %v3247 = vpop.f32.mrf.mxu0
        %v3248 = vadd.f32 %v3229, %v3247
        %v3249 = vpop.f32.mrf.mxu0
        %v3250 = vadd.f32 %v3231, %v3249
        %3251 = vdwg.mxu0
        %3252 = vmatpush.bf16.xpose.msra.mxu0 0
        %3253 = vmatpush.bf16.xpose.msra.mxu0 0
        %3254 = vmatpush.bf16.xpose.msra.mxu0 0
        %3255 = vmatpush.bf16.xpose.msra.mxu0 0
        %3256 = vmatpush.bf16.xpose.msra.mxu0 0
        %3257 = vmatpush.bf16.xpose.msra.mxu0 0
        %3258 = vmatpush.bf16.xpose.msra.mxu0 %v3060
        %3259 = vmatpush.bf16.xpose.msra.mxu0 %v3044
        %3260 = vmatmul.bf16.gmra.mxu0 %v2880
        %v3261 = vpop.f32.mrf.mxu0
        %v3262 = vadd.f32 %v3243, %v3261
        %v3263 = vpop.f32.mrf.mxu0
        %v3264 = vadd.f32 %v3245, %v3263
        %3265 = vmatmul.bf16.gmra.mxu0 %v2896
        %v3266 = vpop.f32.mrf.mxu0
        %v3267 = vadd.f32 %v3248, %v3266
        %v3268 = vpop.f32.mrf.mxu0
        %v3269 = vadd.f32 %v3250, %v3268
        %3270 = vdwg.mxu0
        %3271 = vmatpush.bf16.xpose.msra.mxu0 0
        %3272 = vmatpush.bf16.xpose.msra.mxu0 0
        %3273 = vmatpush.bf16.xpose.msra.mxu0 0
        %3274 = vmatpush.bf16.xpose.msra.mxu0 0
        %3275 = vmatpush.bf16.xpose.msra.mxu0 0
        %3276 = vmatpush.bf16.xpose.msra.mxu0 0
        %3277 = vmatpush.bf16.xpose.msra.mxu0 %v3061
        %3278 = vmatpush.bf16.xpose.msra.mxu0 %v3045
        %3279 = vmatmul.bf16.gmra.mxu0 %v2881
        %v3280 = vpop.f32.mrf.mxu0
        %v3281 = vadd.f32 %v3262, %v3280
        %v3282 = vpop.f32.mrf.mxu0
        %v3283 = vadd.f32 %v3264, %v3282
        %3284 = vmatmul.bf16.gmra.mxu0 %v2897
        %v3285 = vpop.f32.mrf.mxu0
        %v3286 = vadd.f32 %v3267, %v3285
        %v3287 = vpop.f32.mrf.mxu0
        %v3288 = vadd.f32 %v3269, %v3287
        %3289 = vdwg.mxu0
        %3290 = vmatpush.bf16.xpose.msra.mxu0 0
        %3291 = vmatpush.bf16.xpose.msra.mxu0 0
        %3292 = vmatpush.bf16.xpose.msra.mxu0 0
        %3293 = vmatpush.bf16.xpose.msra.mxu0 0
        %3294 = vmatpush.bf16.xpose.msra.mxu0 0
        %3295 = vmatpush.bf16.xpose.msra.mxu0 0
        %3296 = vmatpush.bf16.xpose.msra.mxu0 %v3062
        %3297 = vmatpush.bf16.xpose.msra.mxu0 %v3046
        %3298 = vmatmul.bf16.gmra.mxu0 %v2882
        %v3299 = vpop.f32.mrf.mxu0
        %v3300 = vadd.f32 %v3281, %v3299
        %v3301 = vpop.f32.mrf.mxu0
        %v3302 = vadd.f32 %v3283, %v3301
        %3303 = vmatmul.bf16.gmra.mxu0 %v2898
        %v3304 = vpop.f32.mrf.mxu0
        %v3305 = vadd.f32 %v3286, %v3304
        %v3306 = vpop.f32.mrf.mxu0
        %v3307 = vadd.f32 %v3288, %v3306
        %3308 = vdwg.mxu0
        %3309 = vmatpush.bf16.xpose.msra.mxu0 0
        %3310 = vmatpush.bf16.xpose.msra.mxu0 0
        %3311 = vmatpush.bf16.xpose.msra.mxu0 0
        %3312 = vmatpush.bf16.xpose.msra.mxu0 0
        %3313 = vmatpush.bf16.xpose.msra.mxu0 0
        %3314 = vmatpush.bf16.xpose.msra.mxu0 0
        %3315 = vmatpush.bf16.xpose.msra.mxu0 %v3063
        %3316 = vmatpush.bf16.xpose.msra.mxu0 %v3047
        %3317 = vmatmul.bf16.gmra.mxu0 %v2883
        %v3318 = vpop.f32.mrf.mxu0
        %v3319 = vadd.f32 %v3300, %v3318
        %v3320 = vpop.f32.mrf.mxu0
        %v3321 = vadd.f32 %v3302, %v3320
        %3322 = vmatmul.bf16.gmra.mxu0 %v2899
        %v3323 = vpop.f32.mrf.mxu0
        %v3324 = vadd.f32 %v3305, %v3323
        %v3325 = vpop.f32.mrf.mxu0
        %v3326 = vadd.f32 %v3307, %v3325
        %3327 = vdwg.mxu0
        %3328 = vmatpush.bf16.xpose.msra.mxu0 0
        %3329 = vmatpush.bf16.xpose.msra.mxu0 0
        %3330 = vmatpush.bf16.xpose.msra.mxu0 0
        %3331 = vmatpush.bf16.xpose.msra.mxu0 0
        %3332 = vmatpush.bf16.xpose.msra.mxu0 0
        %3333 = vmatpush.bf16.xpose.msra.mxu0 0
        %3334 = vmatpush.bf16.xpose.msra.mxu0 %v3064
        %3335 = vmatpush.bf16.xpose.msra.mxu0 %v3048
        %3336 = vmatmul.bf16.gmra.mxu0 %v2884
        %v3337 = vpop.f32.mrf.mxu0
        %v3338 = vadd.f32 %v3319, %v3337
        %v3339 = vpop.f32.mrf.mxu0
        %v3340 = vadd.f32 %v3321, %v3339
        %3341 = vmatmul.bf16.gmra.mxu0 %v2900
        %v3342 = vpop.f32.mrf.mxu0
        %v3343 = vadd.f32 %v3324, %v3342
        %v3344 = vpop.f32.mrf.mxu0
        %v3345 = vadd.f32 %v3326, %v3344
        %3346 = vdwg.mxu0
        %3347 = vmatpush.bf16.xpose.msra.mxu0 0
        %3348 = vmatpush.bf16.xpose.msra.mxu0 0
        %3349 = vmatpush.bf16.xpose.msra.mxu0 0
        %3350 = vmatpush.bf16.xpose.msra.mxu0 0
        %3351 = vmatpush.bf16.xpose.msra.mxu0 0
        %3352 = vmatpush.bf16.xpose.msra.mxu0 0
        %3353 = vmatpush.bf16.xpose.msra.mxu0 %v3065
        %3354 = vmatpush.bf16.xpose.msra.mxu0 %v3049
        %3355 = vmatmul.bf16.gmra.mxu0 %v2885
        %v3356 = vpop.f32.mrf.mxu0
        %v3357 = vadd.f32 %v3338, %v3356
        %v3358 = vpop.f32.mrf.mxu0
        %v3359 = vadd.f32 %v3340, %v3358
        %3360 = vmatmul.bf16.gmra.mxu0 %v2901
        %v3361 = vpop.f32.mrf.mxu0
        %v3362 = vadd.f32 %v3343, %v3361
        %v3363 = vpop.f32.mrf.mxu0
        %v3364 = vadd.f32 %v3345, %v3363
        %3365 = vdwg.mxu0
        %3366 = vmatpush.bf16.xpose.msra.mxu0 0
        %3367 = vmatpush.bf16.xpose.msra.mxu0 0
        %3368 = vmatpush.bf16.xpose.msra.mxu0 0
        %3369 = vmatpush.bf16.xpose.msra.mxu0 0
        %3370 = vmatpush.bf16.xpose.msra.mxu0 0
        %3371 = vmatpush.bf16.xpose.msra.mxu0 0
        %3372 = vmatpush.bf16.xpose.msra.mxu0 %v3066
        %3373 = vmatpush.bf16.xpose.msra.mxu0 %v3050
        %3374 = vmatmul.bf16.gmra.mxu0 %v2886
        %v3375 = vpop.f32.mrf.mxu0
        %v3376 = vadd.f32 %v3357, %v3375
        %v3377 = vpop.f32.mrf.mxu0
        %v3378 = vadd.f32 %v3359, %v3377
        %3379 = vmatmul.bf16.gmra.mxu0 %v2902
        %v3380 = vpop.f32.mrf.mxu0
        %v3381 = vadd.f32 %v3362, %v3380
        %v3382 = vpop.f32.mrf.mxu0
        %v3383 = vadd.f32 %v3364, %v3382
        %3384 = vdwg.mxu0
        %3385 = vmatpush.bf16.xpose.msra.mxu0 0
        %3386 = vmatpush.bf16.xpose.msra.mxu0 0
        %3387 = vmatpush.bf16.xpose.msra.mxu0 0
        %3388 = vmatpush.bf16.xpose.msra.mxu0 0
        %3389 = vmatpush.bf16.xpose.msra.mxu0 0
        %3390 = vmatpush.bf16.xpose.msra.mxu0 0
        %3391 = vmatpush.bf16.xpose.msra.mxu0 %v3067
        %3392 = vmatpush.bf16.xpose.msra.mxu0 %v3051
        %3393 = vmatmul.bf16.gmra.mxu0 %v2887
        %v3394 = vpop.f32.mrf.mxu0
        %v3395 = vadd.f32 %v3376, %v3394
        %v3396 = vpop.f32.mrf.mxu0
        %v3397 = vadd.f32 %v3378, %v3396
        %3398 = vmatmul.bf16.gmra.mxu0 %v2903
        %v3399 = vpop.f32.mrf.mxu0
        %v3400 = vadd.f32 %v3381, %v3399
        %v3401 = vpop.f32.mrf.mxu0
        %v3402 = vadd.f32 %v3383, %v3401
        %3403 = vdwg.mxu0
        %v3404 = vadd.f32 %v2264, %v3395
        %v3405 = vadd.f32 %v2265, %v3397
        %v3406 = vadd.f32 %v2266, %v3400
        %v3407 = vadd.f32 %v2267, %v3402
        %v3408 = vld [vmem:[%s922] sm:$0x1]
        %v3409 = vld [vmem:[%s811] sm:$0x1]
        %v3410 = vsel %vm1027, %v3404, 0.0
        %3411 = vadd.xlane.f32.xlu0 %v3410
        %v3412 = vpop.xlane.xlu0 %3411
        %v3413 = vsel %vm1027, %v3405, 0.0
        %3414 = vadd.xlane.f32.xlu0 %v3413
        %v3415 = vpop.xlane.xlu0 %3414
        %v3416 = vsel %vm1027, %v3406, 0.0
        %3417 = vadd.xlane.f32.xlu0 %v3416
        %v3418 = vpop.xlane.xlu0 %3417
        %v3419 = vsel %vm1027, %v3407, 0.0
        %3420 = vadd.xlane.f32.xlu0 %v3419
        %v3421 = vpop.xlane.xlu0 %3420
        %v3422 = vmul.f32 %v3412, %v2177
        %v3423 = vmul.f32 %v3415, %v2177
        %v3424 = vmul.f32 %v3418, %v2177
        %v3425 = vmul.f32 %v3421, %v2177
        %v3426 = vsub.f32 %v3404, %v3422
        %v3427 = vsub.f32 %v3405, %v3423
        %v3428 = vsub.f32 %v3406, %v3424
        %v3429 = vsub.f32 %v3407, %v3425
        %v3430 = vmul.f32 %v3426, %v3426
        %v3431 = vmul.f32 %v3427, %v3427
        %v3432 = vmul.f32 %v3428, %v3428
        %v3433 = vmul.f32 %v3429, %v3429
        %v3434 = vsel %vm1027, %v3430, 0.0
        %3435 = vadd.xlane.f32.xlu0 %v3434
        %v3436 = vpop.xlane.xlu0 %3435
        %v3437 = vsel %vm1027, %v3431, 0.0
        %3438 = vadd.xlane.f32.xlu0 %v3437
        %v3439 = vpop.xlane.xlu0 %3438
        %v3440 = vsel %vm1027, %v3432, 0.0
        %3441 = vadd.xlane.f32.xlu0 %v3440
        %v3442 = vpop.xlane.xlu0 %3441
        %v3443 = vsel %vm1027, %v3433, 0.0
        %3444 = vadd.xlane.f32.xlu0 %v3443
        %v3445 = vpop.xlane.xlu0 %3444
        %v3446 = vmul.f32 %v3436, %v2177
        %v3447 = vmul.f32 %v3439, %v2177
        %v3448 = vmul.f32 %v3442, %v2177
        %v3449 = vmul.f32 %v3445, %v2177
        %v3450 = vadd.f32 %v3446, 1e-05
        %v3451 = vadd.f32 %v3447, 1e-05
        %v3452 = vadd.f32 %v3448, 1e-05
        %v3453 = vadd.f32 %v3449, 1e-05
        %v3454 = vrsqrt.pop %v3450
        %v3455 = vmul.f32 %v3454, %v3450
        %v3456 = vmul.f32 %v3455, %v3454
        %v3457 = vmul.f32 0.5, %v3456
        %v3458 = vsub.f32 1.5, %v3457
        %v3459 = vmul.f32 %v3454, %v3458
        %vm3460 = vweird.f32 %v3450
        %vm3461 = vweird.f32 %v3454
        %vm3462 = vmor %vm3460, %vm3461
        %v3463 = vsel %vm3462, %v3454, %v3459
        %v3464 = vrsqrt.pop %v3451
        %v3465 = vmul.f32 %v3464, %v3451
        %v3466 = vmul.f32 %v3465, %v3464
        %v3467 = vmul.f32 0.5, %v3466
        %v3468 = vsub.f32 1.5, %v3467
        %v3469 = vmul.f32 %v3464, %v3468
        %vm3470 = vweird.f32 %v3451
        %vm3471 = vweird.f32 %v3464
        %vm3472 = vmor %vm3470, %vm3471
        %v3473 = vsel %vm3472, %v3464, %v3469
        %v3474 = vrsqrt.pop %v3452
        %v3475 = vmul.f32 %v3474, %v3452
        %v3476 = vmul.f32 %v3475, %v3474
        %v3477 = vmul.f32 0.5, %v3476
        %v3478 = vsub.f32 1.5, %v3477
        %v3479 = vmul.f32 %v3474, %v3478
        %vm3480 = vweird.f32 %v3452
        %vm3481 = vweird.f32 %v3474
        %vm3482 = vmor %vm3480, %vm3481
        %v3483 = vsel %vm3482, %v3474, %v3479
        %v3484 = vrsqrt.pop %v3453
        %v3485 = vmul.f32 %v3484, %v3453
        %v3486 = vmul.f32 %v3485, %v3484
        %v3487 = vmul.f32 0.5, %v3486
        %v3488 = vsub.f32 1.5, %v3487
        %v3489 = vmul.f32 %v3484, %v3488
        %vm3490 = vweird.f32 %v3453
        %vm3491 = vweird.f32 %v3484
        %vm3492 = vmor %vm3490, %vm3491
        %v3493 = vsel %vm3492, %v3484, %v3489
        %v3494 = vmul.f32 %v3426, %v3463
        %v3495 = vmul.f32 %v3427, %v3473
        %v3496 = vmul.f32 %v3428, %v3483
        %v3497 = vmul.f32 %v3429, %v3493
        %v3499 = vperm.slane %v3408, 0
        %v3501 = vmul.f32 %v3494, %v3499
        %v3502 = vmul.f32 %v3495, %v3499
        %v3503 = vmul.f32 %v3496, %v3499
        %v3504 = vmul.f32 %v3497, %v3499
        %v3506 = vperm.slane %v3409, 0
        %v3508 = vadd.f32 %v3501, %v3506
        %v3509 = vadd.f32 %v3502, %v3506
        %v3510 = vadd.f32 %v3503, %v3506
        %v3511 = vadd.f32 %v3504, %v3506
        %3512 = vst.msk [vmem:[#allocation2] sm:$0xff] %vm1027, %v3508
        %3513 = vst.msk [vmem:[#allocation2 + $0x8] sm:$0xff] %vm1027, %v3509
        %3514 = vst.msk [vmem:[#allocation2 + $0x10] sm:$0xff] %vm1027, %v3510
        %3515 = vst.msk [vmem:[#allocation2 + $0x18] sm:$0xff] %vm1027, %v3511
        %p3516 = scmp.eq.s32.totalorder %s44, 1
        // Predicated region
        $region133: #{temporal_transformer_forward.1} parent=95 // pred_check
          %p3517 = pneg %p3516
        $region134: #{temporal_transformer_forward.1} parent=95 // pred_check_branch
          %3519 = sbr.rel (%p3517) target = $region136
        $region135: #{temporal_transformer_forward.1} parent=95 // pred_region
          %v3520 = vld [vmem:[%s17] sm:$0xff]
          %v3521 = vld [vmem:[%s17 + $0x8] sm:$0xff]
          %v3522 = vld [vmem:[%s17 + $0x10] sm:$0xff]
          %v3523 = vld [vmem:[%s17 + $0x18] sm:$0xff]
          %v3524 = vld [vmem:[%s18] sm:$0x1]
          %v3526 = vperm.slane %v3524, 0
          %v3530 = vrot.slane %v3510, 7
          %vm3531 = vcmask 1041409
          %v3532 = vsel %vm3531, %v3530, %v3508
          %v3533 = vsel %vm1027, %v3532, 0
          %3535 = vmatpush.msra.mxu0 0.0
          %3536 = vmatpush.msra.mxu0 0.0
          %3537 = vmatpush.msra.mxu0 0.0
          %3538 = vmatpush.msra.mxu0 0.0
          %3539 = vmatpush.msra.mxu0 0.0
          %3540 = vmatpush.msra.mxu0 0.0
          %3541 = vmatpush.msra.mxu0 0.0
          %3542 = vmatpush.msra.mxu0 0.0
          %3543 = vmatpush.msra.mxu0 0.0
          %3544 = vmatpush.msra.mxu0 0.0
          %3545 = vmatpush.msra.mxu0 0.0
          %3546 = vmatpush.msra.mxu0 0.0
          %3547 = vmatpush.msra.mxu0 %v3523
          %3548 = vmatpush.msra.mxu0 %v3522
          %3549 = vmatpush.msra.mxu0 %v3521
          %3550 = vmatpush.msra.mxu0 %v3520
          %3551 = vmatmul.f32.gmra.mxu0 %v3533
          %v3552 = vpop.f32.mrf.mxu0
          %v3553 = vadd.f32 %v3526, %v3552
          %3554 = vdwg.mxu0
          %vm3555 = vcmask 58368
          %3556 = vst.msk [vmem:[#allocation17] sm:$0x3] %vm3555, %v3553
        $region136: #{temporal_transformer_forward.1} parent=95 // pred_fallthru
          _
        // Predicated region
        $region137: #{temporal_transformer_forward.1} parent=95 // pred_check
          %p3557 = pneg %p516
        $region138: #{temporal_transformer_forward.1} parent=95 // pred_check_branch
          %3559 = sbr.rel (%p3557) target = $region140
        $region139: #{temporal_transformer_forward.1} parent=95 // pred_region
          %3561 = vsyncadd [#allocation5], 0
          %s3563 = sshll.u32 [#allocation17], 4
          %s3564 = int_to_ptr.vmem [resolvable:$true] %s3563
          %s3565 = sshll.u32 %s19, 4
          %s3566 = int_to_ptr.hbm [resolvable:$true] %s3565
          %3568 = dma.vmem_to_hbm [thread:$0]  %s3564, 32, %s3566, [#allocation5]
        $region140: #{temporal_transformer_forward.1} parent=95 // pred_fallthru
          _
        // Predicated region
        $region141: #{temporal_transformer_forward.1} parent=95 // pred_check
          %p3569 = pneg %p516
        $region142: #{temporal_transformer_forward.1} parent=95 // pred_check_branch
          %3571 = sbr.rel (%p3569) target = $region144
        $region143: #{temporal_transformer_forward.1} parent=95 // pred_region
          %3573 = dma.done [#allocation5], 32
        $region144: #{temporal_transformer_forward.1} parent=95 // pred_fallthru
          _
      $region96: #{temporal_transformer_forward.1} parent=5 // pred_fallthru
        _
      %p3574 = scmp.le.s32.totalorder 2, %s39
      // Predicated region
      $region145: #{temporal_transformer_forward.1} parent=5 // pred_check
        %p3575 = pneg %p3574
      $region146: #{temporal_transformer_forward.1} parent=5 // pred_check_branch
        %3577 = sbr.rel (%p3575) target = $region148
      $region147: #{temporal_transformer_forward.1} parent=5 // pred_region
        %s3578 = ssub.s32 %s39, 2
      $region148: #{temporal_transformer_forward.1} parent=5 // pred_fallthru
        _
    $region6: #{temporal_transformer_forward.1} parent=1 // loop_footer
      %s43 = sadd.s32 1, %s39
    $region7: #{temporal_transformer_forward.1} parent=1 // loop_footer_branch
      %38 = sbr.rel target = $region3
    $region8: #{temporal_transformer_forward.1} parent=1 // loop_exit
      _
    %3579 = vsyncpa [#allocation4], 1
    %s3580 = scalar_lea.sflag [#allocation4], 1
    %3581 = vsyncpa %s3580, 1
    %3582 = vsyncpa [#allocation7], 1
    %s3583 = scalar_lea.sflag [#allocation7], 1
    %3584 = vsyncpa %s3583, 1
    %3585 = vsyncpa [#allocation10], 1
    %s3586 = scalar_lea.sflag [#allocation10], 1
    %3587 = vsyncpa %s3586, 1
    %3588 = vsyncpa [#allocation13], 1
    %s3589 = scalar_lea.sflag [#allocation13], 1
    %3590 = vsyncpa %s3589, 1
    %3591 = vsyncpa [#allocation16], 1
    %s3592 = scalar_lea.sflag [#allocation16], 1
    %3593 = vsyncpa %s3592, 1
    %3594 = vsyncpa [#allocation5], 1
    %s3595 = scalar_lea.sflag [#allocation5], 1
    %3596 = vsyncpa %s3595, 1

</llo_original>
